<compile_context>
chip_gen: v7x
topology: tpu7x:2x2x1
jax: 0.10.0
libtpu: 0.0.40
codegen_flags: <defaults>
</compile_context>

<pallas_src>
import jax
import jax.numpy as jnp
from jax.experimental import pallas as pl
from jax.experimental.pallas import tpu as pltpu

LATENT = 128
HIDDEN = 1024
OUT = 784
OUT_PAD = 896                 # 7 * 128, lane-aligned
N_CHUNKS = 4                  # chunks along layer-2 cols == layer-3 rows
CHUNK = HIDDEN // N_CHUNKS    # 256


def generator_kernel(x_ref, w1_ref, b1_ref, w2_ref, b2_ref, w3_ref, b3_ref,
                     o_ref, h1_scr, acc_scr):
    k = pl.program_id(0)

    @pl.when(k == 0)
    def _():
        # Layer 1: Linear(128 -> 1024) + ReLU. Computed once; h1 stays in VMEM.
        h1 = jnp.dot(x_ref[...].astype(jnp.bfloat16), w1_ref[...],
                     preferred_element_type=jnp.float32)
        h1_scr[...] = jnp.maximum(h1 + b1_ref[...], 0.0)
        acc_scr[...] = jnp.zeros_like(acc_scr)

    # Layer 2 (one 256-wide column chunk) + ReLU, then its layer-3 contribution.
    h2 = jnp.dot(h1_scr[...].astype(jnp.bfloat16), w2_ref[...],
                 preferred_element_type=jnp.float32)
    h2 = jnp.maximum(h2 + b2_ref[...], 0.0)
    acc_scr[...] += jnp.dot(h2.astype(jnp.bfloat16), w3_ref[...],
                            preferred_element_type=jnp.float32)

    @pl.when(k == pl.num_programs(0) - 1)
    def _():
        # Layer 3 bias + Tanh (tanh on EUP); padded columns are tanh(0) = 0.
        o_ref[...] = jnp.tanh(acc_scr[...] + b3_ref[...])


@jax.jit
def generator_forward(x, params):
    w1, b1, w2, b2, w3, b3 = params
    B = x.shape[0]

    # bf16 weights (HBM-traffic halved); pad last layer to a lane multiple.
    pad = OUT_PAD - OUT
    w1b = w1.astype(jnp.bfloat16)
    w2b = w2.astype(jnp.bfloat16)
    w3b = jnp.pad(w3, ((0, 0), (0, pad))).astype(jnp.bfloat16)
    b3p = jnp.pad(b3, ((0, 0), (0, pad)))

    out_padded = pl.pallas_call(
        generator_kernel,
        out_shape=jax.ShapeDtypeStruct((B, OUT_PAD), jnp.float32),
        grid_spec=pltpu.PrefetchScalarGridSpec(
            num_scalar_prefetch=0,
            grid=(N_CHUNKS,),
            in_specs=[
                pl.BlockSpec((B, LATENT), lambda k: (0, 0)),        # x  (f32)
                pl.BlockSpec((LATENT, HIDDEN), lambda k: (0, 0)),   # W1 (bf16)
                pl.BlockSpec((1, HIDDEN), lambda k: (0, 0)),        # b1 (f32)
                pl.BlockSpec((HIDDEN, CHUNK), lambda k: (0, k)),    # W2 col chunk
                pl.BlockSpec((1, CHUNK), lambda k: (0, k)),         # b2 chunk
                pl.BlockSpec((CHUNK, OUT_PAD), lambda k: (k, 0)),   # W3 row chunk
                pl.BlockSpec((1, OUT_PAD), lambda k: (0, 0)),       # b3 (padded)
            ],
            out_specs=pl.BlockSpec((B, OUT_PAD), lambda k: (0, 0)),
            scratch_shapes=[
                pltpu.VMEM((B, HIDDEN), jnp.float32),    # h1 (resident)
                pltpu.VMEM((B, OUT_PAD), jnp.float32),   # layer-3 accumulator
            ],
        ),
        compiler_params=pltpu.CompilerParams(
            dimension_semantics=("arbitrary",),          # reduction axis
            vmem_limit_bytes=32 * 1024 * 1024,           # fits v5e/v6e/v7x
        ),
    )(x, w1b, b1, w2b, b2, w3b, b3p)
    return out_padded[:, :OUT]


def init_params(key):
    # Deterministic init mimicking nn.Linear default (uniform +- 1/sqrt(fan_in)).
    # Weights stored as (in, out) so y = x @ W + b == PyTorch's x @ W.T + b.
    dims = [(LATENT, HIDDEN), (HIDDEN, HIDDEN), (HIDDEN, OUT)]
    params = []
    for fan_in, fan_out in dims:
        kw, kb, key = jax.random.split(key, 3)
        bound = 1.0 / jnp.sqrt(float(fan_in))
        w = jax.random.uniform(kw, (fan_in, fan_out), jnp.float32, -bound, bound)
        b = jax.random.uniform(kb, (1, fan_out), jnp.float32, -bound, bound)
        params += [w, b]
    return params


def reference_forward(x, params):
    # Mirrors the kernel's numerics: matmul operands rounded to bf16,
    # f32 accumulation, f32 bias / ReLU / tanh.
    w1, b1, w2, b2, w3, b3 = params
    bf = lambda a: a.astype(jnp.bfloat16).astype(jnp.float32)
    h1 = jnp.maximum(bf(x) @ bf(w1) + b1, 0.0)
    h2 = jnp.maximum(bf(h1) @ bf(w2) + b2, 0.0)
    return jnp.tanh(bf(h2) @ bf(w3) + b3)


if __name__ == "__main__":
    key = jax.random.PRNGKey(0)
    kx, kp = jax.random.split(key)
    B = 8  # latent dim fixed at 128 by the module
    x = jax.random.normal(kx, (B, LATENT), jnp.float32)
    params = init_params(kp)

    out = generator_forward(x, params)
    out = jax.block_until_ready(out)

    ref = reference_forward(x, params)
    assert out.shape == (B, OUT), out.shape
    assert jnp.allclose(out, ref, atol=1e-2, rtol=1e-2), "mismatch vs reference"
    print("KERNEL_OK")
</pallas_src>

<mosaic_0001>
module attributes {stable_mosaic.version = 11 : i64} {
  func.func @generator_kernel(%arg0: i32, %arg1: memref<8x128xf32, #tpu.memory_space<vmem>>, %arg2: memref<128x1024xbf16, #tpu.memory_space<vmem>>, %arg3: memref<1x1024xf32, #tpu.memory_space<vmem>>, %arg4: memref<1024x256xbf16, #tpu.memory_space<vmem>>, %arg5: memref<1x256xf32, #tpu.memory_space<vmem>>, %arg6: memref<256x896xbf16, #tpu.memory_space<vmem>>, %arg7: memref<1x896xf32, #tpu.memory_space<vmem>>, %arg8: memref<8x896xf32, #tpu.memory_space<vmem>>, %arg9: memref<8x1024xf32, #tpu.memory_space<vmem>>, %arg10: memref<8x896xf32, #tpu.memory_space<vmem>>) attributes {dimension_semantics = [#tpu.dimension_semantics<arbitrary>], iteration_bounds = array<i64: 4>, scalar_prefetch = 0 : i64, scratch_operands = 2 : i64, tpu.core_type = #tpu.core_type<tc>, window_params = [{pipeline_mode = #tpu.pipeline_mode<synchronous>, transform_indices = @transform_0, window_bounds = array<i64: 8, 128>}, {pipeline_mode = #tpu.pipeline_mode<synchronous>, transform_indices = @transform_1, window_bounds = array<i64: 128, 1024>}, {pipeline_mode = #tpu.pipeline_mode<synchronous>, transform_indices = @transform_2, window_bounds = array<i64: 1, 1024>}, {transform_indices = @transform_3, window_bounds = array<i64: 1024, 256>}, {transform_indices = @transform_4, window_bounds = array<i64: 1, 256>}, {transform_indices = @transform_5, window_bounds = array<i64: 256, 896>}, {pipeline_mode = #tpu.pipeline_mode<synchronous>, transform_indices = @transform_6, window_bounds = array<i64: 1, 896>}, {pipeline_mode = #tpu.pipeline_mode<synchronous>, transform_indices = @transform_7, window_bounds = array<i64: 8, 896>}]} {
    %c0_i32 = arith.constant 0 : i32
    %0 = arith.cmpi eq, %arg0, %c0_i32 : i32
    %1 = arith.extui %0 : i1 to i32
    %c0_i32_0 = arith.constant 0 : i32
    %2 = arith.cmpi ne, %1, %c0_i32_0 : i32
    scf.if %2 {
      %c0_15 = arith.constant 0 : index
      %c0_16 = arith.constant 0 : index
      %21 = vector.load %arg1[%c0_15, %c0_16] : memref<8x128xf32, #tpu.memory_space<vmem>>, vector<8x128xf32>
      %22 = arith.truncf %21 : vector<8x128xf32> to vector<8x128xbf16>
      %c0_17 = arith.constant 0 : index
      %c0_18 = arith.constant 0 : index
      %23 = vector.load %arg2[%c0_17, %c0_18] : memref<128x1024xbf16, #tpu.memory_space<vmem>>, vector<128x1024xbf16>
      %cst_19 = arith.constant dense<0.000000e+00> : vector<8x1024xf32>
      %24 = tpu.matmul %22, %23, %cst_19 {dimension_numbers = #tpu.dot_dimension_numbers<[1], [0], [0], [1], [0, 0, 1, 1], [], []>} : vector<8x128xbf16>, vector<128x1024xbf16>, vector<8x1024xf32> -> vector<8x1024xf32>
      %c0_20 = arith.constant 0 : index
      %c0_21 = arith.constant 0 : index
      %25 = vector.load %arg3[%c0_20, %c0_21] : memref<1x1024xf32, #tpu.memory_space<vmem>>, vector<1x1024xf32>
      %26 = vector.broadcast %25 : vector<1x1024xf32> to vector<8x1024xf32>
      %27 = arith.addf %24, %26 : vector<8x1024xf32>
      %cst_22 = arith.constant 0.000000e+00 : f32
      %28 = vector.broadcast %cst_22 : f32 to vector<8x1024xf32>
      %29 = arith.maximumf %27, %28 : vector<8x1024xf32>
      %c0_23 = arith.constant 0 : index
      %c0_24 = arith.constant 0 : index
      %30 = vector.load %arg9[%c0_23, %c0_24] : memref<8x1024xf32, #tpu.memory_space<vmem>>, vector<8x1024xf32>
      tpu.vector_store %arg9[%c0_23, %c0_24], %29 {strides = array<i32>} : memref<8x1024xf32, #tpu.memory_space<vmem>>, vector<8x1024xf32>,
      %cst_25 = arith.constant 0.000000e+00 : f32
      %31 = vector.broadcast %cst_25 : f32 to vector<8x896xf32>
      %c0_26 = arith.constant 0 : index
      %c0_27 = arith.constant 0 : index
      %32 = vector.load %arg10[%c0_26, %c0_27] : memref<8x896xf32, #tpu.memory_space<vmem>>, vector<8x896xf32>
      tpu.vector_store %arg10[%c0_26, %c0_27], %31 {strides = array<i32>} : memref<8x896xf32, #tpu.memory_space<vmem>>, vector<8x896xf32>,
    } else {
    }
    %c0 = arith.constant 0 : index
    %c0_1 = arith.constant 0 : index
    %3 = vector.load %arg9[%c0, %c0_1] : memref<8x1024xf32, #tpu.memory_space<vmem>>, vector<8x1024xf32>
    %4 = arith.truncf %3 : vector<8x1024xf32> to vector<8x1024xbf16>
    %c0_2 = arith.constant 0 : index
    %c0_3 = arith.constant 0 : index
    %5 = vector.load %arg4[%c0_2, %c0_3] : memref<1024x256xbf16, #tpu.memory_space<vmem>>, vector<1024x256xbf16>
    %cst = arith.constant dense<0.000000e+00> : vector<8x256xf32>
    %6 = tpu.matmul %4, %5, %cst {dimension_numbers = #tpu.dot_dimension_numbers<[1], [0], [0], [1], [0, 0, 1, 1], [], []>} : vector<8x1024xbf16>, vector<1024x256xbf16>, vector<8x256xf32> -> vector<8x256xf32>
    %c0_4 = arith.constant 0 : index
    %c0_5 = arith.constant 0 : index
    %7 = vector.load %arg5[%c0_4, %c0_5] : memref<1x256xf32, #tpu.memory_space<vmem>>, vector<1x256xf32>
    %8 = vector.broadcast %7 : vector<1x256xf32> to vector<8x256xf32>
    %9 = arith.addf %6, %8 : vector<8x256xf32>
    %cst_6 = arith.constant 0.000000e+00 : f32
    %10 = vector.broadcast %cst_6 : f32 to vector<8x256xf32>
    %11 = arith.maximumf %9, %10 : vector<8x256xf32>
    %c0_7 = arith.constant 0 : index
    %c0_8 = arith.constant 0 : index
    %12 = vector.load %arg10[%c0_7, %c0_8] : memref<8x896xf32, #tpu.memory_space<vmem>>, vector<8x896xf32>
    %13 = arith.truncf %11 : vector<8x256xf32> to vector<8x256xbf16>
    %c0_9 = arith.constant 0 : index
    %c0_10 = arith.constant 0 : index
    %14 = vector.load %arg6[%c0_9, %c0_10] : memref<256x896xbf16, #tpu.memory_space<vmem>>, vector<256x896xbf16>
    %cst_11 = arith.constant dense<0.000000e+00> : vector<8x896xf32>
    %15 = tpu.matmul %13, %14, %cst_11 {dimension_numbers = #tpu.dot_dimension_numbers<[1], [0], [0], [1], [0, 0, 1, 1], [], []>} : vector<8x256xbf16>, vector<256x896xbf16>, vector<8x896xf32> -> vector<8x896xf32>
    %16 = arith.addf %12, %15 : vector<8x896xf32>
    %c0_12 = arith.constant 0 : index
    %c0_13 = arith.constant 0 : index
    %17 = vector.load %arg10[%c0_12, %c0_13] : memref<8x896xf32, #tpu.memory_space<vmem>>, vector<8x896xf32>
    tpu.vector_store %arg10[%c0_12, %c0_13], %16 {strides = array<i32>} : memref<8x896xf32, #tpu.memory_space<vmem>>, vector<8x896xf32>,
    %c3_i32 = arith.constant 3 : i32
    %18 = arith.cmpi eq, %arg0, %c3_i32 : i32
    %19 = arith.extui %18 : i1 to i32
    %c0_i32_14 = arith.constant 0 : i32
    %20 = arith.cmpi ne, %19, %c0_i32_14 : i32
    scf.if %20 {
      %c0_15 = arith.constant 0 : index
      %c0_16 = arith.constant 0 : index
      %21 = vector.load %arg10[%c0_15, %c0_16] : memref<8x896xf32, #tpu.memory_space<vmem>>, vector<8x896xf32>
      %c0_17 = arith.constant 0 : index
      %c0_18 = arith.constant 0 : index
      %22 = vector.load %arg7[%c0_17, %c0_18] : memref<1x896xf32, #tpu.memory_space<vmem>>, vector<1x896xf32>
      %23 = vector.broadcast %22 : vector<1x896xf32> to vector<8x896xf32>
      %24 = arith.addf %21, %23 : vector<8x896xf32>
      %25 = math.tanh %24 : vector<8x896xf32>
      %c0_19 = arith.constant 0 : index
      %c0_20 = arith.constant 0 : index
      %26 = vector.load %arg8[%c0_19, %c0_20] : memref<8x896xf32, #tpu.memory_space<vmem>>, vector<8x896xf32>
      tpu.vector_store %arg8[%c0_19, %c0_20], %25 {strides = array<i32>} : memref<8x896xf32, #tpu.memory_space<vmem>>, vector<8x896xf32>,
    } else {
    }
    return
  }
  func.func @transform_0(%arg0: i32) -> (i32, i32) {
    %c0_i32 = arith.constant 0 : i32
    %c0_i32_0 = arith.constant 0 : i32
    %c0_i32_1 = arith.constant 0 : i32
    return %c0_i32, %c0_i32_0 : i32, i32
  }
  func.func @transform_1(%arg0: i32) -> (i32, i32) {
    %c0_i32 = arith.constant 0 : i32
    %c0_i32_0 = arith.constant 0 : i32
    %c0_i32_1 = arith.constant 0 : i32
    return %c0_i32, %c0_i32_0 : i32, i32
  }
  func.func @transform_2(%arg0: i32) -> (i32, i32) {
    %c0_i32 = arith.constant 0 : i32
    %c0_i32_0 = arith.constant 0 : i32
    %c0_i32_1 = arith.constant 0 : i32
    return %c0_i32, %c0_i32_0 : i32, i32
  }
  func.func @transform_3(%arg0: i32) -> (i32, i32) {
    %c0_i32 = arith.constant 0 : i32
    %c0_i32_0 = arith.constant 0 : i32
    return %c0_i32, %arg0 : i32, i32
  }
  func.func @transform_4(%arg0: i32) -> (i32, i32) {
    %c0_i32 = arith.constant 0 : i32
    %c0_i32_0 = arith.constant 0 : i32
    return %c0_i32, %arg0 : i32, i32
  }
  func.func @transform_5(%arg0: i32) -> (i32, i32) {
    %c0_i32 = arith.constant 0 : i32
    %c0_i32_0 = arith.constant 0 : i32
    return %arg0, %c0_i32 : i32, i32
  }
  func.func @transform_6(%arg0: i32) -> (i32, i32) {
    %c0_i32 = arith.constant 0 : i32
    %c0_i32_0 = arith.constant 0 : i32
    %c0_i32_1 = arith.constant 0 : i32
    return %c0_i32, %c0_i32_0 : i32, i32
  }
  func.func @transform_7(%arg0: i32) -> (i32, i32) {
    %c0_i32 = arith.constant 0 : i32
    %c0_i32_0 = arith.constant 0 : i32
    %c0_i32_1 = arith.constant 0 : i32
    return %c0_i32, %c0_i32_0 : i32, i32
  }
}

</mosaic_0001>

<llo_original>
// kernel: generator_forward.1
$region0: #{generator_forward.1}
  #allocation0 [shape = 'u32[]', space=smem, size = 0x4, offset = 0x4, fixed_abs, tag = 'smem constant byte address 0x4 - core index']
  #allocation1 [shape = 'u32[144,128]{1,0:T(1,128)}', space=vmem, size = 0x12000, scoped, tag = 'internal scratch']
  #allocation2 [shape = 'f32[8,1024]{1,0:T(8,128)}', space=vmem, size = 0x8000, scoped, tag = 'scratch operand']
  #allocation3 [shape = 'f32[8,896]{1,0:T(8,128)}', space=vmem, size = 0x7000, scoped, tag = 'scratch operand']
  %s0 = inlined_call_operand.vmem [shape: f32[8,128], index: 0, kind: input, shape index: {}]
  %s1 = inlined_call_operand.vmem [shape: bf16[128,1024], index: 1, kind: input, shape index: {}]
  %s2 = inlined_call_operand.vmem [shape: f32[1,1024], index: 2, kind: input, shape index: {}]
  %s3 = inlined_call_operand.vmem [shape: bf16[1024,1024], index: 3, kind: input, shape index: {}]
  %s4 = inlined_call_operand.vmem [shape: f32[1,1024], index: 4, kind: input, shape index: {}]
  %s5 = inlined_call_operand.vmem [shape: bf16[1024,896], index: 5, kind: input, shape index: {}]
  %s6 = inlined_call_operand.vmem [shape: f32[1,896], index: 6, kind: input, shape index: {}]
  %s7 = inlined_call_operand.hbm [shape: f32[8,896], index: 7, kind: output, shape index: {}]
  %s8 = sld [smem:[#allocation0]]
  $region107: #{generator_forward.1} parent=0
    _
  %s10 = ssub.s32 1, %s8
  %s11 = scalar_select 0, %s10, %s8
  $region1: #{generator_forward.1} parent=0
    #allocation4 [shape = 'u8[1048576]{0}', space=vmem, size = 0x100000, scoped, tag = 'input window, operand 3']
    #allocation5 [shape = 'u8[28672]{0}', space=vmem, size = 0x7000, scoped, tag = 'output window, operand 0, single buffered']
    #allocation6 [shape = 's32[2]{0}', space=sflag, size = 0x8, scoped, tag = 'scoped memory for generator_forward.1']
    %12 = vsyncpa [#allocation6], 0
    loop: start=0, step=1, limit=6
    $region2: #{generator_forward.1} parent=1 // loop_pre_header
      _
    $region3: #{generator_forward.1} parent=1 // loop_header
      %s14 = sphi 0, %s18
      %p15 = scmp.ge.s32.totalorder %s14, 6
      %s22 = sphi 0, %s22
      %s24 = sphi 0, %s22
      %s25 = sphi 0, %s24
      %s39 = sphi 0, %s25
      %s43 = sphi 0, %s43
      %s45 = sphi 0, %s43
      %s46 = sphi 0, %s45
      %s60 = sphi 0, %s46
      %s64 = sphi 0, %s64
      %s66 = sphi 0, %s64
      %s67 = sphi 0, %s66
      %s81 = sphi 0, %s67
      %s87 = sphi 0, %s89
      %s90 = sphi 0, %s87
      %s91 = sphi 0, %s90
      %s107 = sphi 0, %s91
      %s113 = sphi 0, %s115
      %s116 = sphi 0, %s113
      %s117 = sphi 0, %s116
      %s133 = sphi 0, %s117
      %s139 = sphi 0, %s141
      %s142 = sphi 0, %s139
      %s143 = sphi 0, %s142
      %s159 = sphi 0, %s143
      %s163 = sphi 0, %s163
      %s165 = sphi 0, %s163
      %s166 = sphi 0, %s165
      %s180 = sphi 0, %s166
      %s184 = sphi 0, %s184
      %s186 = sphi 0, %s184
      %s187 = sphi 0, %s186
      %s201 = sphi 0, %s187
    $region4: #{generator_forward.1} parent=1 // loop_header_branch
      %17 = sbr.rel (%p15) target = $region8
    $region5: #{generator_forward.1} parent=1 // loop_body
      %s19 = ssub.s32 %s14, 1
      %s20 = ssub.s32 %s14, 2
      %s21 = sadd.s32 %s14, 1
      %s23 = sadd.s32 %s22, 1
      %p26 = scmp.eq.s32.totalorder %s14, 3
      %p27 = scmp.ne.s32.totalorder %s22, %s24
      %p28 = scmp.eq.s32.totalorder %s14, 0
      %p29 = por %p27, %p28
      %p30 = scmp.ne.s32.totalorder %s22, %s24
      %p31 = scmp.eq.s32.totalorder %s19, 3
      %p32 = por %p30, %p31
      %p33 = scmp.ne.s32.totalorder %s24, %s25
      %p34 = scmp.eq.s32.totalorder %s19, 0
      %p35 = por %p33, %p34
      %p36 = scmp.ne.s32.totalorder %s24, %s25
      %p37 = scmp.eq.s32.totalorder %s20, 3
      %p38 = por %p36, %p37
      %p40 = scmp.ne.s32.totalorder %s25, %s39
      %p41 = scmp.eq.s32.totalorder %s20, 0
      %p42 = por %p40, %p41
      %s44 = sadd.s32 %s43, 1
      %p47 = scmp.eq.s32.totalorder %s14, 3
      %p48 = scmp.ne.s32.totalorder %s43, %s45
      %p49 = scmp.eq.s32.totalorder %s14, 0
      %p50 = por %p48, %p49
      %p51 = scmp.ne.s32.totalorder %s43, %s45
      %p52 = scmp.eq.s32.totalorder %s19, 3
      %p53 = por %p51, %p52
      %p54 = scmp.ne.s32.totalorder %s45, %s46
      %p55 = scmp.eq.s32.totalorder %s19, 0
      %p56 = por %p54, %p55
      %p57 = scmp.ne.s32.totalorder %s45, %s46
      %p58 = scmp.eq.s32.totalorder %s20, 3
      %p59 = por %p57, %p58
      %p61 = scmp.ne.s32.totalorder %s46, %s60
      %p62 = scmp.eq.s32.totalorder %s20, 0
      %p63 = por %p61, %p62
      %s65 = sadd.s32 %s64, 1
      %p68 = scmp.eq.s32.totalorder %s14, 3
      %p69 = scmp.ne.s32.totalorder %s64, %s66
      %p70 = scmp.eq.s32.totalorder %s14, 0
      %p71 = por %p69, %p70
      %p72 = scmp.ne.s32.totalorder %s64, %s66
      %p73 = scmp.eq.s32.totalorder %s19, 3
      %p74 = por %p72, %p73
      %p75 = scmp.ne.s32.totalorder %s66, %s67
      %p76 = scmp.eq.s32.totalorder %s19, 0
      %p77 = por %p75, %p76
      %p78 = scmp.ne.s32.totalorder %s66, %s67
      %p79 = scmp.eq.s32.totalorder %s20, 3
      %p80 = por %p78, %p79
      %p82 = scmp.ne.s32.totalorder %s67, %s81
      %p83 = scmp.eq.s32.totalorder %s20, 0
      %p84 = por %p82, %p83
      %s85 = ssub.s32 %s14, %s21
      %p86 = scmp.eq.s32.totalorder %s85, 0
      %s88 = sadd.s32 %s87, 1
      %s89 = scalar_select %p86, %s87, %s88
      %p92 = pneg %p86
      %p93 = scmp.eq.s32.totalorder %s14, 3
      %p94 = por %p92, %p93
      %p95 = scmp.ne.s32.totalorder %s87, %s90
      %p96 = scmp.eq.s32.totalorder %s14, 0
      %p97 = por %p95, %p96
      %p98 = scmp.ne.s32.totalorder %s87, %s90
      %p99 = scmp.eq.s32.totalorder %s19, 3
      %p100 = por %p98, %p99
      %p101 = scmp.ne.s32.totalorder %s90, %s91
      %p102 = scmp.eq.s32.totalorder %s19, 0
      %p103 = por %p101, %p102
      %p104 = scmp.ne.s32.totalorder %s90, %s91
      %p105 = scmp.eq.s32.totalorder %s20, 3
      %p106 = por %p104, %p105
      %p108 = scmp.ne.s32.totalorder %s91, %s107
      %p109 = scmp.eq.s32.totalorder %s20, 0
      %p110 = por %p108, %p109
      %s111 = ssub.s32 %s14, %s21
      %p112 = scmp.eq.s32.totalorder %s111, 0
      %s114 = sadd.s32 %s113, 1
      %s115 = scalar_select %p112, %s113, %s114
      %p118 = pneg %p112
      %p119 = scmp.eq.s32.totalorder %s14, 3
      %p120 = por %p118, %p119
      %p121 = scmp.ne.s32.totalorder %s113, %s116
      %p122 = scmp.eq.s32.totalorder %s14, 0
      %p123 = por %p121, %p122
      %p124 = scmp.ne.s32.totalorder %s113, %s116
      %p125 = scmp.eq.s32.totalorder %s19, 3
      %p126 = por %p124, %p125
      %p127 = scmp.ne.s32.totalorder %s116, %s117
      %p128 = scmp.eq.s32.totalorder %s19, 0
      %p129 = por %p127, %p128
      %p130 = scmp.ne.s32.totalorder %s116, %s117
      %p131 = scmp.eq.s32.totalorder %s20, 3
      %p132 = por %p130, %p131
      %p134 = scmp.ne.s32.totalorder %s117, %s133
      %p135 = scmp.eq.s32.totalorder %s20, 0
      %p136 = por %p134, %p135
      %s137 = ssub.s32 %s14, %s21
      %p138 = scmp.eq.s32.totalorder %s137, 0
      %s140 = sadd.s32 %s139, 1
      %s141 = scalar_select %p138, %s139, %s140
      %p144 = pneg %p138
      %p145 = scmp.eq.s32.totalorder %s14, 3
      %p146 = por %p144, %p145
      %p147 = scmp.ne.s32.totalorder %s139, %s142
      %p148 = scmp.eq.s32.totalorder %s14, 0
      %p149 = por %p147, %p148
      %p150 = scmp.ne.s32.totalorder %s139, %s142
      %p151 = scmp.eq.s32.totalorder %s19, 3
      %p152 = por %p150, %p151
      %p153 = scmp.ne.s32.totalorder %s142, %s143
      %p154 = scmp.eq.s32.totalorder %s19, 0
      %p155 = por %p153, %p154
      %p156 = scmp.ne.s32.totalorder %s142, %s143
      %p157 = scmp.eq.s32.totalorder %s20, 3
      %p158 = por %p156, %p157
      %p160 = scmp.ne.s32.totalorder %s143, %s159
      %p161 = scmp.eq.s32.totalorder %s20, 0
      %p162 = por %p160, %p161
      %s164 = sadd.s32 %s163, 1
      %p167 = scmp.eq.s32.totalorder %s14, 3
      %p168 = scmp.ne.s32.totalorder %s163, %s165
      %p169 = scmp.eq.s32.totalorder %s14, 0
      %p170 = por %p168, %p169
      %p171 = scmp.ne.s32.totalorder %s163, %s165
      %p172 = scmp.eq.s32.totalorder %s19, 3
      %p173 = por %p171, %p172
      %p174 = scmp.ne.s32.totalorder %s165, %s166
      %p175 = scmp.eq.s32.totalorder %s19, 0
      %p176 = por %p174, %p175
      %p177 = scmp.ne.s32.totalorder %s165, %s166
      %p178 = scmp.eq.s32.totalorder %s20, 3
      %p179 = por %p177, %p178
      %p181 = scmp.ne.s32.totalorder %s166, %s180
      %p182 = scmp.eq.s32.totalorder %s20, 0
      %p183 = por %p181, %p182
      %s185 = sadd.s32 %s184, 1
      %p188 = scmp.eq.s32.totalorder %s14, 3
      %p189 = scmp.ne.s32.totalorder %s184, %s186
      %p190 = scmp.eq.s32.totalorder %s14, 0
      %p191 = por %p189, %p190
      %p192 = scmp.ne.s32.totalorder %s184, %s186
      %p193 = scmp.eq.s32.totalorder %s19, 3
      %p194 = por %p192, %p193
      %p195 = scmp.ne.s32.totalorder %s186, %s187
      %p196 = scmp.eq.s32.totalorder %s19, 0
      %p197 = por %p195, %p196
      %p198 = scmp.ne.s32.totalorder %s186, %s187
      %p199 = scmp.eq.s32.totalorder %s20, 3
      %p200 = por %p198, %p199
      %p202 = scmp.ne.s32.totalorder %s187, %s201
      %p203 = scmp.eq.s32.totalorder %s20, 0
      %p204 = por %p202, %p203
      %p205 = scmp.le.s32.totalorder 1, %s14
      %p206 = scmp.lt.s32.totalorder %s14, 5
      %p207 = pnand %p205, %p206
      %p208 = pneg %p207
      // Predicated region
      $region9: #{generator_forward.1} parent=5 // pred_check
        _
      $region10: #{generator_forward.1} parent=5 // pred_check_branch
        %210 = sbr.rel (%p207) target = $region12
      $region11: #{generator_forward.1} parent=5 // pred_region
        %s211 = ssub.s32 %s14, 1
        // Predicated region
        $region13: #{generator_forward.1} parent=11 // pred_check
          %p212 = pneg %p35
        $region14: #{generator_forward.1} parent=11 // pred_check_branch
          %214 = sbr.rel (%p212) target = $region16
        $region15: #{generator_forward.1} parent=11 // pred_region
          _
        $region16: #{generator_forward.1} parent=11 // pred_fallthru
          _
        // Predicated region
        $region17: #{generator_forward.1} parent=11 // pred_check
          %p215 = pneg %p56
        $region18: #{generator_forward.1} parent=11 // pred_check_branch
          %217 = sbr.rel (%p215) target = $region20
        $region19: #{generator_forward.1} parent=11 // pred_region
          _
        $region20: #{generator_forward.1} parent=11 // pred_fallthru
          _
        // Predicated region
        $region21: #{generator_forward.1} parent=11 // pred_check
          %p218 = pneg %p77
        $region22: #{generator_forward.1} parent=11 // pred_check_branch
          %220 = sbr.rel (%p218) target = $region24
        $region23: #{generator_forward.1} parent=11 // pred_region
          _
        $region24: #{generator_forward.1} parent=11 // pred_fallthru
          _
        // Predicated region
        $region25: #{generator_forward.1} parent=11 // pred_check
          %p221 = pneg %p176
        $region26: #{generator_forward.1} parent=11 // pred_check_branch
          %223 = sbr.rel (%p221) target = $region28
        $region27: #{generator_forward.1} parent=11 // pred_region
          _
        $region28: #{generator_forward.1} parent=11 // pred_fallthru
          _
      $region12: #{generator_forward.1} parent=5 // pred_fallthru
        _
      %p224 = scmp.lt.s32.totalorder %s14, 4
      // Predicated region
      $region29: #{generator_forward.1} parent=5 // pred_check
        %p225 = pneg %p224
      $region30: #{generator_forward.1} parent=5 // pred_check_branch
        %227 = sbr.rel (%p225) target = $region32
      $region31: #{generator_forward.1} parent=5 // pred_region
        // Predicated region
        $region33: #{generator_forward.1} parent=31 // pred_check
          %p228 = pneg %p97
        $region34: #{generator_forward.1} parent=31 // pred_check_branch
          %230 = sbr.rel (%p228) target = $region36
        $region35: #{generator_forward.1} parent=31 // pred_region
          %s231 = sand.u32 %s87, 1
          %s232 = sand.u32 %s87, 1
          %s233 = smul.addr %s232, 1024
          %s234 = scalar_lea.vmem [#allocation4], %s233
          %s235 = smul.u32 2, %s14
          %s236 = smul.addr %s235, 4
          %s237 = scalar_lea.vmem %s3, %s236
          // Predicated region
          $region37: #{generator_forward.1} parent=35 // pred_check
            _
          $region38: #{generator_forward.1} parent=35 // pred_check_branch
            %239 = sbr.rel (0) target = $region40
          $region39: #{generator_forward.1} parent=35 // pred_region
            // Predicated region
            $region41: #{generator_forward.1} parent=39 // pred_check
              _
            $region42: #{generator_forward.1} parent=39 // pred_check_branch
              %241 = sbr.rel (0) target = $region44
            $region43: #{generator_forward.1} parent=39 // pred_region
              // Predicated region
              $region56: #{generator_forward.1} parent=43 // pred_check
                _
              $region57: #{generator_forward.1} parent=43 // pred_check_branch
                %510 = sbr.rel (0) target = $region59
              $region58: #{generator_forward.1} parent=43 // pred_region
                loop: start=0, step=1, limit=1
                $region60: #{generator_forward.1} parent=58 // loop_pre_header
                  _
                $region61: #{generator_forward.1} parent=58 // loop_header
                  %s512 = sphi 0, %s516
                  %p513 = scmp.ge.s32.totalorder %s512, 1
                  %s517 = sphi %s237, %s237
                  %s518 = sphi %s234, %s234
                $region62: #{generator_forward.1} parent=58 // loop_header_branch
                  %515 = sbr.rel (%p513) target = $region66
                $region63: #{generator_forward.1} parent=58 // loop_body
                  %v519 = vld [vmem:[%s517] sm:$0xff]
                  %520 = vst [vmem:[%s518] sm:$0xff] %v519
                  %v521 = vld [vmem:[%s517 + $0x20] sm:$0xff]
                  %522 = vst [vmem:[%s518 + $0x8] sm:$0xff] %v521
                  %v523 = vld [vmem:[%s517 + $0x40] sm:$0xff]
                  %524 = vst [vmem:[%s518 + $0x10] sm:$0xff] %v523
                  %v525 = vld [vmem:[%s517 + $0x60] sm:$0xff]
                  %526 = vst [vmem:[%s518 + $0x18] sm:$0xff] %v525
                  %v527 = vld [vmem:[%s517 + $0x80] sm:$0xff]
                  %528 = vst [vmem:[%s518 + $0x20] sm:$0xff] %v527
                  %v529 = vld [vmem:[%s517 + $0xa0] sm:$0xff]
                  %530 = vst [vmem:[%s518 + $0x28] sm:$0xff] %v529
                  %v531 = vld [vmem:[%s517 + $0xc0] sm:$0xff]
                  %532 = vst [vmem:[%s518 + $0x30] sm:$0xff] %v531
                  %v533 = vld [vmem:[%s517 + $0xe0] sm:$0xff]
                  %534 = vst [vmem:[%s518 + $0x38] sm:$0xff] %v533
                  %v535 = vld [vmem:[%s517 + $0x100] sm:$0xff]
                  %536 = vst [vmem:[%s518 + $0x40] sm:$0xff] %v535
                  %v537 = vld [vmem:[%s517 + $0x120] sm:$0xff]
                  %538 = vst [vmem:[%s518 + $0x48] sm:$0xff] %v537
                  %v539 = vld [vmem:[%s517 + $0x140] sm:$0xff]
                  %540 = vst [vmem:[%s518 + $0x50] sm:$0xff] %v539
                  %v541 = vld [vmem:[%s517 + $0x160] sm:$0xff]
                  %542 = vst [vmem:[%s518 + $0x58] sm:$0xff] %v541
                  %v543 = vld [vmem:[%s517 + $0x180] sm:$0xff]
                  %544 = vst [vmem:[%s518 + $0x60] sm:$0xff] %v543
                  %v545 = vld [vmem:[%s517 + $0x1a0] sm:$0xff]
                  %546 = vst [vmem:[%s518 + $0x68] sm:$0xff] %v545
                  %v547 = vld [vmem:[%s517 + $0x1c0] sm:$0xff]
                  %548 = vst [vmem:[%s518 + $0x70] sm:$0xff] %v547
                  %v549 = vld [vmem:[%s517 + $0x1e0] sm:$0xff]
                  %550 = vst [vmem:[%s518 + $0x78] sm:$0xff] %v549
                  %v551 = vld [vmem:[%s517 + $0x200] sm:$0xff]
                  %552 = vst [vmem:[%s518 + $0x80] sm:$0xff] %v551
                  %v553 = vld [vmem:[%s517 + $0x220] sm:$0xff]
                  %554 = vst [vmem:[%s518 + $0x88] sm:$0xff] %v553
                  %v555 = vld [vmem:[%s517 + $0x240] sm:$0xff]
                  %556 = vst [vmem:[%s518 + $0x90] sm:$0xff] %v555
                  %v557 = vld [vmem:[%s517 + $0x260] sm:$0xff]
                  %558 = vst [vmem:[%s518 + $0x98] sm:$0xff] %v557
                  %v559 = vld [vmem:[%s517 + $0x280] sm:$0xff]
                  %560 = vst [vmem:[%s518 + $0xa0] sm:$0xff] %v559
                  %v561 = vld [vmem:[%s517 + $0x2a0] sm:$0xff]
                  %562 = vst [vmem:[%s518 + $0xa8] sm:$0xff] %v561
                  %v563 = vld [vmem:[%s517 + $0x2c0] sm:$0xff]
                  %564 = vst [vmem:[%s518 + $0xb0] sm:$0xff] %v563
                  %v565 = vld [vmem:[%s517 + $0x2e0] sm:$0xff]
                  %566 = vst [vmem:[%s518 + $0xb8] sm:$0xff] %v565
                  %v567 = vld [vmem:[%s517 + $0x300] sm:$0xff]
                  %568 = vst [vmem:[%s518 + $0xc0] sm:$0xff] %v567
                  %v569 = vld [vmem:[%s517 + $0x320] sm:$0xff]
                  %570 = vst [vmem:[%s518 + $0xc8] sm:$0xff] %v569
                  %v571 = vld [vmem:[%s517 + $0x340] sm:$0xff]
                  %572 = vst [vmem:[%s518 + $0xd0] sm:$0xff] %v571
                  %v573 = vld [vmem:[%s517 + $0x360] sm:$0xff]
                  %574 = vst [vmem:[%s518 + $0xd8] sm:$0xff] %v573
                  %v575 = vld [vmem:[%s517 + $0x380] sm:$0xff]
                  %576 = vst [vmem:[%s518 + $0xe0] sm:$0xff] %v575
                  %v577 = vld [vmem:[%s517 + $0x3a0] sm:$0xff]
                  %578 = vst [vmem:[%s518 + $0xe8] sm:$0xff] %v577
                  %v579 = vld [vmem:[%s517 + $0x3c0] sm:$0xff]
                  %580 = vst [vmem:[%s518 + $0xf0] sm:$0xff] %v579
                  %v581 = vld [vmem:[%s517 + $0x3e0] sm:$0xff]
                  %582 = vst [vmem:[%s518 + $0xf8] sm:$0xff] %v581
                  %v583 = vld [vmem:[%s517 + $0x400] sm:$0xff]
                  %584 = vst [vmem:[%s518 + $0x100] sm:$0xff] %v583
                  %v585 = vld [vmem:[%s517 + $0x420] sm:$0xff]
                  %586 = vst [vmem:[%s518 + $0x108] sm:$0xff] %v585
                  %v587 = vld [vmem:[%s517 + $0x440] sm:$0xff]
                  %588 = vst [vmem:[%s518 + $0x110] sm:$0xff] %v587
                  %v589 = vld [vmem:[%s517 + $0x460] sm:$0xff]
                  %590 = vst [vmem:[%s518 + $0x118] sm:$0xff] %v589
                  %v591 = vld [vmem:[%s517 + $0x480] sm:$0xff]
                  %592 = vst [vmem:[%s518 + $0x120] sm:$0xff] %v591
                  %v593 = vld [vmem:[%s517 + $0x4a0] sm:$0xff]
                  %594 = vst [vmem:[%s518 + $0x128] sm:$0xff] %v593
                  %v595 = vld [vmem:[%s517 + $0x4c0] sm:$0xff]
                  %596 = vst [vmem:[%s518 + $0x130] sm:$0xff] %v595
                  %v597 = vld [vmem:[%s517 + $0x4e0] sm:$0xff]
                  %598 = vst [vmem:[%s518 + $0x138] sm:$0xff] %v597
                  %v599 = vld [vmem:[%s517 + $0x500] sm:$0xff]
                  %600 = vst [vmem:[%s518 + $0x140] sm:$0xff] %v599
                  %v601 = vld [vmem:[%s517 + $0x520] sm:$0xff]
                  %602 = vst [vmem:[%s518 + $0x148] sm:$0xff] %v601
                  %v603 = vld [vmem:[%s517 + $0x540] sm:$0xff]
                  %604 = vst [vmem:[%s518 + $0x150] sm:$0xff] %v603
                  %v605 = vld [vmem:[%s517 + $0x560] sm:$0xff]
                  %606 = vst [vmem:[%s518 + $0x158] sm:$0xff] %v605
                  %v607 = vld [vmem:[%s517 + $0x580] sm:$0xff]
                  %608 = vst [vmem:[%s518 + $0x160] sm:$0xff] %v607
                  %v609 = vld [vmem:[%s517 + $0x5a0] sm:$0xff]
                  %610 = vst [vmem:[%s518 + $0x168] sm:$0xff] %v609
                  %v611 = vld [vmem:[%s517 + $0x5c0] sm:$0xff]
                  %612 = vst [vmem:[%s518 + $0x170] sm:$0xff] %v611
                  %v613 = vld [vmem:[%s517 + $0x5e0] sm:$0xff]
                  %614 = vst [vmem:[%s518 + $0x178] sm:$0xff] %v613
                  %v615 = vld [vmem:[%s517 + $0x600] sm:$0xff]
                  %616 = vst [vmem:[%s518 + $0x180] sm:$0xff] %v615
                  %v617 = vld [vmem:[%s517 + $0x620] sm:$0xff]
                  %618 = vst [vmem:[%s518 + $0x188] sm:$0xff] %v617
                  %v619 = vld [vmem:[%s517 + $0x640] sm:$0xff]
                  %620 = vst [vmem:[%s518 + $0x190] sm:$0xff] %v619
                  %v621 = vld [vmem:[%s517 + $0x660] sm:$0xff]
                  %622 = vst [vmem:[%s518 + $0x198] sm:$0xff] %v621
                  %v623 = vld [vmem:[%s517 + $0x680] sm:$0xff]
                  %624 = vst [vmem:[%s518 + $0x1a0] sm:$0xff] %v623
                  %v625 = vld [vmem:[%s517 + $0x6a0] sm:$0xff]
                  %626 = vst [vmem:[%s518 + $0x1a8] sm:$0xff] %v625
                  %v627 = vld [vmem:[%s517 + $0x6c0] sm:$0xff]
                  %628 = vst [vmem:[%s518 + $0x1b0] sm:$0xff] %v627
                  %v629 = vld [vmem:[%s517 + $0x6e0] sm:$0xff]
                  %630 = vst [vmem:[%s518 + $0x1b8] sm:$0xff] %v629
                  %v631 = vld [vmem:[%s517 + $0x700] sm:$0xff]
                  %632 = vst [vmem:[%s518 + $0x1c0] sm:$0xff] %v631
                  %v633 = vld [vmem:[%s517 + $0x720] sm:$0xff]
                  %634 = vst [vmem:[%s518 + $0x1c8] sm:$0xff] %v633
                  %v635 = vld [vmem:[%s517 + $0x740] sm:$0xff]
                  %636 = vst [vmem:[%s518 + $0x1d0] sm:$0xff] %v635
                  %v637 = vld [vmem:[%s517 + $0x760] sm:$0xff]
                  %638 = vst [vmem:[%s518 + $0x1d8] sm:$0xff] %v637
                  %v639 = vld [vmem:[%s517 + $0x780] sm:$0xff]
                  %640 = vst [vmem:[%s518 + $0x1e0] sm:$0xff] %v639
                  %v641 = vld [vmem:[%s517 + $0x7a0] sm:$0xff]
                  %642 = vst [vmem:[%s518 + $0x1e8] sm:$0xff] %v641
                  %v643 = vld [vmem:[%s517 + $0x7c0] sm:$0xff]
                  %644 = vst [vmem:[%s518 + $0x1f0] sm:$0xff] %v643
                  %v645 = vld [vmem:[%s517 + $0x7e0] sm:$0xff]
                  %646 = vst [vmem:[%s518 + $0x1f8] sm:$0xff] %v645
                  %v647 = vld [vmem:[%s517 + $0x800] sm:$0xff]
                  %648 = vst [vmem:[%s518 + $0x200] sm:$0xff] %v647
                  %v649 = vld [vmem:[%s517 + $0x820] sm:$0xff]
                  %650 = vst [vmem:[%s518 + $0x208] sm:$0xff] %v649
                  %v651 = vld [vmem:[%s517 + $0x840] sm:$0xff]
                  %652 = vst [vmem:[%s518 + $0x210] sm:$0xff] %v651
                  %v653 = vld [vmem:[%s517 + $0x860] sm:$0xff]
                  %654 = vst [vmem:[%s518 + $0x218] sm:$0xff] %v653
                  %v655 = vld [vmem:[%s517 + $0x880] sm:$0xff]
                  %656 = vst [vmem:[%s518 + $0x220] sm:$0xff] %v655
                  %v657 = vld [vmem:[%s517 + $0x8a0] sm:$0xff]
                  %658 = vst [vmem:[%s518 + $0x228] sm:$0xff] %v657
                  %v659 = vld [vmem:[%s517 + $0x8c0] sm:$0xff]
                  %660 = vst [vmem:[%s518 + $0x230] sm:$0xff] %v659
                  %v661 = vld [vmem:[%s517 + $0x8e0] sm:$0xff]
                  %662 = vst [vmem:[%s518 + $0x238] sm:$0xff] %v661
                  %v663 = vld [vmem:[%s517 + $0x900] sm:$0xff]
                  %664 = vst [vmem:[%s518 + $0x240] sm:$0xff] %v663
                  %v665 = vld [vmem:[%s517 + $0x920] sm:$0xff]
                  %666 = vst [vmem:[%s518 + $0x248] sm:$0xff] %v665
                  %v667 = vld [vmem:[%s517 + $0x940] sm:$0xff]
                  %668 = vst [vmem:[%s518 + $0x250] sm:$0xff] %v667
                  %v669 = vld [vmem:[%s517 + $0x960] sm:$0xff]
                  %670 = vst [vmem:[%s518 + $0x258] sm:$0xff] %v669
                  %v671 = vld [vmem:[%s517 + $0x980] sm:$0xff]
                  %672 = vst [vmem:[%s518 + $0x260] sm:$0xff] %v671
                  %v673 = vld [vmem:[%s517 + $0x9a0] sm:$0xff]
                  %674 = vst [vmem:[%s518 + $0x268] sm:$0xff] %v673
                  %v675 = vld [vmem:[%s517 + $0x9c0] sm:$0xff]
                  %676 = vst [vmem:[%s518 + $0x270] sm:$0xff] %v675
                  %v677 = vld [vmem:[%s517 + $0x9e0] sm:$0xff]
                  %678 = vst [vmem:[%s518 + $0x278] sm:$0xff] %v677
                  %v679 = vld [vmem:[%s517 + $0xa00] sm:$0xff]
                  %680 = vst [vmem:[%s518 + $0x280] sm:$0xff] %v679
                  %v681 = vld [vmem:[%s517 + $0xa20] sm:$0xff]
                  %682 = vst [vmem:[%s518 + $0x288] sm:$0xff] %v681
                  %v683 = vld [vmem:[%s517 + $0xa40] sm:$0xff]
                  %684 = vst [vmem:[%s518 + $0x290] sm:$0xff] %v683
                  %v685 = vld [vmem:[%s517 + $0xa60] sm:$0xff]
                  %686 = vst [vmem:[%s518 + $0x298] sm:$0xff] %v685
                  %v687 = vld [vmem:[%s517 + $0xa80] sm:$0xff]
                  %688 = vst [vmem:[%s518 + $0x2a0] sm:$0xff] %v687
                  %v689 = vld [vmem:[%s517 + $0xaa0] sm:$0xff]
                  %690 = vst [vmem:[%s518 + $0x2a8] sm:$0xff] %v689
                  %v691 = vld [vmem:[%s517 + $0xac0] sm:$0xff]
                  %692 = vst [vmem:[%s518 + $0x2b0] sm:$0xff] %v691
                  %v693 = vld [vmem:[%s517 + $0xae0] sm:$0xff]
                  %694 = vst [vmem:[%s518 + $0x2b8] sm:$0xff] %v693
                  %v695 = vld [vmem:[%s517 + $0xb00] sm:$0xff]
                  %696 = vst [vmem:[%s518 + $0x2c0] sm:$0xff] %v695
                  %v697 = vld [vmem:[%s517 + $0xb20] sm:$0xff]
                  %698 = vst [vmem:[%s518 + $0x2c8] sm:$0xff] %v697
                  %v699 = vld [vmem:[%s517 + $0xb40] sm:$0xff]
                  %700 = vst [vmem:[%s518 + $0x2d0] sm:$0xff] %v699
                  %v701 = vld [vmem:[%s517 + $0xb60] sm:$0xff]
                  %702 = vst [vmem:[%s518 + $0x2d8] sm:$0xff] %v701
                  %v703 = vld [vmem:[%s517 + $0xb80] sm:$0xff]
                  %704 = vst [vmem:[%s518 + $0x2e0] sm:$0xff] %v703
                  %v705 = vld [vmem:[%s517 + $0xba0] sm:$0xff]
                  %706 = vst [vmem:[%s518 + $0x2e8] sm:$0xff] %v705
                  %v707 = vld [vmem:[%s517 + $0xbc0] sm:$0xff]
                  %708 = vst [vmem:[%s518 + $0x2f0] sm:$0xff] %v707
                  %v709 = vld [vmem:[%s517 + $0xbe0] sm:$0xff]
                  %710 = vst [vmem:[%s518 + $0x2f8] sm:$0xff] %v709
                  %v711 = vld [vmem:[%s517 + $0xc00] sm:$0xff]
                  %712 = vst [vmem:[%s518 + $0x300] sm:$0xff] %v711
                  %v713 = vld [vmem:[%s517 + $0xc20] sm:$0xff]
                  %714 = vst [vmem:[%s518 + $0x308] sm:$0xff] %v713
                  %v715 = vld [vmem:[%s517 + $0xc40] sm:$0xff]
                  %716 = vst [vmem:[%s518 + $0x310] sm:$0xff] %v715
                  %v717 = vld [vmem:[%s517 + $0xc60] sm:$0xff]
                  %718 = vst [vmem:[%s518 + $0x318] sm:$0xff] %v717
                  %v719 = vld [vmem:[%s517 + $0xc80] sm:$0xff]
                  %720 = vst [vmem:[%s518 + $0x320] sm:$0xff] %v719
                  %v721 = vld [vmem:[%s517 + $0xca0] sm:$0xff]
                  %722 = vst [vmem:[%s518 + $0x328] sm:$0xff] %v721
                  %v723 = vld [vmem:[%s517 + $0xcc0] sm:$0xff]
                  %724 = vst [vmem:[%s518 + $0x330] sm:$0xff] %v723
                  %v725 = vld [vmem:[%s517 + $0xce0] sm:$0xff]
                  %726 = vst [vmem:[%s518 + $0x338] sm:$0xff] %v725
                  %v727 = vld [vmem:[%s517 + $0xd00] sm:$0xff]
                  %728 = vst [vmem:[%s518 + $0x340] sm:$0xff] %v727
                  %v729 = vld [vmem:[%s517 + $0xd20] sm:$0xff]
                  %730 = vst [vmem:[%s518 + $0x348] sm:$0xff] %v729
                  %v731 = vld [vmem:[%s517 + $0xd40] sm:$0xff]
                  %732 = vst [vmem:[%s518 + $0x350] sm:$0xff] %v731
                  %v733 = vld [vmem:[%s517 + $0xd60] sm:$0xff]
                  %734 = vst [vmem:[%s518 + $0x358] sm:$0xff] %v733
                  %v735 = vld [vmem:[%s517 + $0xd80] sm:$0xff]
                  %736 = vst [vmem:[%s518 + $0x360] sm:$0xff] %v735
                  %v737 = vld [vmem:[%s517 + $0xda0] sm:$0xff]
                  %738 = vst [vmem:[%s518 + $0x368] sm:$0xff] %v737
                  %v739 = vld [vmem:[%s517 + $0xdc0] sm:$0xff]
                  %740 = vst [vmem:[%s518 + $0x370] sm:$0xff] %v739
                  %v741 = vld [vmem:[%s517 + $0xde0] sm:$0xff]
                  %742 = vst [vmem:[%s518 + $0x378] sm:$0xff] %v741
                  %v743 = vld [vmem:[%s517 + $0xe00] sm:$0xff]
                  %744 = vst [vmem:[%s518 + $0x380] sm:$0xff] %v743
                  %v745 = vld [vmem:[%s517 + $0xe20] sm:$0xff]
                  %746 = vst [vmem:[%s518 + $0x388] sm:$0xff] %v745
                  %v747 = vld [vmem:[%s517 + $0xe40] sm:$0xff]
                  %748 = vst [vmem:[%s518 + $0x390] sm:$0xff] %v747
                  %v749 = vld [vmem:[%s517 + $0xe60] sm:$0xff]
                  %750 = vst [vmem:[%s518 + $0x398] sm:$0xff] %v749
                  %v751 = vld [vmem:[%s517 + $0xe80] sm:$0xff]
                  %752 = vst [vmem:[%s518 + $0x3a0] sm:$0xff] %v751
                  %v753 = vld [vmem:[%s517 + $0xea0] sm:$0xff]
                  %754 = vst [vmem:[%s518 + $0x3a8] sm:$0xff] %v753
                  %v755 = vld [vmem:[%s517 + $0xec0] sm:$0xff]
                  %756 = vst [vmem:[%s518 + $0x3b0] sm:$0xff] %v755
                  %v757 = vld [vmem:[%s517 + $0xee0] sm:$0xff]
                  %758 = vst [vmem:[%s518 + $0x3b8] sm:$0xff] %v757
                  %v759 = vld [vmem:[%s517 + $0xf00] sm:$0xff]
                  %760 = vst [vmem:[%s518 + $0x3c0] sm:$0xff] %v759
                  %v761 = vld [vmem:[%s517 + $0xf20] sm:$0xff]
                  %762 = vst [vmem:[%s518 + $0x3c8] sm:$0xff] %v761
                  %v763 = vld [vmem:[%s517 + $0xf40] sm:$0xff]
                  %764 = vst [vmem:[%s518 + $0x3d0] sm:$0xff] %v763
                  %v765 = vld [vmem:[%s517 + $0xf60] sm:$0xff]
                  %766 = vst [vmem:[%s518 + $0x3d8] sm:$0xff] %v765
                  %v767 = vld [vmem:[%s517 + $0xf80] sm:$0xff]
                  %768 = vst [vmem:[%s518 + $0x3e0] sm:$0xff] %v767
                  %v769 = vld [vmem:[%s517 + $0xfa0] sm:$0xff]
                  %770 = vst [vmem:[%s518 + $0x3e8] sm:$0xff] %v769
                  %v771 = vld [vmem:[%s517 + $0xfc0] sm:$0xff]
                  %772 = vst [vmem:[%s518 + $0x3f0] sm:$0xff] %v771
                  %v773 = vld [vmem:[%s517 + $0xfe0] sm:$0xff]
                  %774 = vst [vmem:[%s518 + $0x3f8] sm:$0xff] %v773
                $region64: #{generator_forward.1} parent=58 // loop_footer
                  %s516 = sadd.s32 1, %s512
                $region65: #{generator_forward.1} parent=58 // loop_footer_branch
                  %511 = sbr.rel target = $region61
                $region66: #{generator_forward.1} parent=58 // loop_exit
                  _
              $region59: #{generator_forward.1} parent=43 // pred_fallthru
                _
              // Predicated region
              $region67: #{generator_forward.1} parent=43 // pred_check
                _
              $region68: #{generator_forward.1} parent=43 // pred_check_branch
                %776 = sbr.rel target = $region70
              $region69: #{generator_forward.1} parent=43 // pred_region
                _
              $region70: #{generator_forward.1} parent=43 // pred_fallthru
                _
            $region44: #{generator_forward.1} parent=39 // pred_fallthru
              _
            // Predicated region
            $region45: #{generator_forward.1} parent=39 // pred_check
              _
            $region46: #{generator_forward.1} parent=39 // pred_check_branch
              %243 = sbr.rel target = $region48
            $region47: #{generator_forward.1} parent=39 // pred_region
              loop: start=0, step=1, limit=1
              $region49: #{generator_forward.1} parent=47 // loop_pre_header
                _
              $region50: #{generator_forward.1} parent=47 // loop_header
                %s246 = sphi 0, %s250
                %p247 = scmp.ge.s32.totalorder %s246, 1
                %s251 = sphi %s237, %s237
                %s252 = sphi %s234, %s234
              $region51: #{generator_forward.1} parent=47 // loop_header_branch
                %249 = sbr.rel (%p247) target = $region55
              $region52: #{generator_forward.1} parent=47 // loop_body
                %v253 = vld [vmem:[%s251] sm:$0xff]
                %254 = vst [vmem:[%s252] sm:$0xff] %v253
                %v255 = vld [vmem:[%s251 + $0x20] sm:$0xff]
                %256 = vst [vmem:[%s252 + $0x8] sm:$0xff] %v255
                %v257 = vld [vmem:[%s251 + $0x40] sm:$0xff]
                %258 = vst [vmem:[%s252 + $0x10] sm:$0xff] %v257
                %v259 = vld [vmem:[%s251 + $0x60] sm:$0xff]
                %260 = vst [vmem:[%s252 + $0x18] sm:$0xff] %v259
                %v261 = vld [vmem:[%s251 + $0x80] sm:$0xff]
                %262 = vst [vmem:[%s252 + $0x20] sm:$0xff] %v261
                %v263 = vld [vmem:[%s251 + $0xa0] sm:$0xff]
                %264 = vst [vmem:[%s252 + $0x28] sm:$0xff] %v263
                %v265 = vld [vmem:[%s251 + $0xc0] sm:$0xff]
                %266 = vst [vmem:[%s252 + $0x30] sm:$0xff] %v265
                %v267 = vld [vmem:[%s251 + $0xe0] sm:$0xff]
                %268 = vst [vmem:[%s252 + $0x38] sm:$0xff] %v267
                %v269 = vld [vmem:[%s251 + $0x100] sm:$0xff]
                %270 = vst [vmem:[%s252 + $0x40] sm:$0xff] %v269
                %v271 = vld [vmem:[%s251 + $0x120] sm:$0xff]
                %272 = vst [vmem:[%s252 + $0x48] sm:$0xff] %v271
                %v273 = vld [vmem:[%s251 + $0x140] sm:$0xff]
                %274 = vst [vmem:[%s252 + $0x50] sm:$0xff] %v273
                %v275 = vld [vmem:[%s251 + $0x160] sm:$0xff]
                %276 = vst [vmem:[%s252 + $0x58] sm:$0xff] %v275
                %v277 = vld [vmem:[%s251 + $0x180] sm:$0xff]
                %278 = vst [vmem:[%s252 + $0x60] sm:$0xff] %v277
                %v279 = vld [vmem:[%s251 + $0x1a0] sm:$0xff]
                %280 = vst [vmem:[%s252 + $0x68] sm:$0xff] %v279
                %v281 = vld [vmem:[%s251 + $0x1c0] sm:$0xff]
                %282 = vst [vmem:[%s252 + $0x70] sm:$0xff] %v281
                %v283 = vld [vmem:[%s251 + $0x1e0] sm:$0xff]
                %284 = vst [vmem:[%s252 + $0x78] sm:$0xff] %v283
                %v285 = vld [vmem:[%s251 + $0x200] sm:$0xff]
                %286 = vst [vmem:[%s252 + $0x80] sm:$0xff] %v285
                %v287 = vld [vmem:[%s251 + $0x220] sm:$0xff]
                %288 = vst [vmem:[%s252 + $0x88] sm:$0xff] %v287
                %v289 = vld [vmem:[%s251 + $0x240] sm:$0xff]
                %290 = vst [vmem:[%s252 + $0x90] sm:$0xff] %v289
                %v291 = vld [vmem:[%s251 + $0x260] sm:$0xff]
                %292 = vst [vmem:[%s252 + $0x98] sm:$0xff] %v291
                %v293 = vld [vmem:[%s251 + $0x280] sm:$0xff]
                %294 = vst [vmem:[%s252 + $0xa0] sm:$0xff] %v293
                %v295 = vld [vmem:[%s251 + $0x2a0] sm:$0xff]
                %296 = vst [vmem:[%s252 + $0xa8] sm:$0xff] %v295
                %v297 = vld [vmem:[%s251 + $0x2c0] sm:$0xff]
                %298 = vst [vmem:[%s252 + $0xb0] sm:$0xff] %v297
                %v299 = vld [vmem:[%s251 + $0x2e0] sm:$0xff]
                %300 = vst [vmem:[%s252 + $0xb8] sm:$0xff] %v299
                %v301 = vld [vmem:[%s251 + $0x300] sm:$0xff]
                %302 = vst [vmem:[%s252 + $0xc0] sm:$0xff] %v301
                %v303 = vld [vmem:[%s251 + $0x320] sm:$0xff]
                %304 = vst [vmem:[%s252 + $0xc8] sm:$0xff] %v303
                %v305 = vld [vmem:[%s251 + $0x340] sm:$0xff]
                %306 = vst [vmem:[%s252 + $0xd0] sm:$0xff] %v305
                %v307 = vld [vmem:[%s251 + $0x360] sm:$0xff]
                %308 = vst [vmem:[%s252 + $0xd8] sm:$0xff] %v307
                %v309 = vld [vmem:[%s251 + $0x380] sm:$0xff]
                %310 = vst [vmem:[%s252 + $0xe0] sm:$0xff] %v309
                %v311 = vld [vmem:[%s251 + $0x3a0] sm:$0xff]
                %312 = vst [vmem:[%s252 + $0xe8] sm:$0xff] %v311
                %v313 = vld [vmem:[%s251 + $0x3c0] sm:$0xff]
                %314 = vst [vmem:[%s252 + $0xf0] sm:$0xff] %v313
                %v315 = vld [vmem:[%s251 + $0x3e0] sm:$0xff]
                %316 = vst [vmem:[%s252 + $0xf8] sm:$0xff] %v315
                %v317 = vld [vmem:[%s251 + $0x400] sm:$0xff]
                %318 = vst [vmem:[%s252 + $0x100] sm:$0xff] %v317
                %v319 = vld [vmem:[%s251 + $0x420] sm:$0xff]
                %320 = vst [vmem:[%s252 + $0x108] sm:$0xff] %v319
                %v321 = vld [vmem:[%s251 + $0x440] sm:$0xff]
                %322 = vst [vmem:[%s252 + $0x110] sm:$0xff] %v321
                %v323 = vld [vmem:[%s251 + $0x460] sm:$0xff]
                %324 = vst [vmem:[%s252 + $0x118] sm:$0xff] %v323
                %v325 = vld [vmem:[%s251 + $0x480] sm:$0xff]
                %326 = vst [vmem:[%s252 + $0x120] sm:$0xff] %v325
                %v327 = vld [vmem:[%s251 + $0x4a0] sm:$0xff]
                %328 = vst [vmem:[%s252 + $0x128] sm:$0xff] %v327
                %v329 = vld [vmem:[%s251 + $0x4c0] sm:$0xff]
                %330 = vst [vmem:[%s252 + $0x130] sm:$0xff] %v329
                %v331 = vld [vmem:[%s251 + $0x4e0] sm:$0xff]
                %332 = vst [vmem:[%s252 + $0x138] sm:$0xff] %v331
                %v333 = vld [vmem:[%s251 + $0x500] sm:$0xff]
                %334 = vst [vmem:[%s252 + $0x140] sm:$0xff] %v333
                %v335 = vld [vmem:[%s251 + $0x520] sm:$0xff]
                %336 = vst [vmem:[%s252 + $0x148] sm:$0xff] %v335
                %v337 = vld [vmem:[%s251 + $0x540] sm:$0xff]
                %338 = vst [vmem:[%s252 + $0x150] sm:$0xff] %v337
                %v339 = vld [vmem:[%s251 + $0x560] sm:$0xff]
                %340 = vst [vmem:[%s252 + $0x158] sm:$0xff] %v339
                %v341 = vld [vmem:[%s251 + $0x580] sm:$0xff]
                %342 = vst [vmem:[%s252 + $0x160] sm:$0xff] %v341
                %v343 = vld [vmem:[%s251 + $0x5a0] sm:$0xff]
                %344 = vst [vmem:[%s252 + $0x168] sm:$0xff] %v343
                %v345 = vld [vmem:[%s251 + $0x5c0] sm:$0xff]
                %346 = vst [vmem:[%s252 + $0x170] sm:$0xff] %v345
                %v347 = vld [vmem:[%s251 + $0x5e0] sm:$0xff]
                %348 = vst [vmem:[%s252 + $0x178] sm:$0xff] %v347
                %v349 = vld [vmem:[%s251 + $0x600] sm:$0xff]
                %350 = vst [vmem:[%s252 + $0x180] sm:$0xff] %v349
                %v351 = vld [vmem:[%s251 + $0x620] sm:$0xff]
                %352 = vst [vmem:[%s252 + $0x188] sm:$0xff] %v351
                %v353 = vld [vmem:[%s251 + $0x640] sm:$0xff]
                %354 = vst [vmem:[%s252 + $0x190] sm:$0xff] %v353
                %v355 = vld [vmem:[%s251 + $0x660] sm:$0xff]
                %356 = vst [vmem:[%s252 + $0x198] sm:$0xff] %v355
                %v357 = vld [vmem:[%s251 + $0x680] sm:$0xff]
                %358 = vst [vmem:[%s252 + $0x1a0] sm:$0xff] %v357
                %v359 = vld [vmem:[%s251 + $0x6a0] sm:$0xff]
                %360 = vst [vmem:[%s252 + $0x1a8] sm:$0xff] %v359
                %v361 = vld [vmem:[%s251 + $0x6c0] sm:$0xff]
                %362 = vst [vmem:[%s252 + $0x1b0] sm:$0xff] %v361
                %v363 = vld [vmem:[%s251 + $0x6e0] sm:$0xff]
                %364 = vst [vmem:[%s252 + $0x1b8] sm:$0xff] %v363
                %v365 = vld [vmem:[%s251 + $0x700] sm:$0xff]
                %366 = vst [vmem:[%s252 + $0x1c0] sm:$0xff] %v365
                %v367 = vld [vmem:[%s251 + $0x720] sm:$0xff]
                %368 = vst [vmem:[%s252 + $0x1c8] sm:$0xff] %v367
                %v369 = vld [vmem:[%s251 + $0x740] sm:$0xff]
                %370 = vst [vmem:[%s252 + $0x1d0] sm:$0xff] %v369
                %v371 = vld [vmem:[%s251 + $0x760] sm:$0xff]
                %372 = vst [vmem:[%s252 + $0x1d8] sm:$0xff] %v371
                %v373 = vld [vmem:[%s251 + $0x780] sm:$0xff]
                %374 = vst [vmem:[%s252 + $0x1e0] sm:$0xff] %v373
                %v375 = vld [vmem:[%s251 + $0x7a0] sm:$0xff]
                %376 = vst [vmem:[%s252 + $0x1e8] sm:$0xff] %v375
                %v377 = vld [vmem:[%s251 + $0x7c0] sm:$0xff]
                %378 = vst [vmem:[%s252 + $0x1f0] sm:$0xff] %v377
                %v379 = vld [vmem:[%s251 + $0x7e0] sm:$0xff]
                %380 = vst [vmem:[%s252 + $0x1f8] sm:$0xff] %v379
                %v381 = vld [vmem:[%s251 + $0x800] sm:$0xff]
                %382 = vst [vmem:[%s252 + $0x200] sm:$0xff] %v381
                %v383 = vld [vmem:[%s251 + $0x820] sm:$0xff]
                %384 = vst [vmem:[%s252 + $0x208] sm:$0xff] %v383
                %v385 = vld [vmem:[%s251 + $0x840] sm:$0xff]
                %386 = vst [vmem:[%s252 + $0x210] sm:$0xff] %v385
                %v387 = vld [vmem:[%s251 + $0x860] sm:$0xff]
                %388 = vst [vmem:[%s252 + $0x218] sm:$0xff] %v387
                %v389 = vld [vmem:[%s251 + $0x880] sm:$0xff]
                %390 = vst [vmem:[%s252 + $0x220] sm:$0xff] %v389
                %v391 = vld [vmem:[%s251 + $0x8a0] sm:$0xff]
                %392 = vst [vmem:[%s252 + $0x228] sm:$0xff] %v391
                %v393 = vld [vmem:[%s251 + $0x8c0] sm:$0xff]
                %394 = vst [vmem:[%s252 + $0x230] sm:$0xff] %v393
                %v395 = vld [vmem:[%s251 + $0x8e0] sm:$0xff]
                %396 = vst [vmem:[%s252 + $0x238] sm:$0xff] %v395
                %v397 = vld [vmem:[%s251 + $0x900] sm:$0xff]
                %398 = vst [vmem:[%s252 + $0x240] sm:$0xff] %v397
                %v399 = vld [vmem:[%s251 + $0x920] sm:$0xff]
                %400 = vst [vmem:[%s252 + $0x248] sm:$0xff] %v399
                %v401 = vld [vmem:[%s251 + $0x940] sm:$0xff]
                %402 = vst [vmem:[%s252 + $0x250] sm:$0xff] %v401
                %v403 = vld [vmem:[%s251 + $0x960] sm:$0xff]
                %404 = vst [vmem:[%s252 + $0x258] sm:$0xff] %v403
                %v405 = vld [vmem:[%s251 + $0x980] sm:$0xff]
                %406 = vst [vmem:[%s252 + $0x260] sm:$0xff] %v405
                %v407 = vld [vmem:[%s251 + $0x9a0] sm:$0xff]
                %408 = vst [vmem:[%s252 + $0x268] sm:$0xff] %v407
                %v409 = vld [vmem:[%s251 + $0x9c0] sm:$0xff]
                %410 = vst [vmem:[%s252 + $0x270] sm:$0xff] %v409
                %v411 = vld [vmem:[%s251 + $0x9e0] sm:$0xff]
                %412 = vst [vmem:[%s252 + $0x278] sm:$0xff] %v411
                %v413 = vld [vmem:[%s251 + $0xa00] sm:$0xff]
                %414 = vst [vmem:[%s252 + $0x280] sm:$0xff] %v413
                %v415 = vld [vmem:[%s251 + $0xa20] sm:$0xff]
                %416 = vst [vmem:[%s252 + $0x288] sm:$0xff] %v415
                %v417 = vld [vmem:[%s251 + $0xa40] sm:$0xff]
                %418 = vst [vmem:[%s252 + $0x290] sm:$0xff] %v417
                %v419 = vld [vmem:[%s251 + $0xa60] sm:$0xff]
                %420 = vst [vmem:[%s252 + $0x298] sm:$0xff] %v419
                %v421 = vld [vmem:[%s251 + $0xa80] sm:$0xff]
                %422 = vst [vmem:[%s252 + $0x2a0] sm:$0xff] %v421
                %v423 = vld [vmem:[%s251 + $0xaa0] sm:$0xff]
                %424 = vst [vmem:[%s252 + $0x2a8] sm:$0xff] %v423
                %v425 = vld [vmem:[%s251 + $0xac0] sm:$0xff]
                %426 = vst [vmem:[%s252 + $0x2b0] sm:$0xff] %v425
                %v427 = vld [vmem:[%s251 + $0xae0] sm:$0xff]
                %428 = vst [vmem:[%s252 + $0x2b8] sm:$0xff] %v427
                %v429 = vld [vmem:[%s251 + $0xb00] sm:$0xff]
                %430 = vst [vmem:[%s252 + $0x2c0] sm:$0xff] %v429
                %v431 = vld [vmem:[%s251 + $0xb20] sm:$0xff]
                %432 = vst [vmem:[%s252 + $0x2c8] sm:$0xff] %v431
                %v433 = vld [vmem:[%s251 + $0xb40] sm:$0xff]
                %434 = vst [vmem:[%s252 + $0x2d0] sm:$0xff] %v433
                %v435 = vld [vmem:[%s251 + $0xb60] sm:$0xff]
                %436 = vst [vmem:[%s252 + $0x2d8] sm:$0xff] %v435
                %v437 = vld [vmem:[%s251 + $0xb80] sm:$0xff]
                %438 = vst [vmem:[%s252 + $0x2e0] sm:$0xff] %v437
                %v439 = vld [vmem:[%s251 + $0xba0] sm:$0xff]
                %440 = vst [vmem:[%s252 + $0x2e8] sm:$0xff] %v439
                %v441 = vld [vmem:[%s251 + $0xbc0] sm:$0xff]
                %442 = vst [vmem:[%s252 + $0x2f0] sm:$0xff] %v441
                %v443 = vld [vmem:[%s251 + $0xbe0] sm:$0xff]
                %444 = vst [vmem:[%s252 + $0x2f8] sm:$0xff] %v443
                %v445 = vld [vmem:[%s251 + $0xc00] sm:$0xff]
                %446 = vst [vmem:[%s252 + $0x300] sm:$0xff] %v445
                %v447 = vld [vmem:[%s251 + $0xc20] sm:$0xff]
                %448 = vst [vmem:[%s252 + $0x308] sm:$0xff] %v447
                %v449 = vld [vmem:[%s251 + $0xc40] sm:$0xff]
                %450 = vst [vmem:[%s252 + $0x310] sm:$0xff] %v449
                %v451 = vld [vmem:[%s251 + $0xc60] sm:$0xff]
                %452 = vst [vmem:[%s252 + $0x318] sm:$0xff] %v451
                %v453 = vld [vmem:[%s251 + $0xc80] sm:$0xff]
                %454 = vst [vmem:[%s252 + $0x320] sm:$0xff] %v453
                %v455 = vld [vmem:[%s251 + $0xca0] sm:$0xff]
                %456 = vst [vmem:[%s252 + $0x328] sm:$0xff] %v455
                %v457 = vld [vmem:[%s251 + $0xcc0] sm:$0xff]
                %458 = vst [vmem:[%s252 + $0x330] sm:$0xff] %v457
                %v459 = vld [vmem:[%s251 + $0xce0] sm:$0xff]
                %460 = vst [vmem:[%s252 + $0x338] sm:$0xff] %v459
                %v461 = vld [vmem:[%s251 + $0xd00] sm:$0xff]
                %462 = vst [vmem:[%s252 + $0x340] sm:$0xff] %v461
                %v463 = vld [vmem:[%s251 + $0xd20] sm:$0xff]
                %464 = vst [vmem:[%s252 + $0x348] sm:$0xff] %v463
                %v465 = vld [vmem:[%s251 + $0xd40] sm:$0xff]
                %466 = vst [vmem:[%s252 + $0x350] sm:$0xff] %v465
                %v467 = vld [vmem:[%s251 + $0xd60] sm:$0xff]
                %468 = vst [vmem:[%s252 + $0x358] sm:$0xff] %v467
                %v469 = vld [vmem:[%s251 + $0xd80] sm:$0xff]
                %470 = vst [vmem:[%s252 + $0x360] sm:$0xff] %v469
                %v471 = vld [vmem:[%s251 + $0xda0] sm:$0xff]
                %472 = vst [vmem:[%s252 + $0x368] sm:$0xff] %v471
                %v473 = vld [vmem:[%s251 + $0xdc0] sm:$0xff]
                %474 = vst [vmem:[%s252 + $0x370] sm:$0xff] %v473
                %v475 = vld [vmem:[%s251 + $0xde0] sm:$0xff]
                %476 = vst [vmem:[%s252 + $0x378] sm:$0xff] %v475
                %v477 = vld [vmem:[%s251 + $0xe00] sm:$0xff]
                %478 = vst [vmem:[%s252 + $0x380] sm:$0xff] %v477
                %v479 = vld [vmem:[%s251 + $0xe20] sm:$0xff]
                %480 = vst [vmem:[%s252 + $0x388] sm:$0xff] %v479
                %v481 = vld [vmem:[%s251 + $0xe40] sm:$0xff]
                %482 = vst [vmem:[%s252 + $0x390] sm:$0xff] %v481
                %v483 = vld [vmem:[%s251 + $0xe60] sm:$0xff]
                %484 = vst [vmem:[%s252 + $0x398] sm:$0xff] %v483
                %v485 = vld [vmem:[%s251 + $0xe80] sm:$0xff]
                %486 = vst [vmem:[%s252 + $0x3a0] sm:$0xff] %v485
                %v487 = vld [vmem:[%s251 + $0xea0] sm:$0xff]
                %488 = vst [vmem:[%s252 + $0x3a8] sm:$0xff] %v487
                %v489 = vld [vmem:[%s251 + $0xec0] sm:$0xff]
                %490 = vst [vmem:[%s252 + $0x3b0] sm:$0xff] %v489
                %v491 = vld [vmem:[%s251 + $0xee0] sm:$0xff]
                %492 = vst [vmem:[%s252 + $0x3b8] sm:$0xff] %v491
                %v493 = vld [vmem:[%s251 + $0xf00] sm:$0xff]
                %494 = vst [vmem:[%s252 + $0x3c0] sm:$0xff] %v493
                %v495 = vld [vmem:[%s251 + $0xf20] sm:$0xff]
                %496 = vst [vmem:[%s252 + $0x3c8] sm:$0xff] %v495
                %v497 = vld [vmem:[%s251 + $0xf40] sm:$0xff]
                %498 = vst [vmem:[%s252 + $0x3d0] sm:$0xff] %v497
                %v499 = vld [vmem:[%s251 + $0xf60] sm:$0xff]
                %500 = vst [vmem:[%s252 + $0x3d8] sm:$0xff] %v499
                %v501 = vld [vmem:[%s251 + $0xf80] sm:$0xff]
                %502 = vst [vmem:[%s252 + $0x3e0] sm:$0xff] %v501
                %v503 = vld [vmem:[%s251 + $0xfa0] sm:$0xff]
                %504 = vst [vmem:[%s252 + $0x3e8] sm:$0xff] %v503
                %v505 = vld [vmem:[%s251 + $0xfc0] sm:$0xff]
                %506 = vst [vmem:[%s252 + $0x3f0] sm:$0xff] %v505
                %v507 = vld [vmem:[%s251 + $0xfe0] sm:$0xff]
                %508 = vst [vmem:[%s252 + $0x3f8] sm:$0xff] %v507
              $region53: #{generator_forward.1} parent=47 // loop_footer
                %s250 = sadd.s32 1, %s246
              $region54: #{generator_forward.1} parent=47 // loop_footer_branch
                %245 = sbr.rel target = $region50
              $region55: #{generator_forward.1} parent=47 // loop_exit
                _
            $region48: #{generator_forward.1} parent=39 // pred_fallthru
              _
          $region40: #{generator_forward.1} parent=35 // pred_fallthru
            _
          %777 = vnop
        $region36: #{generator_forward.1} parent=31 // pred_fallthru
          _
        // Predicated region
        $region71: #{generator_forward.1} parent=31 // pred_check
          %p778 = pneg %p123
        $region72: #{generator_forward.1} parent=31 // pred_check_branch
          %780 = sbr.rel (%p778) target = $region74
        $region73: #{generator_forward.1} parent=31 // pred_region
          %s781 = smul.u32 2, %s14
          %p782 = scmp.lt.s32.totalorder %s781, 7
          %s783 = scalar_select %p782, %s781, 7
          %s784 = scalar_lea.vmem %s4, %s783
          %s785 = smul.u32 2, %s14
        $region74: #{generator_forward.1} parent=31 // pred_fallthru
          _
        // Predicated region
        $region75: #{generator_forward.1} parent=31 // pred_check
          %p786 = pneg %p149
        $region76: #{generator_forward.1} parent=31 // pred_check_branch
          %788 = sbr.rel (%p786) target = $region78
        $region77: #{generator_forward.1} parent=31 // pred_region
          %s789 = smul.u32 32, %s14
          %p790 = scmp.lt.s32.totalorder %s789, 127
          %s791 = scalar_select %p790, %s789, 127
          %s792 = smul.addr %s791, 7
          %s793 = smul.addr %s792, 4
          %s794 = scalar_lea.vmem %s5, %s793
          %s795 = smul.u32 32, %s14
        $region78: #{generator_forward.1} parent=31 // pred_fallthru
          _
      $region32: #{generator_forward.1} parent=5 // pred_fallthru
        _
      %p796 = scmp.le.s32.totalorder 1, %s14
      %p797 = scmp.lt.s32.totalorder %s14, 5
      %p798 = pnand %p796, %p797
      %p799 = pneg %p798
      // Predicated region
      $region79: #{generator_forward.1} parent=5 // pred_check
        _
      $region80: #{generator_forward.1} parent=5 // pred_check_branch
        %801 = sbr.rel (%p798) target = $region82
      $region81: #{generator_forward.1} parent=5 // pred_region
        %s802 = ssub.s32 %s14, 1
        %s803 = sand.u32 %s90, 1
        %s804 = sand.u32 %s90, 1
        %s805 = smul.addr %s804, 1024
        %s806 = scalar_lea.vmem [#allocation4], %s805
        // Predicated region
        $region83: #{generator_forward.1} parent=81 // pred_check
          %p807 = pneg %p103
        $region84: #{generator_forward.1} parent=81 // pred_check_branch
          %809 = sbr.rel (%p807) target = $region86
        $region85: #{generator_forward.1} parent=81 // pred_region
          _
        $region86: #{generator_forward.1} parent=81 // pred_fallthru
          _
        %p810 = pneg %p35
        %p811 = pneg %p32
        %p812 = pneg %p56
        %p813 = pneg %p53
        %p814 = pneg %p77
        %p815 = pneg %p74
        %s816 = sand.u32 %s90, 1
        %s817 = sand.u32 %s90, 1
        %s818 = smul.addr %s817, 1024
        %s819 = scalar_lea.vmem [#allocation4], %s818
        %p820 = pneg %p103
        %p821 = pneg %p100
        %s822 = smul.u32 2, %s19
        %p823 = scmp.lt.s32.totalorder %s822, 7
        %s824 = scalar_select %p823, %s822, 7
        %s825 = scalar_lea.vmem %s4, %s824
        %p826 = pneg %p129
        %p827 = pneg %p126
        %s828 = smul.u32 32, %s19
        %p829 = scmp.lt.s32.totalorder %s828, 127
        %s830 = scalar_select %p829, %s828, 127
        %s831 = smul.addr %s830, 7
        %s832 = smul.addr %s831, 4
        %s833 = scalar_lea.vmem %s5, %s832
        %p834 = pneg %p155
        %p835 = pneg %p152
        %p836 = pneg %p176
        %p837 = pneg %p173
        %p838 = pneg %p197
        %p839 = pneg %p194
        %s840 = smul.u32 2, %s19
        %s841 = smul.u32 2, %s19
        %p842 = scmp.lt.s32.totalorder %s841, 7
        %s843 = scalar_select %p842, %s841, 7
        %s844 = scalar_lea.vmem %s4, %s843
        %s845 = smul.u32 2, %s19
        %s846 = smul.u32 32, %s19
        %p847 = scmp.lt.s32.totalorder %s846, 127
        %s848 = scalar_select %p847, %s846, 127
        %s849 = smul.addr %s848, 7
        %s850 = smul.addr %s849, 4
        %s851 = scalar_lea.vmem %s5, %s850
        %s852 = smul.u32 32, %s19
        %p854 = scmp.eq.s32.totalorder %s19, 0
        // Predicated region
        $region87: #{generator_forward.1} parent=81 // pred_check
          %p855 = pneg %p854
        $region88: #{generator_forward.1} parent=81 // pred_check_branch
          %857 = sbr.rel (%p855) target = $region90
        $region89: #{generator_forward.1} parent=81 // pred_region
          %v858 = vld [vmem:[%s0] sm:$0xff]
          %v859 = vpack.c.bf16 %v858, %v858
          %v860 = vld [vmem:[%s1] sm:$0xff]
          %v861 = vld [vmem:[%s1 + $0x8] sm:$0xff]
          %v862 = vld [vmem:[%s1 + $0x10] sm:$0xff]
          %v863 = vld [vmem:[%s1 + $0x18] sm:$0xff]
          %v864 = vld [vmem:[%s1 + $0x20] sm:$0xff]
          %v865 = vld [vmem:[%s1 + $0x28] sm:$0xff]
          %v866 = vld [vmem:[%s1 + $0x30] sm:$0xff]
          %v867 = vld [vmem:[%s1 + $0x38] sm:$0xff]
          %v868 = vld [vmem:[%s1 + $0x40] sm:$0xff]
          %v869 = vld [vmem:[%s1 + $0x48] sm:$0xff]
          %v870 = vld [vmem:[%s1 + $0x50] sm:$0xff]
          %v871 = vld [vmem:[%s1 + $0x58] sm:$0xff]
          %v872 = vld [vmem:[%s1 + $0x60] sm:$0xff]
          %v873 = vld [vmem:[%s1 + $0x68] sm:$0xff]
          %v874 = vld [vmem:[%s1 + $0x70] sm:$0xff]
          %v875 = vld [vmem:[%s1 + $0x78] sm:$0xff]
          %v876 = vld [vmem:[%s1 + $0x80] sm:$0xff]
          %v877 = vld [vmem:[%s1 + $0x88] sm:$0xff]
          %v878 = vld [vmem:[%s1 + $0x90] sm:$0xff]
          %v879 = vld [vmem:[%s1 + $0x98] sm:$0xff]
          %v880 = vld [vmem:[%s1 + $0xa0] sm:$0xff]
          %v881 = vld [vmem:[%s1 + $0xa8] sm:$0xff]
          %v882 = vld [vmem:[%s1 + $0xb0] sm:$0xff]
          %v883 = vld [vmem:[%s1 + $0xb8] sm:$0xff]
          %v884 = vld [vmem:[%s1 + $0xc0] sm:$0xff]
          %v885 = vld [vmem:[%s1 + $0xc8] sm:$0xff]
          %v886 = vld [vmem:[%s1 + $0xd0] sm:$0xff]
          %v887 = vld [vmem:[%s1 + $0xd8] sm:$0xff]
          %v888 = vld [vmem:[%s1 + $0xe0] sm:$0xff]
          %v889 = vld [vmem:[%s1 + $0xe8] sm:$0xff]
          %v890 = vld [vmem:[%s1 + $0xf0] sm:$0xff]
          %v891 = vld [vmem:[%s1 + $0xf8] sm:$0xff]
          %v892 = vld [vmem:[%s1 + $0x100] sm:$0xff]
          %v893 = vld [vmem:[%s1 + $0x108] sm:$0xff]
          %v894 = vld [vmem:[%s1 + $0x110] sm:$0xff]
          %v895 = vld [vmem:[%s1 + $0x118] sm:$0xff]
          %v896 = vld [vmem:[%s1 + $0x120] sm:$0xff]
          %v897 = vld [vmem:[%s1 + $0x128] sm:$0xff]
          %v898 = vld [vmem:[%s1 + $0x130] sm:$0xff]
          %v899 = vld [vmem:[%s1 + $0x138] sm:$0xff]
          %v900 = vld [vmem:[%s1 + $0x140] sm:$0xff]
          %v901 = vld [vmem:[%s1 + $0x148] sm:$0xff]
          %v902 = vld [vmem:[%s1 + $0x150] sm:$0xff]
          %v903 = vld [vmem:[%s1 + $0x158] sm:$0xff]
          %v904 = vld [vmem:[%s1 + $0x160] sm:$0xff]
          %v905 = vld [vmem:[%s1 + $0x168] sm:$0xff]
          %v906 = vld [vmem:[%s1 + $0x170] sm:$0xff]
          %v907 = vld [vmem:[%s1 + $0x178] sm:$0xff]
          %v908 = vld [vmem:[%s1 + $0x180] sm:$0xff]
          %v909 = vld [vmem:[%s1 + $0x188] sm:$0xff]
          %v910 = vld [vmem:[%s1 + $0x190] sm:$0xff]
          %v911 = vld [vmem:[%s1 + $0x198] sm:$0xff]
          %v912 = vld [vmem:[%s1 + $0x1a0] sm:$0xff]
          %v913 = vld [vmem:[%s1 + $0x1a8] sm:$0xff]
          %v914 = vld [vmem:[%s1 + $0x1b0] sm:$0xff]
          %v915 = vld [vmem:[%s1 + $0x1b8] sm:$0xff]
          %v916 = vld [vmem:[%s1 + $0x1c0] sm:$0xff]
          %v917 = vld [vmem:[%s1 + $0x1c8] sm:$0xff]
          %v918 = vld [vmem:[%s1 + $0x1d0] sm:$0xff]
          %v919 = vld [vmem:[%s1 + $0x1d8] sm:$0xff]
          %v920 = vld [vmem:[%s1 + $0x1e0] sm:$0xff]
          %v921 = vld [vmem:[%s1 + $0x1e8] sm:$0xff]
          %v922 = vld [vmem:[%s1 + $0x1f0] sm:$0xff]
          %v923 = vld [vmem:[%s1 + $0x1f8] sm:$0xff]
          %v924 = vld [vmem:[%s2] sm:$0xff]
          %v926 = vlaneseq
          %v927 = vshrl.u32 %v926, 7
          %v928 = vsub.s32 0, %v927
          %v929 = vrot.slane %v924, %v928
          %v930 = vlaneseq
          %v931 = vshrl.u32 %v930, 7
          %v932 = vsub.s32 1, %v931
          %v933 = vrot.slane %v924, %v932
          %v934 = vlaneseq
          %v935 = vshrl.u32 %v934, 7
          %v936 = vsub.s32 2, %v935
          %v937 = vrot.slane %v924, %v936
          %v938 = vlaneseq
          %v939 = vshrl.u32 %v938, 7
          %v940 = vsub.s32 3, %v939
          %v941 = vrot.slane %v924, %v940
          %v942 = vlaneseq
          %v943 = vshrl.u32 %v942, 7
          %v944 = vsub.s32 4, %v943
          %v945 = vrot.slane %v924, %v944
          %v946 = vlaneseq
          %v947 = vshrl.u32 %v946, 7
          %v948 = vsub.s32 5, %v947
          %v949 = vrot.slane %v924, %v948
          %v950 = vlaneseq
          %v951 = vshrl.u32 %v950, 7
          %v952 = vsub.s32 6, %v951
          %v953 = vrot.slane %v924, %v952
          %v954 = vlaneseq
          %v955 = vshrl.u32 %v954, 7
          %v956 = vsub.s32 7, %v955
          %v957 = vrot.slane %v924, %v956
          %v1030 = vunpack.c.l.b16 %v860
          %v1031 = vunpack.c.h.b16 %v860
          %v1032 = vunpack.c.l.b16 %v861
          %v1033 = vunpack.c.h.b16 %v861
          %v1034 = vunpack.c.l.b16 %v862
          %v1035 = vunpack.c.h.b16 %v862
          %v1036 = vunpack.c.l.b16 %v863
          %v1037 = vunpack.c.h.b16 %v863
          %v1038 = vunpack.c.l.b16 %v864
          %v1039 = vunpack.c.h.b16 %v864
          %v1040 = vunpack.c.l.b16 %v865
          %v1041 = vunpack.c.h.b16 %v865
          %v1042 = vunpack.c.l.b16 %v866
          %v1043 = vunpack.c.h.b16 %v866
          %v1044 = vunpack.c.l.b16 %v867
          %v1045 = vunpack.c.h.b16 %v867
          %v1046 = vunpack.c.l.b16 %v868
          %v1047 = vunpack.c.h.b16 %v868
          %v1048 = vunpack.c.l.b16 %v869
          %v1049 = vunpack.c.h.b16 %v869
          %v1050 = vunpack.c.l.b16 %v870
          %v1051 = vunpack.c.h.b16 %v870
          %v1052 = vunpack.c.l.b16 %v871
          %v1053 = vunpack.c.h.b16 %v871
          %v1054 = vunpack.c.l.b16 %v872
          %v1055 = vunpack.c.h.b16 %v872
          %v1056 = vunpack.c.l.b16 %v873
          %v1057 = vunpack.c.h.b16 %v873
          %v1058 = vunpack.c.l.b16 %v874
          %v1059 = vunpack.c.h.b16 %v874
          %v1060 = vunpack.c.l.b16 %v875
          %v1061 = vunpack.c.h.b16 %v875
          %v1062 = vunpack.c.l.b16 %v876
          %v1063 = vunpack.c.h.b16 %v876
          %v1064 = vunpack.c.l.b16 %v877
          %v1065 = vunpack.c.h.b16 %v877
          %v1066 = vunpack.c.l.b16 %v878
          %v1067 = vunpack.c.h.b16 %v878
          %v1068 = vunpack.c.l.b16 %v879
          %v1069 = vunpack.c.h.b16 %v879
          %v1070 = vunpack.c.l.b16 %v880
          %v1071 = vunpack.c.h.b16 %v880
          %v1072 = vunpack.c.l.b16 %v881
          %v1073 = vunpack.c.h.b16 %v881
          %v1074 = vunpack.c.l.b16 %v882
          %v1075 = vunpack.c.h.b16 %v882
          %v1076 = vunpack.c.l.b16 %v883
          %v1077 = vunpack.c.h.b16 %v883
          %v1078 = vunpack.c.l.b16 %v884
          %v1079 = vunpack.c.h.b16 %v884
          %v1080 = vunpack.c.l.b16 %v885
          %v1081 = vunpack.c.h.b16 %v885
          %v1082 = vunpack.c.l.b16 %v886
          %v1083 = vunpack.c.h.b16 %v886
          %v1084 = vunpack.c.l.b16 %v887
          %v1085 = vunpack.c.h.b16 %v887
          %v1086 = vunpack.c.l.b16 %v888
          %v1087 = vunpack.c.h.b16 %v888
          %v1088 = vunpack.c.l.b16 %v889
          %v1089 = vunpack.c.h.b16 %v889
          %v1090 = vunpack.c.l.b16 %v890
          %v1091 = vunpack.c.h.b16 %v890
          %v1092 = vunpack.c.l.b16 %v891
          %v1093 = vunpack.c.h.b16 %v891
          %v1094 = vunpack.c.l.b16 %v892
          %v1095 = vunpack.c.h.b16 %v892
          %v1096 = vunpack.c.l.b16 %v893
          %v1097 = vunpack.c.h.b16 %v893
          %v1098 = vunpack.c.l.b16 %v894
          %v1099 = vunpack.c.h.b16 %v894
          %v1100 = vunpack.c.l.b16 %v895
          %v1101 = vunpack.c.h.b16 %v895
          %v1102 = vunpack.c.l.b16 %v896
          %v1103 = vunpack.c.h.b16 %v896
          %v1104 = vunpack.c.l.b16 %v897
          %v1105 = vunpack.c.h.b16 %v897
          %v1106 = vunpack.c.l.b16 %v898
          %v1107 = vunpack.c.h.b16 %v898
          %v1108 = vunpack.c.l.b16 %v899
          %v1109 = vunpack.c.h.b16 %v899
          %v1110 = vunpack.c.l.b16 %v900
          %v1111 = vunpack.c.h.b16 %v900
          %v1112 = vunpack.c.l.b16 %v901
          %v1113 = vunpack.c.h.b16 %v901
          %v1114 = vunpack.c.l.b16 %v902
          %v1115 = vunpack.c.h.b16 %v902
          %v1116 = vunpack.c.l.b16 %v903
          %v1117 = vunpack.c.h.b16 %v903
          %v1118 = vunpack.c.l.b16 %v904
          %v1119 = vunpack.c.h.b16 %v904
          %v1120 = vunpack.c.l.b16 %v905
          %v1121 = vunpack.c.h.b16 %v905
          %v1122 = vunpack.c.l.b16 %v906
          %v1123 = vunpack.c.h.b16 %v906
          %v1124 = vunpack.c.l.b16 %v907
          %v1125 = vunpack.c.h.b16 %v907
          %v1126 = vunpack.c.l.b16 %v908
          %v1127 = vunpack.c.h.b16 %v908
          %v1128 = vunpack.c.l.b16 %v909
          %v1129 = vunpack.c.h.b16 %v909
          %v1130 = vunpack.c.l.b16 %v910
          %v1131 = vunpack.c.h.b16 %v910
          %v1132 = vunpack.c.l.b16 %v911
          %v1133 = vunpack.c.h.b16 %v911
          %v1134 = vunpack.c.l.b16 %v912
          %v1135 = vunpack.c.h.b16 %v912
          %v1136 = vunpack.c.l.b16 %v913
          %v1137 = vunpack.c.h.b16 %v913
          %v1138 = vunpack.c.l.b16 %v914
          %v1139 = vunpack.c.h.b16 %v914
          %v1140 = vunpack.c.l.b16 %v915
          %v1141 = vunpack.c.h.b16 %v915
          %v1142 = vunpack.c.l.b16 %v916
          %v1143 = vunpack.c.h.b16 %v916
          %v1144 = vunpack.c.l.b16 %v917
          %v1145 = vunpack.c.h.b16 %v917
          %v1146 = vunpack.c.l.b16 %v918
          %v1147 = vunpack.c.h.b16 %v918
          %v1148 = vunpack.c.l.b16 %v919
          %v1149 = vunpack.c.h.b16 %v919
          %v1150 = vunpack.c.l.b16 %v920
          %v1151 = vunpack.c.h.b16 %v920
          %v1152 = vunpack.c.l.b16 %v921
          %v1153 = vunpack.c.h.b16 %v921
          %v1154 = vunpack.c.l.b16 %v922
          %v1155 = vunpack.c.h.b16 %v922
          %v1156 = vunpack.c.l.b16 %v923
          %v1157 = vunpack.c.h.b16 %v923
          %v1158 = vpack.c.b16 %v1038, %v1030
          %v1159 = vpack.c.b16 %v1039, %v1031
          %v1160 = vpack.c.b16 %v1040, %v1032
          %v1161 = vpack.c.b16 %v1041, %v1033
          %v1162 = vpack.c.b16 %v1042, %v1034
          %v1163 = vpack.c.b16 %v1043, %v1035
          %v1164 = vpack.c.b16 %v1044, %v1036
          %v1165 = vpack.c.b16 %v1045, %v1037
          %v1166 = vpack.c.b16 %v1054, %v1046
          %v1167 = vpack.c.b16 %v1055, %v1047
          %v1168 = vpack.c.b16 %v1056, %v1048
          %v1169 = vpack.c.b16 %v1057, %v1049
          %v1170 = vpack.c.b16 %v1058, %v1050
          %v1171 = vpack.c.b16 %v1059, %v1051
          %v1172 = vpack.c.b16 %v1060, %v1052
          %v1173 = vpack.c.b16 %v1061, %v1053
          %v1174 = vpack.c.b16 %v1070, %v1062
          %v1175 = vpack.c.b16 %v1071, %v1063
          %v1176 = vpack.c.b16 %v1072, %v1064
          %v1177 = vpack.c.b16 %v1073, %v1065
          %v1178 = vpack.c.b16 %v1074, %v1066
          %v1179 = vpack.c.b16 %v1075, %v1067
          %v1180 = vpack.c.b16 %v1076, %v1068
          %v1181 = vpack.c.b16 %v1077, %v1069
          %v1182 = vpack.c.b16 %v1086, %v1078
          %v1183 = vpack.c.b16 %v1087, %v1079
          %v1184 = vpack.c.b16 %v1088, %v1080
          %v1185 = vpack.c.b16 %v1089, %v1081
          %v1186 = vpack.c.b16 %v1090, %v1082
          %v1187 = vpack.c.b16 %v1091, %v1083
          %v1188 = vpack.c.b16 %v1092, %v1084
          %v1189 = vpack.c.b16 %v1093, %v1085
          %v1190 = vpack.c.b16 %v1102, %v1094
          %v1191 = vpack.c.b16 %v1103, %v1095
          %v1192 = vpack.c.b16 %v1104, %v1096
          %v1193 = vpack.c.b16 %v1105, %v1097
          %v1194 = vpack.c.b16 %v1106, %v1098
          %v1195 = vpack.c.b16 %v1107, %v1099
          %v1196 = vpack.c.b16 %v1108, %v1100
          %v1197 = vpack.c.b16 %v1109, %v1101
          %v1198 = vpack.c.b16 %v1118, %v1110
          %v1199 = vpack.c.b16 %v1119, %v1111
          %v1200 = vpack.c.b16 %v1120, %v1112
          %v1201 = vpack.c.b16 %v1121, %v1113
          %v1202 = vpack.c.b16 %v1122, %v1114
          %v1203 = vpack.c.b16 %v1123, %v1115
          %v1204 = vpack.c.b16 %v1124, %v1116
          %v1205 = vpack.c.b16 %v1125, %v1117
          %v1206 = vpack.c.b16 %v1134, %v1126
          %v1207 = vpack.c.b16 %v1135, %v1127
          %v1208 = vpack.c.b16 %v1136, %v1128
          %v1209 = vpack.c.b16 %v1137, %v1129
          %v1210 = vpack.c.b16 %v1138, %v1130
          %v1211 = vpack.c.b16 %v1139, %v1131
          %v1212 = vpack.c.b16 %v1140, %v1132
          %v1213 = vpack.c.b16 %v1141, %v1133
          %v1214 = vpack.c.b16 %v1150, %v1142
          %v1215 = vpack.c.b16 %v1151, %v1143
          %v1216 = vpack.c.b16 %v1152, %v1144
          %v1217 = vpack.c.b16 %v1153, %v1145
          %v1218 = vpack.c.b16 %v1154, %v1146
          %v1219 = vpack.c.b16 %v1155, %v1147
          %v1220 = vpack.c.b16 %v1156, %v1148
          %v1221 = vpack.c.b16 %v1157, %v1149
          %1286 = vmatprep.subr.bf16.mxu0 %v1159
          %1287 = vmatpush1.bf16.msra.mxu0 %v1158
          %1288 = vmatprep.subr.bf16.mxu0 %v1167
          %1289 = vmatpush1.bf16.msra.mxu0 %v1166
          %1290 = vmatprep.subr.bf16.mxu0 %v1175
          %1291 = vmatpush1.bf16.msra.mxu0 %v1174
          %1292 = vmatprep.subr.bf16.mxu0 %v1183
          %1293 = vmatpush1.bf16.msra.mxu0 %v1182
          %1294 = vmatprep.subr.bf16.mxu0 %v1191
          %1295 = vmatpush1.bf16.msra.mxu0 %v1190
          %1296 = vmatprep.subr.bf16.mxu0 %v1199
          %1297 = vmatpush1.bf16.msra.mxu0 %v1198
          %1298 = vmatprep.subr.bf16.mxu0 %v1207
          %1299 = vmatpush1.bf16.msra.mxu0 %v1206
          %1300 = vmatprep.subr.bf16.mxu0 %v1215
          %1301 = vmatpush1.bf16.msra.mxu0 %v1214
          %1302 = vmatprep.subr.bf16.mxu0 0
          %1303 = vmatpush1.bf16.msra.mxu0 0
          %1304 = vmatprep.subr.bf16.mxu0 0
          %1305 = vmatpush1.bf16.msra.mxu0 0
          %1306 = vmatprep.subr.bf16.mxu0 0
          %1307 = vmatpush1.bf16.msra.mxu0 0
          %1308 = vmatprep.subr.bf16.mxu0 0
          %1309 = vmatpush1.bf16.msra.mxu0 0
          %1310 = vmatprep.subr.bf16.mxu0 0
          %1311 = vmatpush1.bf16.msra.mxu0 0
          %1312 = vmatprep.subr.bf16.mxu0 0
          %1313 = vmatpush1.bf16.msra.mxu0 0
          %1314 = vmatprep.subr.bf16.mxu0 0
          %1315 = vmatpush1.bf16.msra.mxu0 0
          %1316 = vmatprep.subr.bf16.mxu0 0
          %1317 = vmatpush1.bf16.msra.mxu0 0
          %1318 = vmatprep.mubr.bf16.mxu0 0
          %1319 = vmatmul.mubr.bf16.gmra.mrb[0].mxu0 %v859
          %v1320 = vpop.f32.mrb[0].mxu0
          %v1321 = vadd.f32 %v929, %v1320
          %v1322 = vpop.f32.mrb[0].mxu0
          %v1323 = vadd.f32 %v933, %v1322
          %v1324 = vpop.f32.mrb[0].mxu0
          %v1325 = vpop.f32.mrb[0].mxu0
          %1326 = vdwg.mxu0
          %1327 = vmatprep.subr.bf16.mxu0 %v1161
          %1328 = vmatpush1.bf16.msra.mxu0 %v1160
          %1329 = vmatprep.subr.bf16.mxu0 %v1169
          %1330 = vmatpush1.bf16.msra.mxu0 %v1168
          %1331 = vmatprep.subr.bf16.mxu0 %v1177
          %1332 = vmatpush1.bf16.msra.mxu0 %v1176
          %1333 = vmatprep.subr.bf16.mxu0 %v1185
          %1334 = vmatpush1.bf16.msra.mxu0 %v1184
          %1335 = vmatprep.subr.bf16.mxu0 %v1193
          %1336 = vmatpush1.bf16.msra.mxu0 %v1192
          %1337 = vmatprep.subr.bf16.mxu0 %v1201
          %1338 = vmatpush1.bf16.msra.mxu0 %v1200
          %1339 = vmatprep.subr.bf16.mxu0 %v1209
          %1340 = vmatpush1.bf16.msra.mxu0 %v1208
          %1341 = vmatprep.subr.bf16.mxu0 %v1217
          %1342 = vmatpush1.bf16.msra.mxu0 %v1216
          %1343 = vmatprep.subr.bf16.mxu0 0
          %1344 = vmatpush1.bf16.msra.mxu0 0
          %1345 = vmatprep.subr.bf16.mxu0 0
          %1346 = vmatpush1.bf16.msra.mxu0 0
          %1347 = vmatprep.subr.bf16.mxu0 0
          %1348 = vmatpush1.bf16.msra.mxu0 0
          %1349 = vmatprep.subr.bf16.mxu0 0
          %1350 = vmatpush1.bf16.msra.mxu0 0
          %1351 = vmatprep.subr.bf16.mxu0 0
          %1352 = vmatpush1.bf16.msra.mxu0 0
          %1353 = vmatprep.subr.bf16.mxu0 0
          %1354 = vmatpush1.bf16.msra.mxu0 0
          %1355 = vmatprep.subr.bf16.mxu0 0
          %1356 = vmatpush1.bf16.msra.mxu0 0
          %1357 = vmatprep.subr.bf16.mxu0 0
          %1358 = vmatpush1.bf16.msra.mxu0 0
          %1359 = vmatprep.mubr.bf16.mxu0 0
          %1360 = vmatmul.mubr.bf16.gmra.mrb[0].mxu0 %v859
          %v1361 = vpop.f32.mrb[0].mxu0
          %v1362 = vadd.f32 %v937, %v1361
          %v1363 = vpop.f32.mrb[0].mxu0
          %v1364 = vadd.f32 %v941, %v1363
          %v1365 = vpop.f32.mrb[0].mxu0
          %v1366 = vpop.f32.mrb[0].mxu0
          %1367 = vdwg.mxu0
          %1368 = vmatprep.subr.bf16.mxu0 %v1163
          %1369 = vmatpush1.bf16.msra.mxu0 %v1162
          %1370 = vmatprep.subr.bf16.mxu0 %v1171
          %1371 = vmatpush1.bf16.msra.mxu0 %v1170
          %1372 = vmatprep.subr.bf16.mxu0 %v1179
          %1373 = vmatpush1.bf16.msra.mxu0 %v1178
          %1374 = vmatprep.subr.bf16.mxu0 %v1187
          %1375 = vmatpush1.bf16.msra.mxu0 %v1186
          %1376 = vmatprep.subr.bf16.mxu0 %v1195
          %1377 = vmatpush1.bf16.msra.mxu0 %v1194
          %1378 = vmatprep.subr.bf16.mxu0 %v1203
          %1379 = vmatpush1.bf16.msra.mxu0 %v1202
          %1380 = vmatprep.subr.bf16.mxu0 %v1211
          %1381 = vmatpush1.bf16.msra.mxu0 %v1210
          %1382 = vmatprep.subr.bf16.mxu0 %v1219
          %1383 = vmatpush1.bf16.msra.mxu0 %v1218
          %1384 = vmatprep.subr.bf16.mxu0 0
          %1385 = vmatpush1.bf16.msra.mxu0 0
          %1386 = vmatprep.subr.bf16.mxu0 0
          %1387 = vmatpush1.bf16.msra.mxu0 0
          %1388 = vmatprep.subr.bf16.mxu0 0
          %1389 = vmatpush1.bf16.msra.mxu0 0
          %1390 = vmatprep.subr.bf16.mxu0 0
          %1391 = vmatpush1.bf16.msra.mxu0 0
          %1392 = vmatprep.subr.bf16.mxu0 0
          %1393 = vmatpush1.bf16.msra.mxu0 0
          %1394 = vmatprep.subr.bf16.mxu0 0
          %1395 = vmatpush1.bf16.msra.mxu0 0
          %1396 = vmatprep.subr.bf16.mxu0 0
          %1397 = vmatpush1.bf16.msra.mxu0 0
          %1398 = vmatprep.subr.bf16.mxu0 0
          %1399 = vmatpush1.bf16.msra.mxu0 0
          %1400 = vmatprep.mubr.bf16.mxu0 0
          %1401 = vmatmul.mubr.bf16.gmra.mrb[0].mxu0 %v859
          %v1402 = vpop.f32.mrb[0].mxu0
          %v1403 = vadd.f32 %v945, %v1402
          %v1404 = vpop.f32.mrb[0].mxu0
          %v1405 = vadd.f32 %v949, %v1404
          %v1406 = vpop.f32.mrb[0].mxu0
          %v1407 = vpop.f32.mrb[0].mxu0
          %1408 = vdwg.mxu0
          %1409 = vmatprep.subr.bf16.mxu0 %v1165
          %1410 = vmatpush1.bf16.msra.mxu0 %v1164
          %1411 = vmatprep.subr.bf16.mxu0 %v1173
          %1412 = vmatpush1.bf16.msra.mxu0 %v1172
          %1413 = vmatprep.subr.bf16.mxu0 %v1181
          %1414 = vmatpush1.bf16.msra.mxu0 %v1180
          %1415 = vmatprep.subr.bf16.mxu0 %v1189
          %1416 = vmatpush1.bf16.msra.mxu0 %v1188
          %1417 = vmatprep.subr.bf16.mxu0 %v1197
          %1418 = vmatpush1.bf16.msra.mxu0 %v1196
          %1419 = vmatprep.subr.bf16.mxu0 %v1205
          %1420 = vmatpush1.bf16.msra.mxu0 %v1204
          %1421 = vmatprep.subr.bf16.mxu0 %v1213
          %1422 = vmatpush1.bf16.msra.mxu0 %v1212
          %1423 = vmatprep.subr.bf16.mxu0 %v1221
          %1424 = vmatpush1.bf16.msra.mxu0 %v1220
          %1425 = vmatprep.subr.bf16.mxu0 0
          %1426 = vmatpush1.bf16.msra.mxu0 0
          %1427 = vmatprep.subr.bf16.mxu0 0
          %1428 = vmatpush1.bf16.msra.mxu0 0
          %1429 = vmatprep.subr.bf16.mxu0 0
          %1430 = vmatpush1.bf16.msra.mxu0 0
          %1431 = vmatprep.subr.bf16.mxu0 0
          %1432 = vmatpush1.bf16.msra.mxu0 0
          %1433 = vmatprep.subr.bf16.mxu0 0
          %1434 = vmatpush1.bf16.msra.mxu0 0
          %1435 = vmatprep.subr.bf16.mxu0 0
          %1436 = vmatpush1.bf16.msra.mxu0 0
          %1437 = vmatprep.subr.bf16.mxu0 0
          %1438 = vmatpush1.bf16.msra.mxu0 0
          %1439 = vmatprep.subr.bf16.mxu0 0
          %1440 = vmatpush1.bf16.msra.mxu0 0
          %1441 = vmatprep.mubr.bf16.mxu0 0
          %1442 = vmatmul.mubr.bf16.gmra.mrb[0].mxu0 %v859
          %v1443 = vpop.f32.mrb[0].mxu0
          %v1444 = vadd.f32 %v953, %v1443
          %v1445 = vpop.f32.mrb[0].mxu0
          %v1446 = vadd.f32 %v957, %v1445
          %v1447 = vpop.f32.mrb[0].mxu0
          %v1448 = vpop.f32.mrb[0].mxu0
          %1449 = vdwg.mxu0
          %v1450 = vmax.f32 %v1321, 0.0
          %v1451 = vmax.f32 %v1323, 0.0
          %v1452 = vmax.f32 %v1362, 0.0
          %v1453 = vmax.f32 %v1364, 0.0
          %v1454 = vmax.f32 %v1403, 0.0
          %v1455 = vmax.f32 %v1405, 0.0
          %v1456 = vmax.f32 %v1444, 0.0
          %v1457 = vmax.f32 %v1446, 0.0
          %1458 = vst [vmem:[#allocation2] sm:$0xff] %v1450
          %1459 = vst [vmem:[#allocation2 + $0x8] sm:$0xff] %v1451
          %1460 = vst [vmem:[#allocation2 + $0x10] sm:$0xff] %v1452
          %1461 = vst [vmem:[#allocation2 + $0x18] sm:$0xff] %v1453
          %1462 = vst [vmem:[#allocation2 + $0x20] sm:$0xff] %v1454
          %1463 = vst [vmem:[#allocation2 + $0x28] sm:$0xff] %v1455
          %1464 = vst [vmem:[#allocation2 + $0x30] sm:$0xff] %v1456
          %1465 = vst [vmem:[#allocation2 + $0x38] sm:$0xff] %v1457
          %1466 = vst [vmem:[#allocation3] sm:$0xff] 0.0
          %1467 = vst [vmem:[#allocation3 + $0x8] sm:$0xff] 0.0
          %1468 = vst [vmem:[#allocation3 + $0x10] sm:$0xff] 0.0
          %1469 = vst [vmem:[#allocation3 + $0x18] sm:$0xff] 0.0
          %1470 = vst [vmem:[#allocation3 + $0x20] sm:$0xff] 0.0
          %1471 = vst [vmem:[#allocation3 + $0x28] sm:$0xff] 0.0
          %1472 = vst [vmem:[#allocation3 + $0x30] sm:$0xff] 0.0
        $region90: #{generator_forward.1} parent=81 // pred_fallthru
          _
        %v1473 = vld [vmem:[#allocation2] sm:$0xff]
        %v1474 = vld [vmem:[#allocation2 + $0x8] sm:$0xff]
        %v1475 = vld [vmem:[#allocation2 + $0x10] sm:$0xff]
        %v1476 = vld [vmem:[#allocation2 + $0x18] sm:$0xff]
        %v1477 = vld [vmem:[#allocation2 + $0x20] sm:$0xff]
        %v1478 = vld [vmem:[#allocation2 + $0x28] sm:$0xff]
        %v1479 = vld [vmem:[#allocation2 + $0x30] sm:$0xff]
        %v1480 = vld [vmem:[#allocation2 + $0x38] sm:$0xff]
        %v1481 = vpack.c.bf16 %v1473, %v1473
        %v1482 = vpack.c.bf16 %v1474, %v1474
        %v1483 = vpack.c.bf16 %v1475, %v1475
        %v1484 = vpack.c.bf16 %v1476, %v1476
        %v1485 = vpack.c.bf16 %v1477, %v1477
        %v1486 = vpack.c.bf16 %v1478, %v1478
        %v1487 = vpack.c.bf16 %v1479, %v1479
        %v1488 = vpack.c.bf16 %v1480, %v1480
        %v1489 = vld [vmem:[%s806] sm:$0xff]
        %v1490 = vld [vmem:[%s806 + $0x8] sm:$0xff]
        %v1491 = vld [vmem:[%s806 + $0x10] sm:$0xff]
        %v1492 = vld [vmem:[%s806 + $0x18] sm:$0xff]
        %v1493 = vld [vmem:[%s806 + $0x20] sm:$0xff]
        %v1494 = vld [vmem:[%s806 + $0x28] sm:$0xff]
        %v1495 = vld [vmem:[%s806 + $0x30] sm:$0xff]
        %v1496 = vld [vmem:[%s806 + $0x38] sm:$0xff]
        %v1497 = vld [vmem:[%s806 + $0x40] sm:$0xff]
        %v1498 = vld [vmem:[%s806 + $0x48] sm:$0xff]
        %v1499 = vld [vmem:[%s806 + $0x50] sm:$0xff]
        %v1500 = vld [vmem:[%s806 + $0x58] sm:$0xff]
        %v1501 = vld [vmem:[%s806 + $0x60] sm:$0xff]
        %v1502 = vld [vmem:[%s806 + $0x68] sm:$0xff]
        %v1503 = vld [vmem:[%s806 + $0x70] sm:$0xff]
        %v1504 = vld [vmem:[%s806 + $0x78] sm:$0xff]
        %v1505 = vld [vmem:[%s806 + $0x80] sm:$0xff]
        %v1506 = vld [vmem:[%s806 + $0x88] sm:$0xff]
        %v1507 = vld [vmem:[%s806 + $0x90] sm:$0xff]
        %v1508 = vld [vmem:[%s806 + $0x98] sm:$0xff]
        %v1509 = vld [vmem:[%s806 + $0xa0] sm:$0xff]
        %v1510 = vld [vmem:[%s806 + $0xa8] sm:$0xff]
        %v1511 = vld [vmem:[%s806 + $0xb0] sm:$0xff]
        %v1512 = vld [vmem:[%s806 + $0xb8] sm:$0xff]
        %v1513 = vld [vmem:[%s806 + $0xc0] sm:$0xff]
        %v1514 = vld [vmem:[%s806 + $0xc8] sm:$0xff]
        %v1515 = vld [vmem:[%s806 + $0xd0] sm:$0xff]
        %v1516 = vld [vmem:[%s806 + $0xd8] sm:$0xff]
        %v1517 = vld [vmem:[%s806 + $0xe0] sm:$0xff]
        %v1518 = vld [vmem:[%s806 + $0xe8] sm:$0xff]
        %v1519 = vld [vmem:[%s806 + $0xf0] sm:$0xff]
        %v1520 = vld [vmem:[%s806 + $0xf8] sm:$0xff]
        %v1521 = vld [vmem:[%s806 + $0x100] sm:$0xff]
        %v1522 = vld [vmem:[%s806 + $0x108] sm:$0xff]
        %v1523 = vld [vmem:[%s806 + $0x110] sm:$0xff]
        %v1524 = vld [vmem:[%s806 + $0x118] sm:$0xff]
        %v1525 = vld [vmem:[%s806 + $0x120] sm:$0xff]
        %v1526 = vld [vmem:[%s806 + $0x128] sm:$0xff]
        %v1527 = vld [vmem:[%s806 + $0x130] sm:$0xff]
        %v1528 = vld [vmem:[%s806 + $0x138] sm:$0xff]
        %v1529 = vld [vmem:[%s806 + $0x140] sm:$0xff]
        %v1530 = vld [vmem:[%s806 + $0x148] sm:$0xff]
        %v1531 = vld [vmem:[%s806 + $0x150] sm:$0xff]
        %v1532 = vld [vmem:[%s806 + $0x158] sm:$0xff]
        %v1533 = vld [vmem:[%s806 + $0x160] sm:$0xff]
        %v1534 = vld [vmem:[%s806 + $0x168] sm:$0xff]
        %v1535 = vld [vmem:[%s806 + $0x170] sm:$0xff]
        %v1536 = vld [vmem:[%s806 + $0x178] sm:$0xff]
        %v1537 = vld [vmem:[%s806 + $0x180] sm:$0xff]
        %v1538 = vld [vmem:[%s806 + $0x188] sm:$0xff]
        %v1539 = vld [vmem:[%s806 + $0x190] sm:$0xff]
        %v1540 = vld [vmem:[%s806 + $0x198] sm:$0xff]
        %v1541 = vld [vmem:[%s806 + $0x1a0] sm:$0xff]
        %v1542 = vld [vmem:[%s806 + $0x1a8] sm:$0xff]
        %v1543 = vld [vmem:[%s806 + $0x1b0] sm:$0xff]
        %v1544 = vld [vmem:[%s806 + $0x1b8] sm:$0xff]
        %v1545 = vld [vmem:[%s806 + $0x1c0] sm:$0xff]
        %v1546 = vld [vmem:[%s806 + $0x1c8] sm:$0xff]
        %v1547 = vld [vmem:[%s806 + $0x1d0] sm:$0xff]
        %v1548 = vld [vmem:[%s806 + $0x1d8] sm:$0xff]
        %v1549 = vld [vmem:[%s806 + $0x1e0] sm:$0xff]
        %v1550 = vld [vmem:[%s806 + $0x1e8] sm:$0xff]
        %v1551 = vld [vmem:[%s806 + $0x1f0] sm:$0xff]
        %v1552 = vld [vmem:[%s806 + $0x1f8] sm:$0xff]
        %v1553 = vld [vmem:[%s806 + $0x200] sm:$0xff]
        %v1554 = vld [vmem:[%s806 + $0x208] sm:$0xff]
        %v1555 = vld [vmem:[%s806 + $0x210] sm:$0xff]
        %v1556 = vld [vmem:[%s806 + $0x218] sm:$0xff]
        %v1557 = vld [vmem:[%s806 + $0x220] sm:$0xff]
        %v1558 = vld [vmem:[%s806 + $0x228] sm:$0xff]
        %v1559 = vld [vmem:[%s806 + $0x230] sm:$0xff]
        %v1560 = vld [vmem:[%s806 + $0x238] sm:$0xff]
        %v1561 = vld [vmem:[%s806 + $0x240] sm:$0xff]
        %v1562 = vld [vmem:[%s806 + $0x248] sm:$0xff]
        %v1563 = vld [vmem:[%s806 + $0x250] sm:$0xff]
        %v1564 = vld [vmem:[%s806 + $0x258] sm:$0xff]
        %v1565 = vld [vmem:[%s806 + $0x260] sm:$0xff]
        %v1566 = vld [vmem:[%s806 + $0x268] sm:$0xff]
        %v1567 = vld [vmem:[%s806 + $0x270] sm:$0xff]
        %v1568 = vld [vmem:[%s806 + $0x278] sm:$0xff]
        %v1569 = vld [vmem:[%s806 + $0x280] sm:$0xff]
        %v1570 = vld [vmem:[%s806 + $0x288] sm:$0xff]
        %v1571 = vld [vmem:[%s806 + $0x290] sm:$0xff]
        %v1572 = vld [vmem:[%s806 + $0x298] sm:$0xff]
        %v1573 = vld [vmem:[%s806 + $0x2a0] sm:$0xff]
        %v1574 = vld [vmem:[%s806 + $0x2a8] sm:$0xff]
        %v1575 = vld [vmem:[%s806 + $0x2b0] sm:$0xff]
        %v1576 = vld [vmem:[%s806 + $0x2b8] sm:$0xff]
        %v1577 = vld [vmem:[%s806 + $0x2c0] sm:$0xff]
        %v1578 = vld [vmem:[%s806 + $0x2c8] sm:$0xff]
        %v1579 = vld [vmem:[%s806 + $0x2d0] sm:$0xff]
        %v1580 = vld [vmem:[%s806 + $0x2d8] sm:$0xff]
        %v1581 = vld [vmem:[%s806 + $0x2e0] sm:$0xff]
        %v1582 = vld [vmem:[%s806 + $0x2e8] sm:$0xff]
        %v1583 = vld [vmem:[%s806 + $0x2f0] sm:$0xff]
        %v1584 = vld [vmem:[%s806 + $0x2f8] sm:$0xff]
        %v1585 = vld [vmem:[%s806 + $0x300] sm:$0xff]
        %v1586 = vld [vmem:[%s806 + $0x308] sm:$0xff]
        %v1587 = vld [vmem:[%s806 + $0x310] sm:$0xff]
        %v1588 = vld [vmem:[%s806 + $0x318] sm:$0xff]
        %v1589 = vld [vmem:[%s806 + $0x320] sm:$0xff]
        %v1590 = vld [vmem:[%s806 + $0x328] sm:$0xff]
        %v1591 = vld [vmem:[%s806 + $0x330] sm:$0xff]
        %v1592 = vld [vmem:[%s806 + $0x338] sm:$0xff]
        %v1593 = vld [vmem:[%s806 + $0x340] sm:$0xff]
        %v1594 = vld [vmem:[%s806 + $0x348] sm:$0xff]
        %v1595 = vld [vmem:[%s806 + $0x350] sm:$0xff]
        %v1596 = vld [vmem:[%s806 + $0x358] sm:$0xff]
        %v1597 = vld [vmem:[%s806 + $0x360] sm:$0xff]
        %v1598 = vld [vmem:[%s806 + $0x368] sm:$0xff]
        %v1599 = vld [vmem:[%s806 + $0x370] sm:$0xff]
        %v1600 = vld [vmem:[%s806 + $0x378] sm:$0xff]
        %v1601 = vld [vmem:[%s806 + $0x380] sm:$0xff]
        %v1602 = vld [vmem:[%s806 + $0x388] sm:$0xff]
        %v1603 = vld [vmem:[%s806 + $0x390] sm:$0xff]
        %v1604 = vld [vmem:[%s806 + $0x398] sm:$0xff]
        %v1605 = vld [vmem:[%s806 + $0x3a0] sm:$0xff]
        %v1606 = vld [vmem:[%s806 + $0x3a8] sm:$0xff]
        %v1607 = vld [vmem:[%s806 + $0x3b0] sm:$0xff]
        %v1608 = vld [vmem:[%s806 + $0x3b8] sm:$0xff]
        %v1609 = vld [vmem:[%s806 + $0x3c0] sm:$0xff]
        %v1610 = vld [vmem:[%s806 + $0x3c8] sm:$0xff]
        %v1611 = vld [vmem:[%s806 + $0x3d0] sm:$0xff]
        %v1612 = vld [vmem:[%s806 + $0x3d8] sm:$0xff]
        %v1613 = vld [vmem:[%s806 + $0x3e0] sm:$0xff]
        %v1614 = vld [vmem:[%s806 + $0x3e8] sm:$0xff]
        %v1615 = vld [vmem:[%s806 + $0x3f0] sm:$0xff]
        %v1616 = vld [vmem:[%s806 + $0x3f8] sm:$0xff]
        %v1617 = vld [vmem:[%s844] sm:$0x3]
        %v1619 = vlaneseq
        %v1620 = vshrl.u32 %v1619, 7
        %v1621 = vsub.s32 0, %v1620
        %v1622 = vrot.slane %v1617, %v1621
        %v1623 = vlaneseq
        %v1624 = vshrl.u32 %v1623, 7
        %v1625 = vsub.s32 1, %v1624
        %v1626 = vrot.slane %v1617, %v1625
        %v1757 = vunpack.c.l.b16 %v1489
        %v1758 = vunpack.c.h.b16 %v1489
        %v1759 = vunpack.c.l.b16 %v1490
        %v1760 = vunpack.c.h.b16 %v1490
        %v1761 = vunpack.c.l.b16 %v1491
        %v1762 = vunpack.c.h.b16 %v1491
        %v1763 = vunpack.c.l.b16 %v1492
        %v1764 = vunpack.c.h.b16 %v1492
        %v1765 = vunpack.c.l.b16 %v1493
        %v1766 = vunpack.c.h.b16 %v1493
        %v1767 = vunpack.c.l.b16 %v1494
        %v1768 = vunpack.c.h.b16 %v1494
        %v1769 = vunpack.c.l.b16 %v1495
        %v1770 = vunpack.c.h.b16 %v1495
        %v1771 = vunpack.c.l.b16 %v1496
        %v1772 = vunpack.c.h.b16 %v1496
        %v1773 = vunpack.c.l.b16 %v1497
        %v1774 = vunpack.c.h.b16 %v1497
        %v1775 = vunpack.c.l.b16 %v1498
        %v1776 = vunpack.c.h.b16 %v1498
        %v1777 = vunpack.c.l.b16 %v1499
        %v1778 = vunpack.c.h.b16 %v1499
        %v1779 = vunpack.c.l.b16 %v1500
        %v1780 = vunpack.c.h.b16 %v1500
        %v1781 = vunpack.c.l.b16 %v1501
        %v1782 = vunpack.c.h.b16 %v1501
        %v1783 = vunpack.c.l.b16 %v1502
        %v1784 = vunpack.c.h.b16 %v1502
        %v1785 = vunpack.c.l.b16 %v1503
        %v1786 = vunpack.c.h.b16 %v1503
        %v1787 = vunpack.c.l.b16 %v1504
        %v1788 = vunpack.c.h.b16 %v1504
        %v1789 = vunpack.c.l.b16 %v1505
        %v1790 = vunpack.c.h.b16 %v1505
        %v1791 = vunpack.c.l.b16 %v1506
        %v1792 = vunpack.c.h.b16 %v1506
        %v1793 = vunpack.c.l.b16 %v1507
        %v1794 = vunpack.c.h.b16 %v1507
        %v1795 = vunpack.c.l.b16 %v1508
        %v1796 = vunpack.c.h.b16 %v1508
        %v1797 = vunpack.c.l.b16 %v1509
        %v1798 = vunpack.c.h.b16 %v1509
        %v1799 = vunpack.c.l.b16 %v1510
        %v1800 = vunpack.c.h.b16 %v1510
        %v1801 = vunpack.c.l.b16 %v1511
        %v1802 = vunpack.c.h.b16 %v1511
        %v1803 = vunpack.c.l.b16 %v1512
        %v1804 = vunpack.c.h.b16 %v1512
        %v1805 = vunpack.c.l.b16 %v1513
        %v1806 = vunpack.c.h.b16 %v1513
        %v1807 = vunpack.c.l.b16 %v1514
        %v1808 = vunpack.c.h.b16 %v1514
        %v1809 = vunpack.c.l.b16 %v1515
        %v1810 = vunpack.c.h.b16 %v1515
        %v1811 = vunpack.c.l.b16 %v1516
        %v1812 = vunpack.c.h.b16 %v1516
        %v1813 = vunpack.c.l.b16 %v1517
        %v1814 = vunpack.c.h.b16 %v1517
        %v1815 = vunpack.c.l.b16 %v1518
        %v1816 = vunpack.c.h.b16 %v1518
        %v1817 = vunpack.c.l.b16 %v1519
        %v1818 = vunpack.c.h.b16 %v1519
        %v1819 = vunpack.c.l.b16 %v1520
        %v1820 = vunpack.c.h.b16 %v1520
        %v1821 = vunpack.c.l.b16 %v1521
        %v1822 = vunpack.c.h.b16 %v1521
        %v1823 = vunpack.c.l.b16 %v1522
        %v1824 = vunpack.c.h.b16 %v1522
        %v1825 = vunpack.c.l.b16 %v1523
        %v1826 = vunpack.c.h.b16 %v1523
        %v1827 = vunpack.c.l.b16 %v1524
        %v1828 = vunpack.c.h.b16 %v1524
        %v1829 = vunpack.c.l.b16 %v1525
        %v1830 = vunpack.c.h.b16 %v1525
        %v1831 = vunpack.c.l.b16 %v1526
        %v1832 = vunpack.c.h.b16 %v1526
        %v1833 = vunpack.c.l.b16 %v1527
        %v1834 = vunpack.c.h.b16 %v1527
        %v1835 = vunpack.c.l.b16 %v1528
        %v1836 = vunpack.c.h.b16 %v1528
        %v1837 = vunpack.c.l.b16 %v1529
        %v1838 = vunpack.c.h.b16 %v1529
        %v1839 = vunpack.c.l.b16 %v1530
        %v1840 = vunpack.c.h.b16 %v1530
        %v1841 = vunpack.c.l.b16 %v1531
        %v1842 = vunpack.c.h.b16 %v1531
        %v1843 = vunpack.c.l.b16 %v1532
        %v1844 = vunpack.c.h.b16 %v1532
        %v1845 = vunpack.c.l.b16 %v1533
        %v1846 = vunpack.c.h.b16 %v1533
        %v1847 = vunpack.c.l.b16 %v1534
        %v1848 = vunpack.c.h.b16 %v1534
        %v1849 = vunpack.c.l.b16 %v1535
        %v1850 = vunpack.c.h.b16 %v1535
        %v1851 = vunpack.c.l.b16 %v1536
        %v1852 = vunpack.c.h.b16 %v1536
        %v1853 = vunpack.c.l.b16 %v1537
        %v1854 = vunpack.c.h.b16 %v1537
        %v1855 = vunpack.c.l.b16 %v1538
        %v1856 = vunpack.c.h.b16 %v1538
        %v1857 = vunpack.c.l.b16 %v1539
        %v1858 = vunpack.c.h.b16 %v1539
        %v1859 = vunpack.c.l.b16 %v1540
        %v1860 = vunpack.c.h.b16 %v1540
        %v1861 = vunpack.c.l.b16 %v1541
        %v1862 = vunpack.c.h.b16 %v1541
        %v1863 = vunpack.c.l.b16 %v1542
        %v1864 = vunpack.c.h.b16 %v1542
        %v1865 = vunpack.c.l.b16 %v1543
        %v1866 = vunpack.c.h.b16 %v1543
        %v1867 = vunpack.c.l.b16 %v1544
        %v1868 = vunpack.c.h.b16 %v1544
        %v1869 = vunpack.c.l.b16 %v1545
        %v1870 = vunpack.c.h.b16 %v1545
        %v1871 = vunpack.c.l.b16 %v1546
        %v1872 = vunpack.c.h.b16 %v1546
        %v1873 = vunpack.c.l.b16 %v1547
        %v1874 = vunpack.c.h.b16 %v1547
        %v1875 = vunpack.c.l.b16 %v1548
        %v1876 = vunpack.c.h.b16 %v1548
        %v1877 = vunpack.c.l.b16 %v1549
        %v1878 = vunpack.c.h.b16 %v1549
        %v1879 = vunpack.c.l.b16 %v1550
        %v1880 = vunpack.c.h.b16 %v1550
        %v1881 = vunpack.c.l.b16 %v1551
        %v1882 = vunpack.c.h.b16 %v1551
        %v1883 = vunpack.c.l.b16 %v1552
        %v1884 = vunpack.c.h.b16 %v1552
        %v1885 = vunpack.c.l.b16 %v1553
        %v1886 = vunpack.c.h.b16 %v1553
        %v1887 = vunpack.c.l.b16 %v1554
        %v1888 = vunpack.c.h.b16 %v1554
        %v1889 = vunpack.c.l.b16 %v1555
        %v1890 = vunpack.c.h.b16 %v1555
        %v1891 = vunpack.c.l.b16 %v1556
        %v1892 = vunpack.c.h.b16 %v1556
        %v1893 = vunpack.c.l.b16 %v1557
        %v1894 = vunpack.c.h.b16 %v1557
        %v1895 = vunpack.c.l.b16 %v1558
        %v1896 = vunpack.c.h.b16 %v1558
        %v1897 = vunpack.c.l.b16 %v1559
        %v1898 = vunpack.c.h.b16 %v1559
        %v1899 = vunpack.c.l.b16 %v1560
        %v1900 = vunpack.c.h.b16 %v1560
        %v1901 = vunpack.c.l.b16 %v1561
        %v1902 = vunpack.c.h.b16 %v1561
        %v1903 = vunpack.c.l.b16 %v1562
        %v1904 = vunpack.c.h.b16 %v1562
        %v1905 = vunpack.c.l.b16 %v1563
        %v1906 = vunpack.c.h.b16 %v1563
        %v1907 = vunpack.c.l.b16 %v1564
        %v1908 = vunpack.c.h.b16 %v1564
        %v1909 = vunpack.c.l.b16 %v1565
        %v1910 = vunpack.c.h.b16 %v1565
        %v1911 = vunpack.c.l.b16 %v1566
        %v1912 = vunpack.c.h.b16 %v1566
        %v1913 = vunpack.c.l.b16 %v1567
        %v1914 = vunpack.c.h.b16 %v1567
        %v1915 = vunpack.c.l.b16 %v1568
        %v1916 = vunpack.c.h.b16 %v1568
        %v1917 = vunpack.c.l.b16 %v1569
        %v1918 = vunpack.c.h.b16 %v1569
        %v1919 = vunpack.c.l.b16 %v1570
        %v1920 = vunpack.c.h.b16 %v1570
        %v1921 = vunpack.c.l.b16 %v1571
        %v1922 = vunpack.c.h.b16 %v1571
        %v1923 = vunpack.c.l.b16 %v1572
        %v1924 = vunpack.c.h.b16 %v1572
        %v1925 = vunpack.c.l.b16 %v1573
        %v1926 = vunpack.c.h.b16 %v1573
        %v1927 = vunpack.c.l.b16 %v1574
        %v1928 = vunpack.c.h.b16 %v1574
        %v1929 = vunpack.c.l.b16 %v1575
        %v1930 = vunpack.c.h.b16 %v1575
        %v1931 = vunpack.c.l.b16 %v1576
        %v1932 = vunpack.c.h.b16 %v1576
        %v1933 = vunpack.c.l.b16 %v1577
        %v1934 = vunpack.c.h.b16 %v1577
        %v1935 = vunpack.c.l.b16 %v1578
        %v1936 = vunpack.c.h.b16 %v1578
        %v1937 = vunpack.c.l.b16 %v1579
        %v1938 = vunpack.c.h.b16 %v1579
        %v1939 = vunpack.c.l.b16 %v1580
        %v1940 = vunpack.c.h.b16 %v1580
        %v1941 = vunpack.c.l.b16 %v1581
        %v1942 = vunpack.c.h.b16 %v1581
        %v1943 = vunpack.c.l.b16 %v1582
        %v1944 = vunpack.c.h.b16 %v1582
        %v1945 = vunpack.c.l.b16 %v1583
        %v1946 = vunpack.c.h.b16 %v1583
        %v1947 = vunpack.c.l.b16 %v1584
        %v1948 = vunpack.c.h.b16 %v1584
        %v1949 = vunpack.c.l.b16 %v1585
        %v1950 = vunpack.c.h.b16 %v1585
        %v1951 = vunpack.c.l.b16 %v1586
        %v1952 = vunpack.c.h.b16 %v1586
        %v1953 = vunpack.c.l.b16 %v1587
        %v1954 = vunpack.c.h.b16 %v1587
        %v1955 = vunpack.c.l.b16 %v1588
        %v1956 = vunpack.c.h.b16 %v1588
        %v1957 = vunpack.c.l.b16 %v1589
        %v1958 = vunpack.c.h.b16 %v1589
        %v1959 = vunpack.c.l.b16 %v1590
        %v1960 = vunpack.c.h.b16 %v1590
        %v1961 = vunpack.c.l.b16 %v1591
        %v1962 = vunpack.c.h.b16 %v1591
        %v1963 = vunpack.c.l.b16 %v1592
        %v1964 = vunpack.c.h.b16 %v1592
        %v1965 = vunpack.c.l.b16 %v1593
        %v1966 = vunpack.c.h.b16 %v1593
        %v1967 = vunpack.c.l.b16 %v1594
        %v1968 = vunpack.c.h.b16 %v1594
        %v1969 = vunpack.c.l.b16 %v1595
        %v1970 = vunpack.c.h.b16 %v1595
        %v1971 = vunpack.c.l.b16 %v1596
        %v1972 = vunpack.c.h.b16 %v1596
        %v1973 = vunpack.c.l.b16 %v1597
        %v1974 = vunpack.c.h.b16 %v1597
        %v1975 = vunpack.c.l.b16 %v1598
        %v1976 = vunpack.c.h.b16 %v1598
        %v1977 = vunpack.c.l.b16 %v1599
        %v1978 = vunpack.c.h.b16 %v1599
        %v1979 = vunpack.c.l.b16 %v1600
        %v1980 = vunpack.c.h.b16 %v1600
        %v1981 = vunpack.c.l.b16 %v1601
        %v1982 = vunpack.c.h.b16 %v1601
        %v1983 = vunpack.c.l.b16 %v1602
        %v1984 = vunpack.c.h.b16 %v1602
        %v1985 = vunpack.c.l.b16 %v1603
        %v1986 = vunpack.c.h.b16 %v1603
        %v1987 = vunpack.c.l.b16 %v1604
        %v1988 = vunpack.c.h.b16 %v1604
        %v1989 = vunpack.c.l.b16 %v1605
        %v1990 = vunpack.c.h.b16 %v1605
        %v1991 = vunpack.c.l.b16 %v1606
        %v1992 = vunpack.c.h.b16 %v1606
        %v1993 = vunpack.c.l.b16 %v1607
        %v1994 = vunpack.c.h.b16 %v1607
        %v1995 = vunpack.c.l.b16 %v1608
        %v1996 = vunpack.c.h.b16 %v1608
        %v1997 = vunpack.c.l.b16 %v1609
        %v1998 = vunpack.c.h.b16 %v1609
        %v1999 = vunpack.c.l.b16 %v1610
        %v2000 = vunpack.c.h.b16 %v1610
        %v2001 = vunpack.c.l.b16 %v1611
        %v2002 = vunpack.c.h.b16 %v1611
        %v2003 = vunpack.c.l.b16 %v1612
        %v2004 = vunpack.c.h.b16 %v1612
        %v2005 = vunpack.c.l.b16 %v1613
        %v2006 = vunpack.c.h.b16 %v1613
        %v2007 = vunpack.c.l.b16 %v1614
        %v2008 = vunpack.c.h.b16 %v1614
        %v2009 = vunpack.c.l.b16 %v1615
        %v2010 = vunpack.c.h.b16 %v1615
        %v2011 = vunpack.c.l.b16 %v1616
        %v2012 = vunpack.c.h.b16 %v1616
        %v2013 = vpack.c.b16 %v1759, %v1757
        %v2014 = vpack.c.b16 %v1760, %v1758
        %v2015 = vpack.c.b16 %v1763, %v1761
        %v2016 = vpack.c.b16 %v1764, %v1762
        %v2017 = vpack.c.b16 %v1767, %v1765
        %v2018 = vpack.c.b16 %v1768, %v1766
        %v2019 = vpack.c.b16 %v1771, %v1769
        %v2020 = vpack.c.b16 %v1772, %v1770
        %v2021 = vpack.c.b16 %v1775, %v1773
        %v2022 = vpack.c.b16 %v1776, %v1774
        %v2023 = vpack.c.b16 %v1779, %v1777
        %v2024 = vpack.c.b16 %v1780, %v1778
        %v2025 = vpack.c.b16 %v1783, %v1781
        %v2026 = vpack.c.b16 %v1784, %v1782
        %v2027 = vpack.c.b16 %v1787, %v1785
        %v2028 = vpack.c.b16 %v1788, %v1786
        %v2029 = vpack.c.b16 %v1791, %v1789
        %v2030 = vpack.c.b16 %v1792, %v1790
        %v2031 = vpack.c.b16 %v1795, %v1793
        %v2032 = vpack.c.b16 %v1796, %v1794
        %v2033 = vpack.c.b16 %v1799, %v1797
        %v2034 = vpack.c.b16 %v1800, %v1798
        %v2035 = vpack.c.b16 %v1803, %v1801
        %v2036 = vpack.c.b16 %v1804, %v1802
        %v2037 = vpack.c.b16 %v1807, %v1805
        %v2038 = vpack.c.b16 %v1808, %v1806
        %v2039 = vpack.c.b16 %v1811, %v1809
        %v2040 = vpack.c.b16 %v1812, %v1810
        %v2041 = vpack.c.b16 %v1815, %v1813
        %v2042 = vpack.c.b16 %v1816, %v1814
        %v2043 = vpack.c.b16 %v1819, %v1817
        %v2044 = vpack.c.b16 %v1820, %v1818
        %v2045 = vpack.c.b16 %v1823, %v1821
        %v2046 = vpack.c.b16 %v1824, %v1822
        %v2047 = vpack.c.b16 %v1827, %v1825
        %v2048 = vpack.c.b16 %v1828, %v1826
        %v2049 = vpack.c.b16 %v1831, %v1829
        %v2050 = vpack.c.b16 %v1832, %v1830
        %v2051 = vpack.c.b16 %v1835, %v1833
        %v2052 = vpack.c.b16 %v1836, %v1834
        %v2053 = vpack.c.b16 %v1839, %v1837
        %v2054 = vpack.c.b16 %v1840, %v1838
        %v2055 = vpack.c.b16 %v1843, %v1841
        %v2056 = vpack.c.b16 %v1844, %v1842
        %v2057 = vpack.c.b16 %v1847, %v1845
        %v2058 = vpack.c.b16 %v1848, %v1846
        %v2059 = vpack.c.b16 %v1851, %v1849
        %v2060 = vpack.c.b16 %v1852, %v1850
        %v2061 = vpack.c.b16 %v1855, %v1853
        %v2062 = vpack.c.b16 %v1856, %v1854
        %v2063 = vpack.c.b16 %v1859, %v1857
        %v2064 = vpack.c.b16 %v1860, %v1858
        %v2065 = vpack.c.b16 %v1863, %v1861
        %v2066 = vpack.c.b16 %v1864, %v1862
        %v2067 = vpack.c.b16 %v1867, %v1865
        %v2068 = vpack.c.b16 %v1868, %v1866
        %v2069 = vpack.c.b16 %v1871, %v1869
        %v2070 = vpack.c.b16 %v1872, %v1870
        %v2071 = vpack.c.b16 %v1875, %v1873
        %v2072 = vpack.c.b16 %v1876, %v1874
        %v2073 = vpack.c.b16 %v1879, %v1877
        %v2074 = vpack.c.b16 %v1880, %v1878
        %v2075 = vpack.c.b16 %v1883, %v1881
        %v2076 = vpack.c.b16 %v1884, %v1882
        %v2077 = vpack.c.b16 %v1887, %v1885
        %v2078 = vpack.c.b16 %v1888, %v1886
        %v2079 = vpack.c.b16 %v1891, %v1889
        %v2080 = vpack.c.b16 %v1892, %v1890
        %v2081 = vpack.c.b16 %v1895, %v1893
        %v2082 = vpack.c.b16 %v1896, %v1894
        %v2083 = vpack.c.b16 %v1899, %v1897
        %v2084 = vpack.c.b16 %v1900, %v1898
        %v2085 = vpack.c.b16 %v1903, %v1901
        %v2086 = vpack.c.b16 %v1904, %v1902
        %v2087 = vpack.c.b16 %v1907, %v1905
        %v2088 = vpack.c.b16 %v1908, %v1906
        %v2089 = vpack.c.b16 %v1911, %v1909
        %v2090 = vpack.c.b16 %v1912, %v1910
        %v2091 = vpack.c.b16 %v1915, %v1913
        %v2092 = vpack.c.b16 %v1916, %v1914
        %v2093 = vpack.c.b16 %v1919, %v1917
        %v2094 = vpack.c.b16 %v1920, %v1918
        %v2095 = vpack.c.b16 %v1923, %v1921
        %v2096 = vpack.c.b16 %v1924, %v1922
        %v2097 = vpack.c.b16 %v1927, %v1925
        %v2098 = vpack.c.b16 %v1928, %v1926
        %v2099 = vpack.c.b16 %v1931, %v1929
        %v2100 = vpack.c.b16 %v1932, %v1930
        %v2101 = vpack.c.b16 %v1935, %v1933
        %v2102 = vpack.c.b16 %v1936, %v1934
        %v2103 = vpack.c.b16 %v1939, %v1937
        %v2104 = vpack.c.b16 %v1940, %v1938
        %v2105 = vpack.c.b16 %v1943, %v1941
        %v2106 = vpack.c.b16 %v1944, %v1942
        %v2107 = vpack.c.b16 %v1947, %v1945
        %v2108 = vpack.c.b16 %v1948, %v1946
        %v2109 = vpack.c.b16 %v1951, %v1949
        %v2110 = vpack.c.b16 %v1952, %v1950
        %v2111 = vpack.c.b16 %v1955, %v1953
        %v2112 = vpack.c.b16 %v1956, %v1954
        %v2113 = vpack.c.b16 %v1959, %v1957
        %v2114 = vpack.c.b16 %v1960, %v1958
        %v2115 = vpack.c.b16 %v1963, %v1961
        %v2116 = vpack.c.b16 %v1964, %v1962
        %v2117 = vpack.c.b16 %v1967, %v1965
        %v2118 = vpack.c.b16 %v1968, %v1966
        %v2119 = vpack.c.b16 %v1971, %v1969
        %v2120 = vpack.c.b16 %v1972, %v1970
        %v2121 = vpack.c.b16 %v1975, %v1973
        %v2122 = vpack.c.b16 %v1976, %v1974
        %v2123 = vpack.c.b16 %v1979, %v1977
        %v2124 = vpack.c.b16 %v1980, %v1978
        %v2125 = vpack.c.b16 %v1983, %v1981
        %v2126 = vpack.c.b16 %v1984, %v1982
        %v2127 = vpack.c.b16 %v1987, %v1985
        %v2128 = vpack.c.b16 %v1988, %v1986
        %v2129 = vpack.c.b16 %v1991, %v1989
        %v2130 = vpack.c.b16 %v1992, %v1990
        %v2131 = vpack.c.b16 %v1995, %v1993
        %v2132 = vpack.c.b16 %v1996, %v1994
        %v2133 = vpack.c.b16 %v1999, %v1997
        %v2134 = vpack.c.b16 %v2000, %v1998
        %v2135 = vpack.c.b16 %v2003, %v2001
        %v2136 = vpack.c.b16 %v2004, %v2002
        %v2137 = vpack.c.b16 %v2007, %v2005
        %v2138 = vpack.c.b16 %v2008, %v2006
        %v2139 = vpack.c.b16 %v2011, %v2009
        %v2140 = vpack.c.b16 %v2012, %v2010
        %2269 = vmatprep.subr.bf16.mxu0 %v2014
        %2270 = vmatpush1.bf16.msra.mxu0 %v2013
        %2271 = vmatprep.subr.bf16.mxu0 %v2016
        %2272 = vmatpush1.bf16.msra.mxu0 %v2015
        %2273 = vmatprep.subr.bf16.mxu0 %v2018
        %2274 = vmatpush1.bf16.msra.mxu0 %v2017
        %2275 = vmatprep.subr.bf16.mxu0 %v2020
        %2276 = vmatpush1.bf16.msra.mxu0 %v2019
        %2277 = vmatprep.subr.bf16.mxu0 %v2022
        %2278 = vmatpush1.bf16.msra.mxu0 %v2021
        %2279 = vmatprep.subr.bf16.mxu0 %v2024
        %2280 = vmatpush1.bf16.msra.mxu0 %v2023
        %2281 = vmatprep.subr.bf16.mxu0 %v2026
        %2282 = vmatpush1.bf16.msra.mxu0 %v2025
        %2283 = vmatprep.subr.bf16.mxu0 %v2028
        %2284 = vmatpush1.bf16.msra.mxu0 %v2027
        %2285 = vmatprep.subr.bf16.mxu0 %v2030
        %2286 = vmatpush1.bf16.msra.mxu0 %v2029
        %2287 = vmatprep.subr.bf16.mxu0 %v2032
        %2288 = vmatpush1.bf16.msra.mxu0 %v2031
        %2289 = vmatprep.subr.bf16.mxu0 %v2034
        %2290 = vmatpush1.bf16.msra.mxu0 %v2033
        %2291 = vmatprep.subr.bf16.mxu0 %v2036
        %2292 = vmatpush1.bf16.msra.mxu0 %v2035
        %2293 = vmatprep.subr.bf16.mxu0 %v2038
        %2294 = vmatpush1.bf16.msra.mxu0 %v2037
        %2295 = vmatprep.subr.bf16.mxu0 %v2040
        %2296 = vmatpush1.bf16.msra.mxu0 %v2039
        %2297 = vmatprep.subr.bf16.mxu0 %v2042
        %2298 = vmatpush1.bf16.msra.mxu0 %v2041
        %2299 = vmatprep.subr.bf16.mxu0 %v2044
        %2300 = vmatpush1.bf16.msra.mxu0 %v2043
        %2301 = vmatprep.mubr.bf16.mxu0 %v1482
        %2302 = vmatmul.mubr.bf16.gmra.mrb[0].mxu0 %v1481
        %v2303 = vpop.f32.mrb[0].mxu0
        %v2304 = vadd.f32 %v1622, %v2303
        %v2305 = vpop.f32.mrb[0].mxu0
        %v2306 = vadd.f32 %v1626, %v2305
        %v2307 = vpop.f32.mrb[0].mxu0
        %v2308 = vpop.f32.mrb[0].mxu0
        %2309 = vdwg.mxu0
        %2310 = vmatprep.subr.bf16.mxu0 %v2046
        %2311 = vmatpush1.bf16.msra.mxu0 %v2045
        %2312 = vmatprep.subr.bf16.mxu0 %v2048
        %2313 = vmatpush1.bf16.msra.mxu0 %v2047
        %2314 = vmatprep.subr.bf16.mxu0 %v2050
        %2315 = vmatpush1.bf16.msra.mxu0 %v2049
        %2316 = vmatprep.subr.bf16.mxu0 %v2052
        %2317 = vmatpush1.bf16.msra.mxu0 %v2051
        %2318 = vmatprep.subr.bf16.mxu0 %v2054
        %2319 = vmatpush1.bf16.msra.mxu0 %v2053
        %2320 = vmatprep.subr.bf16.mxu0 %v2056
        %2321 = vmatpush1.bf16.msra.mxu0 %v2055
        %2322 = vmatprep.subr.bf16.mxu0 %v2058
        %2323 = vmatpush1.bf16.msra.mxu0 %v2057
        %2324 = vmatprep.subr.bf16.mxu0 %v2060
        %2325 = vmatpush1.bf16.msra.mxu0 %v2059
        %2326 = vmatprep.subr.bf16.mxu0 %v2062
        %2327 = vmatpush1.bf16.msra.mxu0 %v2061
        %2328 = vmatprep.subr.bf16.mxu0 %v2064
        %2329 = vmatpush1.bf16.msra.mxu0 %v2063
        %2330 = vmatprep.subr.bf16.mxu0 %v2066
        %2331 = vmatpush1.bf16.msra.mxu0 %v2065
        %2332 = vmatprep.subr.bf16.mxu0 %v2068
        %2333 = vmatpush1.bf16.msra.mxu0 %v2067
        %2334 = vmatprep.subr.bf16.mxu0 %v2070
        %2335 = vmatpush1.bf16.msra.mxu0 %v2069
        %2336 = vmatprep.subr.bf16.mxu0 %v2072
        %2337 = vmatpush1.bf16.msra.mxu0 %v2071
        %2338 = vmatprep.subr.bf16.mxu0 %v2074
        %2339 = vmatpush1.bf16.msra.mxu0 %v2073
        %2340 = vmatprep.subr.bf16.mxu0 %v2076
        %2341 = vmatpush1.bf16.msra.mxu0 %v2075
        %2342 = vmatprep.mubr.bf16.mxu0 %v1484
        %2343 = vmatmul.mubr.bf16.gmra.mrb[0].mxu0 %v1483
        %v2344 = vpop.f32.mrb[0].mxu0
        %v2345 = vadd.f32 %v2304, %v2344
        %v2346 = vpop.f32.mrb[0].mxu0
        %v2347 = vadd.f32 %v2306, %v2346
        %v2348 = vpop.f32.mrb[0].mxu0
        %v2349 = vpop.f32.mrb[0].mxu0
        %2350 = vdwg.mxu0
        %2351 = vmatprep.subr.bf16.mxu0 %v2078
        %2352 = vmatpush1.bf16.msra.mxu0 %v2077
        %2353 = vmatprep.subr.bf16.mxu0 %v2080
        %2354 = vmatpush1.bf16.msra.mxu0 %v2079
        %2355 = vmatprep.subr.bf16.mxu0 %v2082
        %2356 = vmatpush1.bf16.msra.mxu0 %v2081
        %2357 = vmatprep.subr.bf16.mxu0 %v2084
        %2358 = vmatpush1.bf16.msra.mxu0 %v2083
        %2359 = vmatprep.subr.bf16.mxu0 %v2086
        %2360 = vmatpush1.bf16.msra.mxu0 %v2085
        %2361 = vmatprep.subr.bf16.mxu0 %v2088
        %2362 = vmatpush1.bf16.msra.mxu0 %v2087
        %2363 = vmatprep.subr.bf16.mxu0 %v2090
        %2364 = vmatpush1.bf16.msra.mxu0 %v2089
        %2365 = vmatprep.subr.bf16.mxu0 %v2092
        %2366 = vmatpush1.bf16.msra.mxu0 %v2091
        %2367 = vmatprep.subr.bf16.mxu0 %v2094
        %2368 = vmatpush1.bf16.msra.mxu0 %v2093
        %2369 = vmatprep.subr.bf16.mxu0 %v2096
        %2370 = vmatpush1.bf16.msra.mxu0 %v2095
        %2371 = vmatprep.subr.bf16.mxu0 %v2098
        %2372 = vmatpush1.bf16.msra.mxu0 %v2097
        %2373 = vmatprep.subr.bf16.mxu0 %v2100
        %2374 = vmatpush1.bf16.msra.mxu0 %v2099
        %2375 = vmatprep.subr.bf16.mxu0 %v2102
        %2376 = vmatpush1.bf16.msra.mxu0 %v2101
        %2377 = vmatprep.subr.bf16.mxu0 %v2104
        %2378 = vmatpush1.bf16.msra.mxu0 %v2103
        %2379 = vmatprep.subr.bf16.mxu0 %v2106
        %2380 = vmatpush1.bf16.msra.mxu0 %v2105
        %2381 = vmatprep.subr.bf16.mxu0 %v2108
        %2382 = vmatpush1.bf16.msra.mxu0 %v2107
        %2383 = vmatprep.mubr.bf16.mxu0 %v1486
        %2384 = vmatmul.mubr.bf16.gmra.mrb[0].mxu0 %v1485
        %v2385 = vpop.f32.mrb[0].mxu0
        %v2386 = vadd.f32 %v2345, %v2385
        %v2387 = vpop.f32.mrb[0].mxu0
        %v2388 = vadd.f32 %v2347, %v2387
        %v2389 = vpop.f32.mrb[0].mxu0
        %v2390 = vpop.f32.mrb[0].mxu0
        %2391 = vdwg.mxu0
        %2392 = vmatprep.subr.bf16.mxu0 %v2110
        %2393 = vmatpush1.bf16.msra.mxu0 %v2109
        %2394 = vmatprep.subr.bf16.mxu0 %v2112
        %2395 = vmatpush1.bf16.msra.mxu0 %v2111
        %2396 = vmatprep.subr.bf16.mxu0 %v2114
        %2397 = vmatpush1.bf16.msra.mxu0 %v2113
        %2398 = vmatprep.subr.bf16.mxu0 %v2116
        %2399 = vmatpush1.bf16.msra.mxu0 %v2115
        %2400 = vmatprep.subr.bf16.mxu0 %v2118
        %2401 = vmatpush1.bf16.msra.mxu0 %v2117
        %2402 = vmatprep.subr.bf16.mxu0 %v2120
        %2403 = vmatpush1.bf16.msra.mxu0 %v2119
        %2404 = vmatprep.subr.bf16.mxu0 %v2122
        %2405 = vmatpush1.bf16.msra.mxu0 %v2121
        %2406 = vmatprep.subr.bf16.mxu0 %v2124
        %2407 = vmatpush1.bf16.msra.mxu0 %v2123
        %2408 = vmatprep.subr.bf16.mxu0 %v2126
        %2409 = vmatpush1.bf16.msra.mxu0 %v2125
        %2410 = vmatprep.subr.bf16.mxu0 %v2128
        %2411 = vmatpush1.bf16.msra.mxu0 %v2127
        %2412 = vmatprep.subr.bf16.mxu0 %v2130
        %2413 = vmatpush1.bf16.msra.mxu0 %v2129
        %2414 = vmatprep.subr.bf16.mxu0 %v2132
        %2415 = vmatpush1.bf16.msra.mxu0 %v2131
        %2416 = vmatprep.subr.bf16.mxu0 %v2134
        %2417 = vmatpush1.bf16.msra.mxu0 %v2133
        %2418 = vmatprep.subr.bf16.mxu0 %v2136
        %2419 = vmatpush1.bf16.msra.mxu0 %v2135
        %2420 = vmatprep.subr.bf16.mxu0 %v2138
        %2421 = vmatpush1.bf16.msra.mxu0 %v2137
        %2422 = vmatprep.subr.bf16.mxu0 %v2140
        %2423 = vmatpush1.bf16.msra.mxu0 %v2139
        %2424 = vmatprep.mubr.bf16.mxu0 %v1488
        %2425 = vmatmul.mubr.bf16.gmra.mrb[0].mxu0 %v1487
        %v2426 = vpop.f32.mrb[0].mxu0
        %v2427 = vadd.f32 %v2386, %v2426
        %v2428 = vpop.f32.mrb[0].mxu0
        %v2429 = vadd.f32 %v2388, %v2428
        %v2430 = vpop.f32.mrb[0].mxu0
        %v2431 = vpop.f32.mrb[0].mxu0
        %2432 = vdwg.mxu0
        %v2433 = vmax.f32 %v2427, 0.0
        %v2434 = vmax.f32 %v2429, 0.0
        %v2435 = vld [vmem:[#allocation3] sm:$0xff]
        %v2436 = vld [vmem:[#allocation3 + $0x8] sm:$0xff]
        %v2437 = vld [vmem:[#allocation3 + $0x10] sm:$0xff]
        %v2438 = vld [vmem:[#allocation3 + $0x18] sm:$0xff]
        %v2439 = vld [vmem:[#allocation3 + $0x20] sm:$0xff]
        %v2440 = vld [vmem:[#allocation3 + $0x28] sm:$0xff]
        %v2441 = vld [vmem:[#allocation3 + $0x30] sm:$0xff]
        %v2442 = vpack.c.bf16 %v2433, %v2433
        %v2443 = vpack.c.bf16 %v2434, %v2434
        %v2444 = vld [vmem:[%s851] sm:$0xff]
        %v2445 = vld [vmem:[%s851 + $0x8] sm:$0xff]
        %v2446 = vld [vmem:[%s851 + $0x10] sm:$0xff]
        %v2447 = vld [vmem:[%s851 + $0x18] sm:$0xf]
        %v2448 = vld [vmem:[%s851 + $0x1c] sm:$0xff]
        %v2449 = vld [vmem:[%s851 + $0x24] sm:$0xff]
        %v2450 = vld [vmem:[%s851 + $0x2c] sm:$0xff]
        %v2451 = vld [vmem:[%s851 + $0x34] sm:$0xf]
        %v2452 = vld [vmem:[%s851 + $0x38] sm:$0xff]
        %v2453 = vld [vmem:[%s851 + $0x40] sm:$0xff]
        %v2454 = vld [vmem:[%s851 + $0x48] sm:$0xff]
        %v2455 = vld [vmem:[%s851 + $0x50] sm:$0xf]
        %v2456 = vld [vmem:[%s851 + $0x54] sm:$0xff]
        %v2457 = vld [vmem:[%s851 + $0x5c] sm:$0xff]
        %v2458 = vld [vmem:[%s851 + $0x64] sm:$0xff]
        %v2459 = vld [vmem:[%s851 + $0x6c] sm:$0xf]
        %v2460 = vld [vmem:[%s851 + $0x70] sm:$0xff]
        %v2461 = vld [vmem:[%s851 + $0x78] sm:$0xff]
        %v2462 = vld [vmem:[%s851 + $0x80] sm:$0xff]
        %v2463 = vld [vmem:[%s851 + $0x88] sm:$0xf]
        %v2464 = vld [vmem:[%s851 + $0x8c] sm:$0xff]
        %v2465 = vld [vmem:[%s851 + $0x94] sm:$0xff]
        %v2466 = vld [vmem:[%s851 + $0x9c] sm:$0xff]
        %v2467 = vld [vmem:[%s851 + $0xa4] sm:$0xf]
        %v2468 = vld [vmem:[%s851 + $0xa8] sm:$0xff]
        %v2469 = vld [vmem:[%s851 + $0xb0] sm:$0xff]
        %v2470 = vld [vmem:[%s851 + $0xb8] sm:$0xff]
        %v2471 = vld [vmem:[%s851 + $0xc0] sm:$0xf]
        %v2472 = vld [vmem:[%s851 + $0xc4] sm:$0xff]
        %v2473 = vld [vmem:[%s851 + $0xcc] sm:$0xff]
        %v2474 = vld [vmem:[%s851 + $0xd4] sm:$0xff]
        %v2475 = vld [vmem:[%s851 + $0xdc] sm:$0xf]
        %v2476 = vld [vmem:[%s851 + $0xe0] sm:$0xff]
        %v2477 = vld [vmem:[%s851 + $0xe8] sm:$0xff]
        %v2478 = vld [vmem:[%s851 + $0xf0] sm:$0xff]
        %v2479 = vld [vmem:[%s851 + $0xf8] sm:$0xf]
        %v2480 = vld [vmem:[%s851 + $0xfc] sm:$0xff]
        %v2481 = vld [vmem:[%s851 + $0x104] sm:$0xff]
        %v2482 = vld [vmem:[%s851 + $0x10c] sm:$0xff]
        %v2483 = vld [vmem:[%s851 + $0x114] sm:$0xf]
        %v2484 = vld [vmem:[%s851 + $0x118] sm:$0xff]
        %v2485 = vld [vmem:[%s851 + $0x120] sm:$0xff]
        %v2486 = vld [vmem:[%s851 + $0x128] sm:$0xff]
        %v2487 = vld [vmem:[%s851 + $0x130] sm:$0xf]
        %v2488 = vld [vmem:[%s851 + $0x134] sm:$0xff]
        %v2489 = vld [vmem:[%s851 + $0x13c] sm:$0xff]
        %v2490 = vld [vmem:[%s851 + $0x144] sm:$0xff]
        %v2491 = vld [vmem:[%s851 + $0x14c] sm:$0xf]
        %v2492 = vld [vmem:[%s851 + $0x150] sm:$0xff]
        %v2493 = vld [vmem:[%s851 + $0x158] sm:$0xff]
        %v2494 = vld [vmem:[%s851 + $0x160] sm:$0xff]
        %v2495 = vld [vmem:[%s851 + $0x168] sm:$0xf]
        %v2496 = vld [vmem:[%s851 + $0x16c] sm:$0xff]
        %v2497 = vld [vmem:[%s851 + $0x174] sm:$0xff]
        %v2498 = vld [vmem:[%s851 + $0x17c] sm:$0xff]
        %v2499 = vld [vmem:[%s851 + $0x184] sm:$0xf]
        %v2500 = vld [vmem:[%s851 + $0x188] sm:$0xff]
        %v2501 = vld [vmem:[%s851 + $0x190] sm:$0xff]
        %v2502 = vld [vmem:[%s851 + $0x198] sm:$0xff]
        %v2503 = vld [vmem:[%s851 + $0x1a0] sm:$0xf]
        %v2504 = vld [vmem:[%s851 + $0x1a4] sm:$0xff]
        %v2505 = vld [vmem:[%s851 + $0x1ac] sm:$0xff]
        %v2506 = vld [vmem:[%s851 + $0x1b4] sm:$0xff]
        %v2507 = vld [vmem:[%s851 + $0x1bc] sm:$0xf]
        %v2508 = vld [vmem:[%s851 + $0x1c0] sm:$0xff]
        %v2509 = vld [vmem:[%s851 + $0x1c8] sm:$0xff]
        %v2510 = vld [vmem:[%s851 + $0x1d0] sm:$0xff]
        %v2511 = vld [vmem:[%s851 + $0x1d8] sm:$0xf]
        %v2512 = vld [vmem:[%s851 + $0x1dc] sm:$0xff]
        %v2513 = vld [vmem:[%s851 + $0x1e4] sm:$0xff]
        %v2514 = vld [vmem:[%s851 + $0x1ec] sm:$0xff]
        %v2515 = vld [vmem:[%s851 + $0x1f4] sm:$0xf]
        %v2516 = vld [vmem:[%s851 + $0x1f8] sm:$0xff]
        %v2517 = vld [vmem:[%s851 + $0x200] sm:$0xff]
        %v2518 = vld [vmem:[%s851 + $0x208] sm:$0xff]
        %v2519 = vld [vmem:[%s851 + $0x210] sm:$0xf]
        %v2520 = vld [vmem:[%s851 + $0x214] sm:$0xff]
        %v2521 = vld [vmem:[%s851 + $0x21c] sm:$0xff]
        %v2522 = vld [vmem:[%s851 + $0x224] sm:$0xff]
        %v2523 = vld [vmem:[%s851 + $0x22c] sm:$0xf]
        %v2524 = vld [vmem:[%s851 + $0x230] sm:$0xff]
        %v2525 = vld [vmem:[%s851 + $0x238] sm:$0xff]
        %v2526 = vld [vmem:[%s851 + $0x240] sm:$0xff]
        %v2527 = vld [vmem:[%s851 + $0x248] sm:$0xf]
        %v2528 = vld [vmem:[%s851 + $0x24c] sm:$0xff]
        %v2529 = vld [vmem:[%s851 + $0x254] sm:$0xff]
        %v2530 = vld [vmem:[%s851 + $0x25c] sm:$0xff]
        %v2531 = vld [vmem:[%s851 + $0x264] sm:$0xf]
        %v2532 = vld [vmem:[%s851 + $0x268] sm:$0xff]
        %v2533 = vld [vmem:[%s851 + $0x270] sm:$0xff]
        %v2534 = vld [vmem:[%s851 + $0x278] sm:$0xff]
        %v2535 = vld [vmem:[%s851 + $0x280] sm:$0xf]
        %v2536 = vld [vmem:[%s851 + $0x284] sm:$0xff]
        %v2537 = vld [vmem:[%s851 + $0x28c] sm:$0xff]
        %v2538 = vld [vmem:[%s851 + $0x294] sm:$0xff]
        %v2539 = vld [vmem:[%s851 + $0x29c] sm:$0xf]
        %v2540 = vld [vmem:[%s851 + $0x2a0] sm:$0xff]
        %v2541 = vld [vmem:[%s851 + $0x2a8] sm:$0xff]
        %v2542 = vld [vmem:[%s851 + $0x2b0] sm:$0xff]
        %v2543 = vld [vmem:[%s851 + $0x2b8] sm:$0xf]
        %v2544 = vld [vmem:[%s851 + $0x2bc] sm:$0xff]
        %v2545 = vld [vmem:[%s851 + $0x2c4] sm:$0xff]
        %v2546 = vld [vmem:[%s851 + $0x2cc] sm:$0xff]
        %v2547 = vld [vmem:[%s851 + $0x2d4] sm:$0xf]
        %v2548 = vld [vmem:[%s851 + $0x2d8] sm:$0xff]
        %v2549 = vld [vmem:[%s851 + $0x2e0] sm:$0xff]
        %v2550 = vld [vmem:[%s851 + $0x2e8] sm:$0xff]
        %v2551 = vld [vmem:[%s851 + $0x2f0] sm:$0xf]
        %v2552 = vld [vmem:[%s851 + $0x2f4] sm:$0xff]
        %v2553 = vld [vmem:[%s851 + $0x2fc] sm:$0xff]
        %v2554 = vld [vmem:[%s851 + $0x304] sm:$0xff]
        %v2555 = vld [vmem:[%s851 + $0x30c] sm:$0xf]
        %v2556 = vld [vmem:[%s851 + $0x310] sm:$0xff]
        %v2557 = vld [vmem:[%s851 + $0x318] sm:$0xff]
        %v2558 = vld [vmem:[%s851 + $0x320] sm:$0xff]
        %v2559 = vld [vmem:[%s851 + $0x328] sm:$0xf]
        %v2560 = vld [vmem:[%s851 + $0x32c] sm:$0xff]
        %v2561 = vld [vmem:[%s851 + $0x334] sm:$0xff]
        %v2562 = vld [vmem:[%s851 + $0x33c] sm:$0xff]
        %v2563 = vld [vmem:[%s851 + $0x344] sm:$0xf]
        %v2564 = vld [vmem:[%s851 + $0x348] sm:$0xff]
        %v2565 = vld [vmem:[%s851 + $0x350] sm:$0xff]
        %v2566 = vld [vmem:[%s851 + $0x358] sm:$0xff]
        %v2567 = vld [vmem:[%s851 + $0x360] sm:$0xf]
        %v2568 = vld [vmem:[%s851 + $0x364] sm:$0xff]
        %v2569 = vld [vmem:[%s851 + $0x36c] sm:$0xff]
        %v2570 = vld [vmem:[%s851 + $0x374] sm:$0xff]
        %v2571 = vld [vmem:[%s851 + $0x37c] sm:$0xf]
        %v2700 = vunpack.c.l.b16 %v2444
        %v2701 = vunpack.c.h.b16 %v2444
        %v2702 = vunpack.c.l.b16 %v2445
        %v2703 = vunpack.c.h.b16 %v2445
        %v2704 = vunpack.c.l.b16 %v2446
        %v2705 = vunpack.c.h.b16 %v2446
        %v2706 = vunpack.c.l.b16 %v2447
        %v2707 = vunpack.c.l.b16 %v2448
        %v2708 = vunpack.c.h.b16 %v2448
        %v2709 = vunpack.c.l.b16 %v2449
        %v2710 = vunpack.c.h.b16 %v2449
        %v2711 = vunpack.c.l.b16 %v2450
        %v2712 = vunpack.c.h.b16 %v2450
        %v2713 = vunpack.c.l.b16 %v2451
        %v2714 = vunpack.c.l.b16 %v2452
        %v2715 = vunpack.c.h.b16 %v2452
        %v2716 = vunpack.c.l.b16 %v2453
        %v2717 = vunpack.c.h.b16 %v2453
        %v2718 = vunpack.c.l.b16 %v2454
        %v2719 = vunpack.c.h.b16 %v2454
        %v2720 = vunpack.c.l.b16 %v2455
        %v2721 = vunpack.c.l.b16 %v2456
        %v2722 = vunpack.c.h.b16 %v2456
        %v2723 = vunpack.c.l.b16 %v2457
        %v2724 = vunpack.c.h.b16 %v2457
        %v2725 = vunpack.c.l.b16 %v2458
        %v2726 = vunpack.c.h.b16 %v2458
        %v2727 = vunpack.c.l.b16 %v2459
        %v2728 = vunpack.c.l.b16 %v2460
        %v2729 = vunpack.c.h.b16 %v2460
        %v2730 = vunpack.c.l.b16 %v2461
        %v2731 = vunpack.c.h.b16 %v2461
        %v2732 = vunpack.c.l.b16 %v2462
        %v2733 = vunpack.c.h.b16 %v2462
        %v2734 = vunpack.c.l.b16 %v2463
        %v2735 = vunpack.c.l.b16 %v2464
        %v2736 = vunpack.c.h.b16 %v2464
        %v2737 = vunpack.c.l.b16 %v2465
        %v2738 = vunpack.c.h.b16 %v2465
        %v2739 = vunpack.c.l.b16 %v2466
        %v2740 = vunpack.c.h.b16 %v2466
        %v2741 = vunpack.c.l.b16 %v2467
        %v2742 = vunpack.c.l.b16 %v2468
        %v2743 = vunpack.c.h.b16 %v2468
        %v2744 = vunpack.c.l.b16 %v2469
        %v2745 = vunpack.c.h.b16 %v2469
        %v2746 = vunpack.c.l.b16 %v2470
        %v2747 = vunpack.c.h.b16 %v2470
        %v2748 = vunpack.c.l.b16 %v2471
        %v2749 = vunpack.c.l.b16 %v2472
        %v2750 = vunpack.c.h.b16 %v2472
        %v2751 = vunpack.c.l.b16 %v2473
        %v2752 = vunpack.c.h.b16 %v2473
        %v2753 = vunpack.c.l.b16 %v2474
        %v2754 = vunpack.c.h.b16 %v2474
        %v2755 = vunpack.c.l.b16 %v2475
        %v2756 = vunpack.c.l.b16 %v2476
        %v2757 = vunpack.c.h.b16 %v2476
        %v2758 = vunpack.c.l.b16 %v2477
        %v2759 = vunpack.c.h.b16 %v2477
        %v2760 = vunpack.c.l.b16 %v2478
        %v2761 = vunpack.c.h.b16 %v2478
        %v2762 = vunpack.c.l.b16 %v2479
        %v2763 = vunpack.c.l.b16 %v2480
        %v2764 = vunpack.c.h.b16 %v2480
        %v2765 = vunpack.c.l.b16 %v2481
        %v2766 = vunpack.c.h.b16 %v2481
        %v2767 = vunpack.c.l.b16 %v2482
        %v2768 = vunpack.c.h.b16 %v2482
        %v2769 = vunpack.c.l.b16 %v2483
        %v2770 = vunpack.c.l.b16 %v2484
        %v2771 = vunpack.c.h.b16 %v2484
        %v2772 = vunpack.c.l.b16 %v2485
        %v2773 = vunpack.c.h.b16 %v2485
        %v2774 = vunpack.c.l.b16 %v2486
        %v2775 = vunpack.c.h.b16 %v2486
        %v2776 = vunpack.c.l.b16 %v2487
        %v2777 = vunpack.c.l.b16 %v2488
        %v2778 = vunpack.c.h.b16 %v2488
        %v2779 = vunpack.c.l.b16 %v2489
        %v2780 = vunpack.c.h.b16 %v2489
        %v2781 = vunpack.c.l.b16 %v2490
        %v2782 = vunpack.c.h.b16 %v2490
        %v2783 = vunpack.c.l.b16 %v2491
        %v2784 = vunpack.c.l.b16 %v2492
        %v2785 = vunpack.c.h.b16 %v2492
        %v2786 = vunpack.c.l.b16 %v2493
        %v2787 = vunpack.c.h.b16 %v2493
        %v2788 = vunpack.c.l.b16 %v2494
        %v2789 = vunpack.c.h.b16 %v2494
        %v2790 = vunpack.c.l.b16 %v2495
        %v2791 = vunpack.c.l.b16 %v2496
        %v2792 = vunpack.c.h.b16 %v2496
        %v2793 = vunpack.c.l.b16 %v2497
        %v2794 = vunpack.c.h.b16 %v2497
        %v2795 = vunpack.c.l.b16 %v2498
        %v2796 = vunpack.c.h.b16 %v2498
        %v2797 = vunpack.c.l.b16 %v2499
        %v2798 = vunpack.c.l.b16 %v2500
        %v2799 = vunpack.c.h.b16 %v2500
        %v2800 = vunpack.c.l.b16 %v2501
        %v2801 = vunpack.c.h.b16 %v2501
        %v2802 = vunpack.c.l.b16 %v2502
        %v2803 = vunpack.c.h.b16 %v2502
        %v2804 = vunpack.c.l.b16 %v2503
        %v2805 = vunpack.c.l.b16 %v2504
        %v2806 = vunpack.c.h.b16 %v2504
        %v2807 = vunpack.c.l.b16 %v2505
        %v2808 = vunpack.c.h.b16 %v2505
        %v2809 = vunpack.c.l.b16 %v2506
        %v2810 = vunpack.c.h.b16 %v2506
        %v2811 = vunpack.c.l.b16 %v2507
        %v2812 = vunpack.c.l.b16 %v2508
        %v2813 = vunpack.c.h.b16 %v2508
        %v2814 = vunpack.c.l.b16 %v2509
        %v2815 = vunpack.c.h.b16 %v2509
        %v2816 = vunpack.c.l.b16 %v2510
        %v2817 = vunpack.c.h.b16 %v2510
        %v2818 = vunpack.c.l.b16 %v2511
        %v2819 = vunpack.c.l.b16 %v2512
        %v2820 = vunpack.c.h.b16 %v2512
        %v2821 = vunpack.c.l.b16 %v2513
        %v2822 = vunpack.c.h.b16 %v2513
        %v2823 = vunpack.c.l.b16 %v2514
        %v2824 = vunpack.c.h.b16 %v2514
        %v2825 = vunpack.c.l.b16 %v2515
        %v2826 = vunpack.c.l.b16 %v2516
        %v2827 = vunpack.c.h.b16 %v2516
        %v2828 = vunpack.c.l.b16 %v2517
        %v2829 = vunpack.c.h.b16 %v2517
        %v2830 = vunpack.c.l.b16 %v2518
        %v2831 = vunpack.c.h.b16 %v2518
        %v2832 = vunpack.c.l.b16 %v2519
        %v2833 = vunpack.c.l.b16 %v2520
        %v2834 = vunpack.c.h.b16 %v2520
        %v2835 = vunpack.c.l.b16 %v2521
        %v2836 = vunpack.c.h.b16 %v2521
        %v2837 = vunpack.c.l.b16 %v2522
        %v2838 = vunpack.c.h.b16 %v2522
        %v2839 = vunpack.c.l.b16 %v2523
        %v2840 = vunpack.c.l.b16 %v2524
        %v2841 = vunpack.c.h.b16 %v2524
        %v2842 = vunpack.c.l.b16 %v2525
        %v2843 = vunpack.c.h.b16 %v2525
        %v2844 = vunpack.c.l.b16 %v2526
        %v2845 = vunpack.c.h.b16 %v2526
        %v2846 = vunpack.c.l.b16 %v2527
        %v2847 = vunpack.c.l.b16 %v2528
        %v2848 = vunpack.c.h.b16 %v2528
        %v2849 = vunpack.c.l.b16 %v2529
        %v2850 = vunpack.c.h.b16 %v2529
        %v2851 = vunpack.c.l.b16 %v2530
        %v2852 = vunpack.c.h.b16 %v2530
        %v2853 = vunpack.c.l.b16 %v2531
        %v2854 = vunpack.c.l.b16 %v2532
        %v2855 = vunpack.c.h.b16 %v2532
        %v2856 = vunpack.c.l.b16 %v2533
        %v2857 = vunpack.c.h.b16 %v2533
        %v2858 = vunpack.c.l.b16 %v2534
        %v2859 = vunpack.c.h.b16 %v2534
        %v2860 = vunpack.c.l.b16 %v2535
        %v2861 = vunpack.c.l.b16 %v2536
        %v2862 = vunpack.c.h.b16 %v2536
        %v2863 = vunpack.c.l.b16 %v2537
        %v2864 = vunpack.c.h.b16 %v2537
        %v2865 = vunpack.c.l.b16 %v2538
        %v2866 = vunpack.c.h.b16 %v2538
        %v2867 = vunpack.c.l.b16 %v2539
        %v2868 = vunpack.c.l.b16 %v2540
        %v2869 = vunpack.c.h.b16 %v2540
        %v2870 = vunpack.c.l.b16 %v2541
        %v2871 = vunpack.c.h.b16 %v2541
        %v2872 = vunpack.c.l.b16 %v2542
        %v2873 = vunpack.c.h.b16 %v2542
        %v2874 = vunpack.c.l.b16 %v2543
        %v2875 = vunpack.c.l.b16 %v2544
        %v2876 = vunpack.c.h.b16 %v2544
        %v2877 = vunpack.c.l.b16 %v2545
        %v2878 = vunpack.c.h.b16 %v2545
        %v2879 = vunpack.c.l.b16 %v2546
        %v2880 = vunpack.c.h.b16 %v2546
        %v2881 = vunpack.c.l.b16 %v2547
        %v2882 = vunpack.c.l.b16 %v2548
        %v2883 = vunpack.c.h.b16 %v2548
        %v2884 = vunpack.c.l.b16 %v2549
        %v2885 = vunpack.c.h.b16 %v2549
        %v2886 = vunpack.c.l.b16 %v2550
        %v2887 = vunpack.c.h.b16 %v2550
        %v2888 = vunpack.c.l.b16 %v2551
        %v2889 = vunpack.c.l.b16 %v2552
        %v2890 = vunpack.c.h.b16 %v2552
        %v2891 = vunpack.c.l.b16 %v2553
        %v2892 = vunpack.c.h.b16 %v2553
        %v2893 = vunpack.c.l.b16 %v2554
        %v2894 = vunpack.c.h.b16 %v2554
        %v2895 = vunpack.c.l.b16 %v2555
        %v2896 = vunpack.c.l.b16 %v2556
        %v2897 = vunpack.c.h.b16 %v2556
        %v2898 = vunpack.c.l.b16 %v2557
        %v2899 = vunpack.c.h.b16 %v2557
        %v2900 = vunpack.c.l.b16 %v2558
        %v2901 = vunpack.c.h.b16 %v2558
        %v2902 = vunpack.c.l.b16 %v2559
        %v2903 = vunpack.c.l.b16 %v2560
        %v2904 = vunpack.c.h.b16 %v2560
        %v2905 = vunpack.c.l.b16 %v2561
        %v2906 = vunpack.c.h.b16 %v2561
        %v2907 = vunpack.c.l.b16 %v2562
        %v2908 = vunpack.c.h.b16 %v2562
        %v2909 = vunpack.c.l.b16 %v2563
        %v2910 = vunpack.c.l.b16 %v2564
        %v2911 = vunpack.c.h.b16 %v2564
        %v2912 = vunpack.c.l.b16 %v2565
        %v2913 = vunpack.c.h.b16 %v2565
        %v2914 = vunpack.c.l.b16 %v2566
        %v2915 = vunpack.c.h.b16 %v2566
        %v2916 = vunpack.c.l.b16 %v2567
        %v2917 = vunpack.c.l.b16 %v2568
        %v2918 = vunpack.c.h.b16 %v2568
        %v2919 = vunpack.c.l.b16 %v2569
        %v2920 = vunpack.c.h.b16 %v2569
        %v2921 = vunpack.c.l.b16 %v2570
        %v2922 = vunpack.c.h.b16 %v2570
        %v2923 = vunpack.c.l.b16 %v2571
        %v2924 = vpack.c.b16 %v2707, %v2700
        %v2925 = vpack.c.b16 %v2708, %v2701
        %v2926 = vpack.c.b16 %v2709, %v2702
        %v2927 = vpack.c.b16 %v2710, %v2703
        %v2928 = vpack.c.b16 %v2711, %v2704
        %v2929 = vpack.c.b16 %v2712, %v2705
        %v2930 = vpack.c.b16 %v2713, %v2706
        %v2931 = vpack.c.b16 %v2721, %v2714
        %v2932 = vpack.c.b16 %v2722, %v2715
        %v2933 = vpack.c.b16 %v2723, %v2716
        %v2934 = vpack.c.b16 %v2724, %v2717
        %v2935 = vpack.c.b16 %v2725, %v2718
        %v2936 = vpack.c.b16 %v2726, %v2719
        %v2937 = vpack.c.b16 %v2727, %v2720
        %v2938 = vpack.c.b16 %v2735, %v2728
        %v2939 = vpack.c.b16 %v2736, %v2729
        %v2940 = vpack.c.b16 %v2737, %v2730
        %v2941 = vpack.c.b16 %v2738, %v2731
        %v2942 = vpack.c.b16 %v2739, %v2732
        %v2943 = vpack.c.b16 %v2740, %v2733
        %v2944 = vpack.c.b16 %v2741, %v2734
        %v2945 = vpack.c.b16 %v2749, %v2742
        %v2946 = vpack.c.b16 %v2750, %v2743
        %v2947 = vpack.c.b16 %v2751, %v2744
        %v2948 = vpack.c.b16 %v2752, %v2745
        %v2949 = vpack.c.b16 %v2753, %v2746
        %v2950 = vpack.c.b16 %v2754, %v2747
        %v2951 = vpack.c.b16 %v2755, %v2748
        %v2952 = vpack.c.b16 %v2763, %v2756
        %v2953 = vpack.c.b16 %v2764, %v2757
        %v2954 = vpack.c.b16 %v2765, %v2758
        %v2955 = vpack.c.b16 %v2766, %v2759
        %v2956 = vpack.c.b16 %v2767, %v2760
        %v2957 = vpack.c.b16 %v2768, %v2761
        %v2958 = vpack.c.b16 %v2769, %v2762
        %v2959 = vpack.c.b16 %v2777, %v2770
        %v2960 = vpack.c.b16 %v2778, %v2771
        %v2961 = vpack.c.b16 %v2779, %v2772
        %v2962 = vpack.c.b16 %v2780, %v2773
        %v2963 = vpack.c.b16 %v2781, %v2774
        %v2964 = vpack.c.b16 %v2782, %v2775
        %v2965 = vpack.c.b16 %v2783, %v2776
        %v2966 = vpack.c.b16 %v2791, %v2784
        %v2967 = vpack.c.b16 %v2792, %v2785
        %v2968 = vpack.c.b16 %v2793, %v2786
        %v2969 = vpack.c.b16 %v2794, %v2787
        %v2970 = vpack.c.b16 %v2795, %v2788
        %v2971 = vpack.c.b16 %v2796, %v2789
        %v2972 = vpack.c.b16 %v2797, %v2790
        %v2973 = vpack.c.b16 %v2805, %v2798
        %v2974 = vpack.c.b16 %v2806, %v2799
        %v2975 = vpack.c.b16 %v2807, %v2800
        %v2976 = vpack.c.b16 %v2808, %v2801
        %v2977 = vpack.c.b16 %v2809, %v2802
        %v2978 = vpack.c.b16 %v2810, %v2803
        %v2979 = vpack.c.b16 %v2811, %v2804
        %v2980 = vpack.c.b16 %v2819, %v2812
        %v2981 = vpack.c.b16 %v2820, %v2813
        %v2982 = vpack.c.b16 %v2821, %v2814
        %v2983 = vpack.c.b16 %v2822, %v2815
        %v2984 = vpack.c.b16 %v2823, %v2816
        %v2985 = vpack.c.b16 %v2824, %v2817
        %v2986 = vpack.c.b16 %v2825, %v2818
        %v2987 = vpack.c.b16 %v2833, %v2826
        %v2988 = vpack.c.b16 %v2834, %v2827
        %v2989 = vpack.c.b16 %v2835, %v2828
        %v2990 = vpack.c.b16 %v2836, %v2829
        %v2991 = vpack.c.b16 %v2837, %v2830
        %v2992 = vpack.c.b16 %v2838, %v2831
        %v2993 = vpack.c.b16 %v2839, %v2832
        %v2994 = vpack.c.b16 %v2847, %v2840
        %v2995 = vpack.c.b16 %v2848, %v2841
        %v2996 = vpack.c.b16 %v2849, %v2842
        %v2997 = vpack.c.b16 %v2850, %v2843
        %v2998 = vpack.c.b16 %v2851, %v2844
        %v2999 = vpack.c.b16 %v2852, %v2845
        %v3000 = vpack.c.b16 %v2853, %v2846
        %v3001 = vpack.c.b16 %v2861, %v2854
        %v3002 = vpack.c.b16 %v2862, %v2855
        %v3003 = vpack.c.b16 %v2863, %v2856
        %v3004 = vpack.c.b16 %v2864, %v2857
        %v3005 = vpack.c.b16 %v2865, %v2858
        %v3006 = vpack.c.b16 %v2866, %v2859
        %v3007 = vpack.c.b16 %v2867, %v2860
        %v3008 = vpack.c.b16 %v2875, %v2868
        %v3009 = vpack.c.b16 %v2876, %v2869
        %v3010 = vpack.c.b16 %v2877, %v2870
        %v3011 = vpack.c.b16 %v2878, %v2871
        %v3012 = vpack.c.b16 %v2879, %v2872
        %v3013 = vpack.c.b16 %v2880, %v2873
        %v3014 = vpack.c.b16 %v2881, %v2874
        %v3015 = vpack.c.b16 %v2889, %v2882
        %v3016 = vpack.c.b16 %v2890, %v2883
        %v3017 = vpack.c.b16 %v2891, %v2884
        %v3018 = vpack.c.b16 %v2892, %v2885
        %v3019 = vpack.c.b16 %v2893, %v2886
        %v3020 = vpack.c.b16 %v2894, %v2887
        %v3021 = vpack.c.b16 %v2895, %v2888
        %v3022 = vpack.c.b16 %v2903, %v2896
        %v3023 = vpack.c.b16 %v2904, %v2897
        %v3024 = vpack.c.b16 %v2905, %v2898
        %v3025 = vpack.c.b16 %v2906, %v2899
        %v3026 = vpack.c.b16 %v2907, %v2900
        %v3027 = vpack.c.b16 %v2908, %v2901
        %v3028 = vpack.c.b16 %v2909, %v2902
        %v3029 = vpack.c.b16 %v2917, %v2910
        %v3030 = vpack.c.b16 %v2918, %v2911
        %v3031 = vpack.c.b16 %v2919, %v2912
        %v3032 = vpack.c.b16 %v2920, %v2913
        %v3033 = vpack.c.b16 %v2921, %v2914
        %v3034 = vpack.c.b16 %v2922, %v2915
        %v3035 = vpack.c.b16 %v2923, %v2916
        %3148 = vmatprep.subr.bf16.mxu0 %v2925
        %3149 = vmatpush1.bf16.msra.mxu0 %v2924
        %3150 = vmatprep.subr.bf16.mxu0 %v2932
        %3151 = vmatpush1.bf16.msra.mxu0 %v2931
        %3152 = vmatprep.subr.bf16.mxu0 %v2939
        %3153 = vmatpush1.bf16.msra.mxu0 %v2938
        %3154 = vmatprep.subr.bf16.mxu0 %v2946
        %3155 = vmatpush1.bf16.msra.mxu0 %v2945
        %3156 = vmatprep.subr.bf16.mxu0 %v2953
        %3157 = vmatpush1.bf16.msra.mxu0 %v2952
        %3158 = vmatprep.subr.bf16.mxu0 %v2960
        %3159 = vmatpush1.bf16.msra.mxu0 %v2959
        %3160 = vmatprep.subr.bf16.mxu0 %v2967
        %3161 = vmatpush1.bf16.msra.mxu0 %v2966
        %3162 = vmatprep.subr.bf16.mxu0 %v2974
        %3163 = vmatpush1.bf16.msra.mxu0 %v2973
        %3164 = vmatprep.subr.bf16.mxu0 %v2981
        %3165 = vmatpush1.bf16.msra.mxu0 %v2980
        %3166 = vmatprep.subr.bf16.mxu0 %v2988
        %3167 = vmatpush1.bf16.msra.mxu0 %v2987
        %3168 = vmatprep.subr.bf16.mxu0 %v2995
        %3169 = vmatpush1.bf16.msra.mxu0 %v2994
        %3170 = vmatprep.subr.bf16.mxu0 %v3002
        %3171 = vmatpush1.bf16.msra.mxu0 %v3001
        %3172 = vmatprep.subr.bf16.mxu0 %v3009
        %3173 = vmatpush1.bf16.msra.mxu0 %v3008
        %3174 = vmatprep.subr.bf16.mxu0 %v3016
        %3175 = vmatpush1.bf16.msra.mxu0 %v3015
        %3176 = vmatprep.subr.bf16.mxu0 %v3023
        %3177 = vmatpush1.bf16.msra.mxu0 %v3022
        %3178 = vmatprep.subr.bf16.mxu0 %v3030
        %3179 = vmatpush1.bf16.msra.mxu0 %v3029
        %3180 = vmatprep.mubr.bf16.mxu0 %v2443
        %3181 = vmatmul.mubr.bf16.gmra.mrb[0].mxu0 %v2442
        %v3182 = vpop.f32.mrb[0].mxu0
        %v3183 = vadd.f32 0.0, %v3182
        %v3184 = vpop.f32.mrb[0].mxu0
        %v3185 = vadd.f32 0.0, %v3184
        %v3186 = vpop.f32.mrb[0].mxu0
        %v3187 = vpop.f32.mrb[0].mxu0
        %3188 = vdwg.mxu0
        %3189 = vmatprep.subr.bf16.mxu0 %v2927
        %3190 = vmatpush1.bf16.msra.mxu0 %v2926
        %3191 = vmatprep.subr.bf16.mxu0 %v2934
        %3192 = vmatpush1.bf16.msra.mxu0 %v2933
        %3193 = vmatprep.subr.bf16.mxu0 %v2941
        %3194 = vmatpush1.bf16.msra.mxu0 %v2940
        %3195 = vmatprep.subr.bf16.mxu0 %v2948
        %3196 = vmatpush1.bf16.msra.mxu0 %v2947
        %3197 = vmatprep.subr.bf16.mxu0 %v2955
        %3198 = vmatpush1.bf16.msra.mxu0 %v2954
        %3199 = vmatprep.subr.bf16.mxu0 %v2962
        %3200 = vmatpush1.bf16.msra.mxu0 %v2961
        %3201 = vmatprep.subr.bf16.mxu0 %v2969
        %3202 = vmatpush1.bf16.msra.mxu0 %v2968
        %3203 = vmatprep.subr.bf16.mxu0 %v2976
        %3204 = vmatpush1.bf16.msra.mxu0 %v2975
        %3205 = vmatprep.subr.bf16.mxu0 %v2983
        %3206 = vmatpush1.bf16.msra.mxu0 %v2982
        %3207 = vmatprep.subr.bf16.mxu0 %v2990
        %3208 = vmatpush1.bf16.msra.mxu0 %v2989
        %3209 = vmatprep.subr.bf16.mxu0 %v2997
        %3210 = vmatpush1.bf16.msra.mxu0 %v2996
        %3211 = vmatprep.subr.bf16.mxu0 %v3004
        %3212 = vmatpush1.bf16.msra.mxu0 %v3003
        %3213 = vmatprep.subr.bf16.mxu0 %v3011
        %3214 = vmatpush1.bf16.msra.mxu0 %v3010
        %3215 = vmatprep.subr.bf16.mxu0 %v3018
        %3216 = vmatpush1.bf16.msra.mxu0 %v3017
        %3217 = vmatprep.subr.bf16.mxu0 %v3025
        %3218 = vmatpush1.bf16.msra.mxu0 %v3024
        %3219 = vmatprep.subr.bf16.mxu0 %v3032
        %3220 = vmatpush1.bf16.msra.mxu0 %v3031
        %3221 = vmatprep.mubr.bf16.mxu0 %v2443
        %3222 = vmatmul.mubr.bf16.gmra.mrb[0].mxu0 %v2442
        %v3223 = vpop.f32.mrb[0].mxu0
        %v3224 = vadd.f32 0.0, %v3223
        %v3225 = vpop.f32.mrb[0].mxu0
        %v3226 = vadd.f32 0.0, %v3225
        %v3227 = vpop.f32.mrb[0].mxu0
        %v3228 = vpop.f32.mrb[0].mxu0
        %3229 = vdwg.mxu0
        %3230 = vmatprep.subr.bf16.mxu0 %v2929
        %3231 = vmatpush1.bf16.msra.mxu0 %v2928
        %3232 = vmatprep.subr.bf16.mxu0 %v2936
        %3233 = vmatpush1.bf16.msra.mxu0 %v2935
        %3234 = vmatprep.subr.bf16.mxu0 %v2943
        %3235 = vmatpush1.bf16.msra.mxu0 %v2942
        %3236 = vmatprep.subr.bf16.mxu0 %v2950
        %3237 = vmatpush1.bf16.msra.mxu0 %v2949
        %3238 = vmatprep.subr.bf16.mxu0 %v2957
        %3239 = vmatpush1.bf16.msra.mxu0 %v2956
        %3240 = vmatprep.subr.bf16.mxu0 %v2964
        %3241 = vmatpush1.bf16.msra.mxu0 %v2963
        %3242 = vmatprep.subr.bf16.mxu0 %v2971
        %3243 = vmatpush1.bf16.msra.mxu0 %v2970
        %3244 = vmatprep.subr.bf16.mxu0 %v2978
        %3245 = vmatpush1.bf16.msra.mxu0 %v2977
        %3246 = vmatprep.subr.bf16.mxu0 %v2985
        %3247 = vmatpush1.bf16.msra.mxu0 %v2984
        %3248 = vmatprep.subr.bf16.mxu0 %v2992
        %3249 = vmatpush1.bf16.msra.mxu0 %v2991
        %3250 = vmatprep.subr.bf16.mxu0 %v2999
        %3251 = vmatpush1.bf16.msra.mxu0 %v2998
        %3252 = vmatprep.subr.bf16.mxu0 %v3006
        %3253 = vmatpush1.bf16.msra.mxu0 %v3005
        %3254 = vmatprep.subr.bf16.mxu0 %v3013
        %3255 = vmatpush1.bf16.msra.mxu0 %v3012
        %3256 = vmatprep.subr.bf16.mxu0 %v3020
        %3257 = vmatpush1.bf16.msra.mxu0 %v3019
        %3258 = vmatprep.subr.bf16.mxu0 %v3027
        %3259 = vmatpush1.bf16.msra.mxu0 %v3026
        %3260 = vmatprep.subr.bf16.mxu0 %v3034
        %3261 = vmatpush1.bf16.msra.mxu0 %v3033
        %3262 = vmatprep.mubr.bf16.mxu0 %v2443
        %3263 = vmatmul.mubr.bf16.gmra.mrb[0].mxu0 %v2442
        %v3264 = vpop.f32.mrb[0].mxu0
        %v3265 = vadd.f32 0.0, %v3264
        %v3266 = vpop.f32.mrb[0].mxu0
        %v3267 = vadd.f32 0.0, %v3266
        %v3268 = vpop.f32.mrb[0].mxu0
        %v3269 = vpop.f32.mrb[0].mxu0
        %3270 = vdwg.mxu0
        %3271 = vmatprep.subr.bf16.mxu0 0
        %3272 = vmatpush1.bf16.msra.mxu0 %v2930
        %3273 = vmatprep.subr.bf16.mxu0 0
        %3274 = vmatpush1.bf16.msra.mxu0 %v2937
        %3275 = vmatprep.subr.bf16.mxu0 0
        %3276 = vmatpush1.bf16.msra.mxu0 %v2944
        %3277 = vmatprep.subr.bf16.mxu0 0
        %3278 = vmatpush1.bf16.msra.mxu0 %v2951
        %3279 = vmatprep.subr.bf16.mxu0 0
        %3280 = vmatpush1.bf16.msra.mxu0 %v2958
        %3281 = vmatprep.subr.bf16.mxu0 0
        %3282 = vmatpush1.bf16.msra.mxu0 %v2965
        %3283 = vmatprep.subr.bf16.mxu0 0
        %3284 = vmatpush1.bf16.msra.mxu0 %v2972
        %3285 = vmatprep.subr.bf16.mxu0 0
        %3286 = vmatpush1.bf16.msra.mxu0 %v2979
        %3287 = vmatprep.subr.bf16.mxu0 0
        %3288 = vmatpush1.bf16.msra.mxu0 %v2986
        %3289 = vmatprep.subr.bf16.mxu0 0
        %3290 = vmatpush1.bf16.msra.mxu0 %v2993
        %3291 = vmatprep.subr.bf16.mxu0 0
        %3292 = vmatpush1.bf16.msra.mxu0 %v3000
        %3293 = vmatprep.subr.bf16.mxu0 0
        %3294 = vmatpush1.bf16.msra.mxu0 %v3007
        %3295 = vmatprep.subr.bf16.mxu0 0
        %3296 = vmatpush1.bf16.msra.mxu0 %v3014
        %3297 = vmatprep.subr.bf16.mxu0 0
        %3298 = vmatpush1.bf16.msra.mxu0 %v3021
        %3299 = vmatprep.subr.bf16.mxu0 0
        %3300 = vmatpush1.bf16.msra.mxu0 %v3028
        %3301 = vmatprep.subr.bf16.mxu0 0
        %3302 = vmatpush1.bf16.msra.mxu0 %v3035
        %3303 = vmatprep.mubr.bf16.mxu0 %v2443
        %3304 = vmatmul.mubr.bf16.gmra.mrb[0].mxu0 %v2442
        %v3305 = vpop.f32.mrb[0].mxu0
        %v3306 = vadd.f32 0.0, %v3305
        %v3307 = vpop.f32.mrb[0].mxu0
        %v3308 = vpop.f32.mrb[0].mxu0
        %v3309 = vpop.f32.mrb[0].mxu0
        %3310 = vdwg.mxu0
        %v3311 = vadd.f32 %v2435, %v3183
        %v3312 = vadd.f32 %v2436, %v3185
        %v3313 = vadd.f32 %v2437, %v3224
        %v3314 = vadd.f32 %v2438, %v3226
        %v3315 = vadd.f32 %v2439, %v3265
        %v3316 = vadd.f32 %v2440, %v3267
        %v3317 = vadd.f32 %v2441, %v3306
        %3318 = vst [vmem:[#allocation3] sm:$0xff] %v3311
        %3319 = vst [vmem:[#allocation3 + $0x8] sm:$0xff] %v3312
        %3320 = vst [vmem:[#allocation3 + $0x10] sm:$0xff] %v3313
        %3321 = vst [vmem:[#allocation3 + $0x18] sm:$0xff] %v3314
        %3322 = vst [vmem:[#allocation3 + $0x20] sm:$0xff] %v3315
        %3323 = vst [vmem:[#allocation3 + $0x28] sm:$0xff] %v3316
        %3324 = vst [vmem:[#allocation3 + $0x30] sm:$0xff] %v3317
        %p3325 = scmp.eq.s32.totalorder %s19, 3
        // Predicated region
        $region91: #{generator_forward.1} parent=81 // pred_check
          %p3326 = pneg %p3325
        $region92: #{generator_forward.1} parent=81 // pred_check_branch
          %3328 = sbr.rel (%p3326) target = $region94
        $region93: #{generator_forward.1} parent=81 // pred_region
          %v3329 = vld [vmem:[#allocation3] sm:$0xff]
          %v3330 = vld [vmem:[#allocation3 + $0x8] sm:$0xff]
          %v3331 = vld [vmem:[#allocation3 + $0x10] sm:$0xff]
          %v3332 = vld [vmem:[#allocation3 + $0x18] sm:$0xff]
          %v3333 = vld [vmem:[#allocation3 + $0x20] sm:$0xff]
          %v3334 = vld [vmem:[#allocation3 + $0x28] sm:$0xff]
          %v3335 = vld [vmem:[#allocation3 + $0x30] sm:$0xff]
          %v3336 = vld [vmem:[%s6] sm:$0xff]
          %v3338 = vlaneseq
          %v3339 = vshrl.u32 %v3338, 7
          %v3340 = vsub.s32 0, %v3339
          %v3341 = vrot.slane %v3336, %v3340
          %v3342 = vlaneseq
          %v3343 = vshrl.u32 %v3342, 7
          %v3344 = vsub.s32 1, %v3343
          %v3345 = vrot.slane %v3336, %v3344
          %v3346 = vlaneseq
          %v3347 = vshrl.u32 %v3346, 7
          %v3348 = vsub.s32 2, %v3347
          %v3349 = vrot.slane %v3336, %v3348
          %v3350 = vlaneseq
          %v3351 = vshrl.u32 %v3350, 7
          %v3352 = vsub.s32 3, %v3351
          %v3353 = vrot.slane %v3336, %v3352
          %v3354 = vlaneseq
          %v3355 = vshrl.u32 %v3354, 7
          %v3356 = vsub.s32 4, %v3355
          %v3357 = vrot.slane %v3336, %v3356
          %v3358 = vlaneseq
          %v3359 = vshrl.u32 %v3358, 7
          %v3360 = vsub.s32 5, %v3359
          %v3361 = vrot.slane %v3336, %v3360
          %v3362 = vlaneseq
          %v3363 = vshrl.u32 %v3362, 7
          %v3364 = vsub.s32 6, %v3363
          %v3365 = vrot.slane %v3336, %v3364
          %v3373 = vadd.f32 %v3329, %v3341
          %v3374 = vadd.f32 %v3330, %v3345
          %v3375 = vadd.f32 %v3331, %v3349
          %v3376 = vadd.f32 %v3332, %v3353
          %v3377 = vadd.f32 %v3333, %v3357
          %v3378 = vadd.f32 %v3334, %v3361
          %v3379 = vadd.f32 %v3335, %v3365
          %v3380 = vtanh.pop %v3373
          %v3381 = vtanh.pop %v3374
          %v3382 = vtanh.pop %v3375
          %v3383 = vtanh.pop %v3376
          %v3384 = vtanh.pop %v3377
          %v3385 = vtanh.pop %v3378
          %v3386 = vtanh.pop %v3379
          %3387 = vst [vmem:[#allocation5] sm:$0xff] %v3380
          %3388 = vst [vmem:[#allocation5 + $0x8] sm:$0xff] %v3381
          %3389 = vst [vmem:[#allocation5 + $0x10] sm:$0xff] %v3382
          %3390 = vst [vmem:[#allocation5 + $0x18] sm:$0xff] %v3383
          %3391 = vst [vmem:[#allocation5 + $0x20] sm:$0xff] %v3384
          %3392 = vst [vmem:[#allocation5 + $0x28] sm:$0xff] %v3385
          %3393 = vst [vmem:[#allocation5 + $0x30] sm:$0xff] %v3386
        $region94: #{generator_forward.1} parent=81 // pred_fallthru
          _
        // Predicated region
        $region95: #{generator_forward.1} parent=81 // pred_check
          %p3394 = pneg %p194
        $region96: #{generator_forward.1} parent=81 // pred_check_branch
          %3396 = sbr.rel (%p3394) target = $region98
        $region97: #{generator_forward.1} parent=81 // pred_region
          %s3398 = ssub.s32 896, 896
          %3399 = vsyncadd [#allocation6], %s3398
          %s3401 = sshll.u32 [#allocation5], 4
          %s3402 = int_to_ptr.vmem [resolvable:$true] %s3401
          %3404 = dma.vmem_to_hbm [thread:$0]  %s3402, 896, %s7, [#allocation6]
        $region98: #{generator_forward.1} parent=81 // pred_fallthru
          _
        // Predicated region
        $region99: #{generator_forward.1} parent=81 // pred_check
          %p3405 = pneg %p194
        $region100: #{generator_forward.1} parent=81 // pred_check_branch
          %3407 = sbr.rel (%p3405) target = $region102
        $region101: #{generator_forward.1} parent=81 // pred_region
          %3408 = dma.done [#allocation6], 896
        $region102: #{generator_forward.1} parent=81 // pred_fallthru
          _
      $region82: #{generator_forward.1} parent=5 // pred_fallthru
        _
      %p3409 = scmp.le.s32.totalorder 2, %s14
      // Predicated region
      $region103: #{generator_forward.1} parent=5 // pred_check
        %p3410 = pneg %p3409
      $region104: #{generator_forward.1} parent=5 // pred_check_branch
        %3412 = sbr.rel (%p3410) target = $region106
      $region105: #{generator_forward.1} parent=5 // pred_region
        %s3413 = ssub.s32 %s14, 2
      $region106: #{generator_forward.1} parent=5 // pred_fallthru
        _
    $region6: #{generator_forward.1} parent=1 // loop_footer
      %s18 = sadd.s32 1, %s14
    $region7: #{generator_forward.1} parent=1 // loop_footer_branch
      %13 = sbr.rel target = $region3
    $region8: #{generator_forward.1} parent=1 // loop_exit
      _
    %3414 = vsyncpa [#allocation6], 1
    %s3415 = scalar_lea.sflag [#allocation6], 1
    %3416 = vsyncpa %s3415, 1

</llo_original>
